<compile_context>
chip_gen: v7x
topology: tpu7x:2x2x1
jax: 0.10.0
libtpu: 0.0.40
codegen_flags: <defaults>
</compile_context>

<pallas_src>
import functools

import jax
import jax.numpy as jnp
from jax.experimental import pallas as pl
from jax.experimental.pallas import tpu as pltpu

IN_DIM = 784            # 28 * 28
HID_DIM = 400
LATENT_DIM = 20         # args.latent_dim (fc3 is Linear(20, 400), so it must be 20)
HID_PAD = 512           # 400 -> 4 * 128 lanes
LATENT_PAD = 128        # one 128-lane group: [mu (20) | zeros] / [logvar (20) | zeros]
STATS_PAD = 2 * LATENT_PAD  # [ mu-group | logvar-group ] -> 2 * 128 lanes


def _round_up(n, m):
    return ((n + m - 1) // m) * m


def _vmem_capacity_bytes():
    """Per-core VMEM capacity; conservative fallback if the query fails."""
    try:
        info = pltpu.get_tpu_info()
        for name in ("vmem_capacity_bytes", "vmem_size_bytes", "vmem_bytes"):
            v = getattr(info, name, None)
            if v:
                return int(v)
    except Exception:
        pass
    return 64 << 20  # v7x per-TensorCore VMEM (most restrictive generation)


def _per_step_vmem_bytes(tb):
    """Generous per-grid-step VMEM estimate used to size TB."""
    # Double-buffered streamed tiles: x bf16, eps bf16, recon bf16, stats f32.
    stream = 2 * tb * (2 * IN_DIM + 2 * LATENT_PAD + 2 * IN_DIM + 4 * STATS_PAD)
    # Resident weights/biases (the default pipeliner double-buffers them).
    weights = 2 * (2 * IN_DIM * HID_PAD + 4 * HID_PAD * STATS_PAD
                   + 2 * LATENT_PAD * HID_PAD + 2 * HID_PAD * IN_DIM
                   + 4 * (HID_PAD + STATS_PAD + HID_PAD + IN_DIM))
    # f32 intermediates (h, h2, logits, z/std, bf16 casts) — deliberately padded.
    interm = tb * 4 * (2 * HID_PAD + 3 * IN_DIM + 4 * STATS_PAD)
    return stream + weights + interm


# --------------------------------------------------------------------------
# Kernel
# --------------------------------------------------------------------------
def _vae_kernel(x_ref, eps_ref,
                w1_ref, b1_ref,
                ws_ref, bs_ref,
                w3_ref, b3_ref,
                w4_ref, b4_ref,
                recon_ref, stats_ref):
    # ---- encoder: fc1 + ReLU (bf16 operands, f32 accumulation) ----------
    h = jnp.dot(x_ref[...], w1_ref[...], preferred_element_type=jnp.float32)
    h = jnp.maximum(h + b1_ref[...], 0.0)                        # (TB, 512) f32

    # ---- fused fc21 | fc22 in f32 (tiny matmul; keeps mu/logvar accurate)
    # lanes [0:20]   of group 0 (cols   0:128) = mu,  rest exact zeros
    # lanes [0:20]   of group 1 (cols 128:256) = logvar, rest exact zeros
    stats = jnp.dot(h, ws_ref[...], preferred_element_type=jnp.float32) + bs_ref[...]
    stats_ref[...] = stats                                        # (TB, 256) f32, lane-dense

    # ---- reparameterize: z = mu + eps * exp(0.5 * logvar) ---------------
    mu_blk = stats[:, :LATENT_PAD]          # vreg-aligned slice, no lane shift
    logvar_blk = stats[:, LATENT_PAD:]      # padded lanes are exact zeros
    std = jnp.exp(0.5 * logvar_blk)         # padded lanes -> exp(0) = 1 (finite)
    eps = eps_ref[...].astype(jnp.float32)  # padded lanes are zero
    z = mu_blk + eps * std                  # padded lanes are exactly zero

    # ---- decoder: fc3 + ReLU, fc4 + sigmoid ------------------------------
    h2 = jnp.dot(z.astype(jnp.bfloat16), w3_ref[...],
                 preferred_element_type=jnp.float32)
    h2 = jnp.maximum(h2 + b3_ref[...], 0.0)                       # (TB, 512) f32
    logits = jnp.dot(h2.astype(jnp.bfloat16), w4_ref[...],
                     preferred_element_type=jnp.float32) + b4_ref[...]
    # TODO(synk): on v6e/v7x an EUP approx-reciprocal sigmoid
    # (pl.reciprocal(1 + exp(-x), approx=True)) frees VPU divide cycles; kept
    # as jax.nn.sigmoid for portability (the kernel is HBM-bound there anyway).
    recon_ref[...] = jax.nn.sigmoid(logits).astype(recon_ref.dtype)  # bf16 store


# --------------------------------------------------------------------------
# Wrapper
# --------------------------------------------------------------------------
@functools.partial(jax.jit, static_argnames=("tb",))
def vae_forward(x, eps, params, *, tb=1024):
    """x: (B, 28, 28) bf16 (preferred) or f32; eps: (B, LATENT_DIM) f32.

    Returns (reconstruction (B, 784) bf16, mu (B, 20) f32, logvar (B, 20) f32).
    """
    B = x.shape[0]
    x_flat = x.reshape(B, IN_DIM)                   # == torch x.flatten(-2, -1)
    if x_flat.dtype != jnp.bfloat16:
        # Prefer producing x in bf16 upstream; this cast is a fallback.
        x_flat = x_flat.astype(jnp.bfloat16)
    # eps padded to one 128-lane group (padded lanes zero), streamed in bf16.
    # TODO(synk): generate eps in-kernel (pltpu.prng_seed + stateful_normal) to
    # drop this stream entirely (changes RNG semantics vs an external randn).
    eps_pad = jnp.pad(eps.astype(jnp.float32),
                      ((0, 0), (0, LATENT_PAD - LATENT_DIM))).astype(jnp.bfloat16)

    # ---- VMEM-aware batch tile -------------------------------------------
    vmem_cap = _vmem_capacity_bytes()
    budget = int(0.8 * vmem_cap)
    TB = min(tb, _round_up(B, 16))
    while TB > 16 and _per_step_vmem_bytes(TB) > budget:
        TB = max(16, _round_up(TB // 2, 16))
    if _round_up(B, TB) // TB < 2 and B > 16:
        # >= 2 grid steps so the "parallel" batch axis splits across both v7x TCs.
        TB = max(16, _round_up(_round_up(B, 16) // 2, 16))
    Bp = _round_up(B, TB)
    if Bp != B:
        x_flat = jnp.pad(x_flat, ((0, Bp - B), (0, 0)))
        eps_pad = jnp.pad(eps_pad, ((0, Bp - B), (0, 0)))
    grid = (Bp // TB,)

    # Activation tiles move with the batch grid index; weights stay resident.
    # TODO(synk): single-buffer the constant weight specs (pipeline_mode=
    # pl.Buffered(1)) to reclaim ~2 MiB of VMEM headroom for even larger TB.
    batch_spec = lambda shape: pl.BlockSpec(shape, lambda i: (i, 0))
    const_spec = lambda shape: pl.BlockSpec(shape, lambda i: (0, 0))

    in_specs = [
        batch_spec((TB, IN_DIM)),            # x (bf16)
        batch_spec((TB, LATENT_PAD)),        # eps (bf16, padded)
        const_spec((IN_DIM, HID_PAD)),       # w1 (bf16)
        const_spec((1, HID_PAD)),            # b1 (f32)
        const_spec((HID_PAD, STATS_PAD)),    # ws = fc21|fc22 fused (f32)
        const_spec((1, STATS_PAD)),          # bs (f32)
        const_spec((LATENT_PAD, HID_PAD)),   # w3 (bf16)
        const_spec((1, HID_PAD)),            # b3 (f32)
        const_spec((HID_PAD, IN_DIM)),       # w4 (bf16)
        const_spec((1, IN_DIM)),             # b4 (f32)
    ]
    out_specs = (
        batch_spec((TB, IN_DIM)),            # reconstruction (bf16)
        batch_spec((TB, STATS_PAD)),         # packed [mu-group | logvar-group] (f32)
    )
    out_shape = (
        jax.ShapeDtypeStruct((Bp, IN_DIM), jnp.bfloat16),
        jax.ShapeDtypeStruct((Bp, STATS_PAD), jnp.float32),
    )

    flops = 2 * Bp * (IN_DIM * HID_PAD + HID_PAD * STATS_PAD
                      + LATENT_PAD * HID_PAD + HID_PAD * IN_DIM)
    transcendentals = Bp * (LATENT_PAD + IN_DIM)                 # exp + sigmoid
    weight_bytes = (2 * IN_DIM * HID_PAD + 4 * HID_PAD * STATS_PAD
                    + 2 * LATENT_PAD * HID_PAD + 2 * HID_PAD * IN_DIM
                    + 4 * (HID_PAD + STATS_PAD + HID_PAD + IN_DIM))
    act_bytes = Bp * (2 * IN_DIM + 2 * LATENT_PAD + 2 * IN_DIM + 4 * STATS_PAD)
    cost = pl.CostEstimate(flops=flops, transcendentals=transcendentals,
                           bytes_accessed=weight_bytes + act_bytes)

    vmem_limit = max(32 << 20, min(int(0.9 * vmem_cap), 128 << 20))

    recon, stats = pl.pallas_call(
        _vae_kernel,
        grid=grid,
        in_specs=in_specs,
        out_specs=out_specs,
        out_shape=out_shape,
        cost_estimate=cost,
        compiler_params=pltpu.CompilerParams(
            dimension_semantics=("parallel",),
            vmem_limit_bytes=vmem_limit,
        ),
    )(
        x_flat, eps_pad,
        params["w1"], params["b1"],
        params["ws"], params["bs"],
        params["w3"], params["b3"],
        params["w4"], params["b4"],
    )

    recon = recon[:B]
    mu = stats[:B, :LATENT_DIM]
    logvar = stats[:B, LATENT_PAD:LATENT_PAD + LATENT_DIM]
    return recon, mu, logvar


# --------------------------------------------------------------------------
# Parameter construction
# --------------------------------------------------------------------------
def init_params(key):
    """Logical (unpadded, f32) params mimicking nn.Linear default init.

    Weights are stored transposed, shape (in, out): y = x @ W + b.
    """
    def linear(key, fan_in, fan_out):
        kw, kb = jax.random.split(key)
        bound = 1.0 / jnp.sqrt(jnp.float32(fan_in))
        w = jax.random.uniform(kw, (fan_in, fan_out), jnp.float32, -bound, bound)
        b = jax.random.uniform(kb, (fan_out,), jnp.float32, -bound, bound)
        return w, b

    k1, k21, k22, k3, k4 = jax.random.split(key, 5)
    w1, b1 = linear(k1, IN_DIM, HID_DIM)          # fc1:  784 -> 400
    w21, b21 = linear(k21, HID_DIM, LATENT_DIM)   # fc21: 400 -> 20
    w22, b22 = linear(k22, HID_DIM, LATENT_DIM)   # fc22: 400 -> 20
    w3, b3 = linear(k3, LATENT_DIM, HID_DIM)      # fc3:  20  -> 400
    w4, b4 = linear(k4, HID_DIM, IN_DIM)          # fc4:  400 -> 784
    return dict(w1=w1, b1=b1, w21=w21, b21=b21, w22=w22, b22=b22,
                w3=w3, b3=b3, w4=w4, b4=b4)


def pack_params(p):
    """Zero-pad to lane-aligned shapes, fuse fc21|fc22, cast big weights to bf16."""
    def pad2(a, rows, cols, dtype):
        return jnp.pad(a, ((0, rows - a.shape[0]), (0, cols - a.shape[1]))).astype(dtype)

    def pad1(a, cols):
        return jnp.pad(a, (0, cols - a.shape[0])).reshape(1, cols).astype(jnp.float32)

    # Fused stats weights: mu weights in lanes [0:20] of group 0, logvar weights
    # in lanes [0:20] of group 1 (cols 128:148).  Kept in f32 (tiny, accuracy).
    ws = jnp.zeros((HID_PAD, STATS_PAD), jnp.float32)
    ws = ws.at[:HID_DIM, :LATENT_DIM].set(p["w21"])
    ws = ws.at[:HID_DIM, LATENT_PAD:LATENT_PAD + LATENT_DIM].set(p["w22"])
    bs = jnp.zeros((1, STATS_PAD), jnp.float32)
    bs = bs.at[0, :LATENT_DIM].set(p["b21"])
    bs = bs.at[0, LATENT_PAD:LATENT_PAD + LATENT_DIM].set(p["b22"])

    return dict(
        w1=pad2(p["w1"], IN_DIM, HID_PAD, jnp.bfloat16),      # (784, 512) bf16
        b1=pad1(p["b1"], HID_PAD),                            # (1, 512) f32
        ws=ws,                                                # (512, 256) f32
        bs=bs,                                                # (1, 256) f32
        w3=pad2(p["w3"], LATENT_PAD, HID_PAD, jnp.bfloat16),  # (128, 512) bf16
        b3=pad1(p["b3"], HID_PAD),                            # (1, 512) f32
        w4=pad2(p["w4"], HID_PAD, IN_DIM, jnp.bfloat16),      # (512, 784) bf16
        b4=pad1(p["b4"], IN_DIM),                             # (1, 784) f32
    )


def vae_reference(x, eps, p):
    """Pure-JAX f32 reference with PyTorch semantics."""
    B = x.shape[0]
    xf = x.reshape(B, IN_DIM)
    h = jnp.maximum(xf @ p["w1"] + p["b1"], 0.0)
    mu = h @ p["w21"] + p["b21"]
    logvar = h @ p["w22"] + p["b22"]
    z = mu + eps * jnp.exp(0.5 * logvar)
    h2 = jnp.maximum(z @ p["w3"] + p["b3"], 0.0)
    recon = jax.nn.sigmoid(h2 @ p["w4"] + p["b4"])
    return recon, mu, logvar


# --------------------------------------------------------------------------
if __name__ == "__main__":
    key = jax.random.PRNGKey(0)
    k_params, k_x, k_eps = jax.random.split(key, 3)

    B = 2
    raw_params = init_params(k_params)
    packed_params = pack_params(raw_params)

    x_f32 = jax.random.uniform(k_x, (B, 28, 28), jnp.float32)     # MNIST-like input
    x = x_f32.astype(jnp.bfloat16)                                 # stream x in bf16
    eps = jax.random.normal(k_eps, (B, LATENT_DIM), jnp.float32)   # torch.randn_like(std)

    recon, mu, logvar = vae_forward(x, eps, packed_params)
    jax.block_until_ready((recon, mu, logvar))

    # Shape / range sanity.
    assert recon.shape == (B, IN_DIM)
    assert mu.shape == (B, LATENT_DIM)
    assert logvar.shape == (B, LATENT_DIM)
    assert bool(jnp.all((recon >= 0.0) & (recon <= 1.0)))

    # Compare against a pure-JAX f32 reference on the same (bf16-rounded) x.
    # Loose tolerance: bf16 weights/activations on the MXU path, bf16 outputs.
    r_recon, r_mu, r_logvar = vae_reference(x.astype(jnp.float32), eps, raw_params)
    assert float(jnp.max(jnp.abs(recon.astype(jnp.float32) - r_recon))) < 5e-2
    assert float(jnp.max(jnp.abs(mu - r_mu))) < 5e-2
    assert float(jnp.max(jnp.abs(logvar - r_logvar))) < 5e-2

    print("KERNEL_OK")
</pallas_src>

<mosaic_0001>
module attributes {stable_mosaic.version = 11 : i64} {
  func.func @_vae_kernel(%arg0: i32, %arg1: memref<16x784xbf16, #tpu.memory_space<vmem>>, %arg2: memref<16x128xbf16, #tpu.memory_space<vmem>>, %arg3: memref<784x512xbf16, #tpu.memory_space<vmem>>, %arg4: memref<1x512xf32, #tpu.memory_space<vmem>>, %arg5: memref<512x256xf32, #tpu.memory_space<vmem>>, %arg6: memref<1x256xf32, #tpu.memory_space<vmem>>, %arg7: memref<128x512xbf16, #tpu.memory_space<vmem>>, %arg8: memref<1x512xf32, #tpu.memory_space<vmem>>, %arg9: memref<512x784xbf16, #tpu.memory_space<vmem>>, %arg10: memref<1x784xf32, #tpu.memory_space<vmem>>, %arg11: memref<16x784xbf16, #tpu.memory_space<vmem>>, %arg12: memref<16x256xf32, #tpu.memory_space<vmem>>) attributes {dimension_semantics = [#tpu.dimension_semantics<parallel>], iteration_bounds = array<i64: 1>, scalar_prefetch = 0 : i64, scratch_operands = 0 : i64, tpu.core_type = #tpu.core_type<tc>, window_params = [{transform_indices = @transform_0, window_bounds = array<i64: 16, 784>}, {transform_indices = @transform_1, window_bounds = array<i64: 16, 128>}, {pipeline_mode = #tpu.pipeline_mode<synchronous>, transform_indices = @transform_2, window_bounds = array<i64: 784, 512>}, {pipeline_mode = #tpu.pipeline_mode<synchronous>, transform_indices = @transform_3, window_bounds = array<i64: 1, 512>}, {pipeline_mode = #tpu.pipeline_mode<synchronous>, transform_indices = @transform_4, window_bounds = array<i64: 512, 256>}, {pipeline_mode = #tpu.pipeline_mode<synchronous>, transform_indices = @transform_5, window_bounds = array<i64: 1, 256>}, {pipeline_mode = #tpu.pipeline_mode<synchronous>, transform_indices = @transform_6, window_bounds = array<i64: 128, 512>}, {pipeline_mode = #tpu.pipeline_mode<synchronous>, transform_indices = @transform_7, window_bounds = array<i64: 1, 512>}, {pipeline_mode = #tpu.pipeline_mode<synchronous>, transform_indices = @transform_8, window_bounds = array<i64: 512, 784>}, {pipeline_mode = #tpu.pipeline_mode<synchronous>, transform_indices = @transform_9, window_bounds = array<i64: 1, 784>}, {transform_indices = @transform_10, window_bounds = array<i64: 16, 784>}, {transform_indices = @transform_11, window_bounds = array<i64: 16, 256>}]} {
    %c0 = arith.constant 0 : index
    %c0_0 = arith.constant 0 : index
    %0 = vector.load %arg1[%c0, %c0_0] : memref<16x784xbf16, #tpu.memory_space<vmem>>, vector<16x784xbf16>
    %c0_1 = arith.constant 0 : index
    %c0_2 = arith.constant 0 : index
    %1 = vector.load %arg3[%c0_1, %c0_2] : memref<784x512xbf16, #tpu.memory_space<vmem>>, vector<784x512xbf16>
    %cst = arith.constant dense<0.000000e+00> : vector<16x512xf32>
    %2 = tpu.matmul %0, %1, %cst {dimension_numbers = #tpu.dot_dimension_numbers<[1], [0], [0], [1], [0, 0, 1, 1], [], []>} : vector<16x784xbf16>, vector<784x512xbf16>, vector<16x512xf32> -> vector<16x512xf32>
    %c0_3 = arith.constant 0 : index
    %c0_4 = arith.constant 0 : index
    %3 = vector.load %arg4[%c0_3, %c0_4] : memref<1x512xf32, #tpu.memory_space<vmem>>, vector<1x512xf32>
    %4 = vector.broadcast %3 : vector<1x512xf32> to vector<16x512xf32>
    %5 = arith.addf %2, %4 : vector<16x512xf32>
    %cst_5 = arith.constant 0.000000e+00 : f32
    %6 = vector.broadcast %cst_5 : f32 to vector<16x512xf32>
    %7 = arith.maximumf %5, %6 : vector<16x512xf32>
    %c0_6 = arith.constant 0 : index
    %c0_7 = arith.constant 0 : index
    %8 = vector.load %arg5[%c0_6, %c0_7] : memref<512x256xf32, #tpu.memory_space<vmem>>, vector<512x256xf32>
    %cst_8 = arith.constant dense<0.000000e+00> : vector<16x256xf32>
    %9 = tpu.matmul %7, %8, %cst_8 {dimension_numbers = #tpu.dot_dimension_numbers<[1], [0], [0], [1], [0, 0, 1, 1], [], []>} : vector<16x512xf32>, vector<512x256xf32>, vector<16x256xf32> -> vector<16x256xf32>
    %c0_9 = arith.constant 0 : index
    %c0_10 = arith.constant 0 : index
    %10 = vector.load %arg6[%c0_9, %c0_10] : memref<1x256xf32, #tpu.memory_space<vmem>>, vector<1x256xf32>
    %11 = vector.broadcast %10 : vector<1x256xf32> to vector<16x256xf32>
    %12 = arith.addf %9, %11 : vector<16x256xf32>
    %c0_11 = arith.constant 0 : index
    %c0_12 = arith.constant 0 : index
    %13 = vector.load %arg12[%c0_11, %c0_12] : memref<16x256xf32, #tpu.memory_space<vmem>>, vector<16x256xf32>
    tpu.vector_store %arg12[%c0_11, %c0_12], %12 {strides = array<i32>} : memref<16x256xf32, #tpu.memory_space<vmem>>, vector<16x256xf32>,
    %14 = vector.extract_strided_slice %12 {offsets = [0, 0], sizes = [16, 128], strides = [1, 1]} : vector<16x256xf32> to vector<16x128xf32>
    %15 = vector.extract_strided_slice %12 {offsets = [0, 128], sizes = [16, 128], strides = [1, 1]} : vector<16x256xf32> to vector<16x128xf32>
    %cst_13 = arith.constant 5.000000e-01 : f32
    %16 = vector.broadcast %cst_13 : f32 to vector<16x128xf32>
    %17 = arith.mulf %16, %15 : vector<16x128xf32>
    %18 = math.exp %17 : vector<16x128xf32>
    %c0_14 = arith.constant 0 : index
    %c0_15 = arith.constant 0 : index
    %19 = vector.load %arg2[%c0_14, %c0_15] : memref<16x128xbf16, #tpu.memory_space<vmem>>, vector<16x128xbf16>
    %20 = arith.extf %19 : vector<16x128xbf16> to vector<16x128xf32>
    %21 = arith.mulf %20, %18 : vector<16x128xf32>
    %22 = arith.addf %14, %21 : vector<16x128xf32>
    %23 = arith.truncf %22 : vector<16x128xf32> to vector<16x128xbf16>
    %c0_16 = arith.constant 0 : index
    %c0_17 = arith.constant 0 : index
    %24 = vector.load %arg7[%c0_16, %c0_17] : memref<128x512xbf16, #tpu.memory_space<vmem>>, vector<128x512xbf16>
    %cst_18 = arith.constant dense<0.000000e+00> : vector<16x512xf32>
    %25 = tpu.matmul %23, %24, %cst_18 {dimension_numbers = #tpu.dot_dimension_numbers<[1], [0], [0], [1], [0, 0, 1, 1], [], []>} : vector<16x128xbf16>, vector<128x512xbf16>, vector<16x512xf32> -> vector<16x512xf32>
    %c0_19 = arith.constant 0 : index
    %c0_20 = arith.constant 0 : index
    %26 = vector.load %arg8[%c0_19, %c0_20] : memref<1x512xf32, #tpu.memory_space<vmem>>, vector<1x512xf32>
    %27 = vector.broadcast %26 : vector<1x512xf32> to vector<16x512xf32>
    %28 = arith.addf %25, %27 : vector<16x512xf32>
    %cst_21 = arith.constant 0.000000e+00 : f32
    %29 = vector.broadcast %cst_21 : f32 to vector<16x512xf32>
    %30 = arith.maximumf %28, %29 : vector<16x512xf32>
    %31 = arith.truncf %30 : vector<16x512xf32> to vector<16x512xbf16>
    %c0_22 = arith.constant 0 : index
    %c0_23 = arith.constant 0 : index
    %32 = vector.load %arg9[%c0_22, %c0_23] : memref<512x784xbf16, #tpu.memory_space<vmem>>, vector<512x784xbf16>
    %cst_24 = arith.constant dense<0.000000e+00> : vector<16x784xf32>
    %33 = tpu.matmul %31, %32, %cst_24 {dimension_numbers = #tpu.dot_dimension_numbers<[1], [0], [0], [1], [0, 0, 1, 1], [], []>} : vector<16x512xbf16>, vector<512x784xbf16>, vector<16x784xf32> -> vector<16x784xf32>
    %c0_25 = arith.constant 0 : index
    %c0_26 = arith.constant 0 : index
    %34 = vector.load %arg10[%c0_25, %c0_26] : memref<1x784xf32, #tpu.memory_space<vmem>>, vector<1x784xf32>
    %35 = vector.broadcast %34 : vector<1x784xf32> to vector<16x784xf32>
    %36 = arith.addf %33, %35 : vector<16x784xf32>
    %37 = arith.negf %36 : vector<16x784xf32>
    %38 = math.exp %37 : vector<16x784xf32>
    %cst_27 = arith.constant 1.000000e+00 : f32
    %39 = vector.broadcast %cst_27 : f32 to vector<16x784xf32>
    %40 = arith.addf %39, %38 : vector<16x784xf32>
    %41 = arith.divf %39, %40 : vector<16x784xf32>
    %42 = arith.truncf %41 : vector<16x784xf32> to vector<16x784xbf16>
    %c0_28 = arith.constant 0 : index
    %c0_29 = arith.constant 0 : index
    %43 = vector.load %arg11[%c0_28, %c0_29] : memref<16x784xbf16, #tpu.memory_space<vmem>>, vector<16x784xbf16>
    tpu.vector_store %arg11[%c0_28, %c0_29], %42 {strides = array<i32>} : memref<16x784xbf16, #tpu.memory_space<vmem>>, vector<16x784xbf16>,
    return
  }
  func.func @transform_0(%arg0: i32) -> (i32, i32) {
    %c0_i32 = arith.constant 0 : i32
    %c0_i32_0 = arith.constant 0 : i32
    return %arg0, %c0_i32 : i32, i32
  }
  func.func @transform_1(%arg0: i32) -> (i32, i32) {
    %c0_i32 = arith.constant 0 : i32
    %c0_i32_0 = arith.constant 0 : i32
    return %arg0, %c0_i32 : i32, i32
  }
  func.func @transform_2(%arg0: i32) -> (i32, i32) {
    %c0_i32 = arith.constant 0 : i32
    %c0_i32_0 = arith.constant 0 : i32
    %c0_i32_1 = arith.constant 0 : i32
    return %c0_i32, %c0_i32_0 : i32, i32
  }
  func.func @transform_3(%arg0: i32) -> (i32, i32) {
    %c0_i32 = arith.constant 0 : i32
    %c0_i32_0 = arith.constant 0 : i32
    %c0_i32_1 = arith.constant 0 : i32
    return %c0_i32, %c0_i32_0 : i32, i32
  }
  func.func @transform_4(%arg0: i32) -> (i32, i32) {
    %c0_i32 = arith.constant 0 : i32
    %c0_i32_0 = arith.constant 0 : i32
    %c0_i32_1 = arith.constant 0 : i32
    return %c0_i32, %c0_i32_0 : i32, i32
  }
  func.func @transform_5(%arg0: i32) -> (i32, i32) {
    %c0_i32 = arith.constant 0 : i32
    %c0_i32_0 = arith.constant 0 : i32
    %c0_i32_1 = arith.constant 0 : i32
    return %c0_i32, %c0_i32_0 : i32, i32
  }
  func.func @transform_6(%arg0: i32) -> (i32, i32) {
    %c0_i32 = arith.constant 0 : i32
    %c0_i32_0 = arith.constant 0 : i32
    %c0_i32_1 = arith.constant 0 : i32
    return %c0_i32, %c0_i32_0 : i32, i32
  }
  func.func @transform_7(%arg0: i32) -> (i32, i32) {
    %c0_i32 = arith.constant 0 : i32
    %c0_i32_0 = arith.constant 0 : i32
    %c0_i32_1 = arith.constant 0 : i32
    return %c0_i32, %c0_i32_0 : i32, i32
  }
  func.func @transform_8(%arg0: i32) -> (i32, i32) {
    %c0_i32 = arith.constant 0 : i32
    %c0_i32_0 = arith.constant 0 : i32
    %c0_i32_1 = arith.constant 0 : i32
    return %c0_i32, %c0_i32_0 : i32, i32
  }
  func.func @transform_9(%arg0: i32) -> (i32, i32) {
    %c0_i32 = arith.constant 0 : i32
    %c0_i32_0 = arith.constant 0 : i32
    %c0_i32_1 = arith.constant 0 : i32
    return %c0_i32, %c0_i32_0 : i32, i32
  }
  func.func @transform_10(%arg0: i32) -> (i32, i32) {
    %c0_i32 = arith.constant 0 : i32
    %c0_i32_0 = arith.constant 0 : i32
    return %arg0, %c0_i32 : i32, i32
  }
  func.func @transform_11(%arg0: i32) -> (i32, i32) {
    %c0_i32 = arith.constant 0 : i32
    %c0_i32_0 = arith.constant 0 : i32
    return %arg0, %c0_i32 : i32, i32
  }
}

</mosaic_0001>

<llo_original>
// kernel: vae_forward.1
$region0: #{vae_forward.1}
  #allocation0 [shape = 'u32[]', space=smem, size = 0x4, offset = 0x4, fixed_abs, tag = 'smem constant byte address 0x4 - core index']
  #allocation1 [shape = 'u32[144,128]{1,0:T(1,128)}', space=vmem, size = 0x12000, scoped, tag = 'internal scratch']
  %s0 = inlined_call_operand.vmem [shape: bf16[16,784], index: 0, kind: input, shape index: {}]
  %s1 = inlined_call_operand.vmem [shape: bf16[16,128], index: 1, kind: input, shape index: {}]
  %s2 = inlined_call_operand.vmem [shape: bf16[784,512], index: 2, kind: input, shape index: {}]
  %s3 = inlined_call_operand.vmem [shape: f32[1,512], index: 3, kind: input, shape index: {}]
  %s4 = inlined_call_operand.vmem [shape: f32[512,256], index: 4, kind: input, shape index: {}]
  %s5 = inlined_call_operand.vmem [shape: f32[1,256], index: 5, kind: input, shape index: {}]
  %s6 = inlined_call_operand.vmem [shape: bf16[128,512], index: 6, kind: input, shape index: {}]
  %s7 = inlined_call_operand.vmem [shape: f32[1,512], index: 7, kind: input, shape index: {}]
  %s8 = inlined_call_operand.vmem [shape: bf16[512,784], index: 8, kind: input, shape index: {}]
  %s9 = inlined_call_operand.vmem [shape: f32[1,784], index: 9, kind: input, shape index: {}]
  %s10 = inlined_call_operand.vmem [shape: bf16[16,784], index: 10, kind: output, shape index: {0}]
  %s11 = inlined_call_operand.vmem [shape: f32[16,256], index: 11, kind: output, shape index: {1}]
  %12 = xla_tuple %s10, %s11
  %s13 = sld [smem:[#allocation0]]
  $region58: #{vae_forward.1} parent=0
    _
  %s15 = ssub.s32 1, %s13
  %s16 = scalar_select 0, %s15, %s13
  // Predicated region
  $region2: #{vae_forward.1} parent=0 // pred_check
    _
  $region3: #{vae_forward.1} parent=0 // pred_check_branch
    %18 = sbr.rel (0) target = $region5
  $region4: #{vae_forward.1} parent=0 // pred_region
    _
  $region5: #{vae_forward.1} parent=0 // pred_fallthru
    _
  // Predicated region
  $region6: #{vae_forward.1} parent=0 // pred_check
    _
  $region7: #{vae_forward.1} parent=0 // pred_check_branch
    %20 = sbr.rel (0) target = $region9
  $region8: #{vae_forward.1} parent=0 // pred_region
    _
  $region9: #{vae_forward.1} parent=0 // pred_fallthru
    _
  // Predicated region
  $region10: #{vae_forward.1} parent=0 // pred_check
    _
  $region11: #{vae_forward.1} parent=0 // pred_check_branch
    %22 = sbr.rel (0) target = $region13
  $region12: #{vae_forward.1} parent=0 // pred_region
    _
  $region13: #{vae_forward.1} parent=0 // pred_fallthru
    _
  // Predicated region
  $region14: #{vae_forward.1} parent=0 // pred_check
    _
  $region15: #{vae_forward.1} parent=0 // pred_check_branch
    %24 = sbr.rel (0) target = $region17
  $region16: #{vae_forward.1} parent=0 // pred_region
    _
  $region17: #{vae_forward.1} parent=0 // pred_fallthru
    _
  // Predicated region
  $region18: #{vae_forward.1} parent=0 // pred_check
    _
  $region19: #{vae_forward.1} parent=0 // pred_check_branch
    %26 = sbr.rel (0) target = $region21
  $region20: #{vae_forward.1} parent=0 // pred_region
    _
  $region21: #{vae_forward.1} parent=0 // pred_fallthru
    _
  // Predicated region
  $region22: #{vae_forward.1} parent=0 // pred_check
    _
  $region23: #{vae_forward.1} parent=0 // pred_check_branch
    %28 = sbr.rel (0) target = $region25
  $region24: #{vae_forward.1} parent=0 // pred_region
    _
  $region25: #{vae_forward.1} parent=0 // pred_fallthru
    _
  // Predicated region
  $region26: #{vae_forward.1} parent=0 // pred_check
    _
  $region27: #{vae_forward.1} parent=0 // pred_check_branch
    %30 = sbr.rel (0) target = $region29
  $region28: #{vae_forward.1} parent=0 // pred_region
    _
  $region29: #{vae_forward.1} parent=0 // pred_fallthru
    _
  // Predicated region
  $region30: #{vae_forward.1} parent=0 // pred_check
    _
  $region31: #{vae_forward.1} parent=0 // pred_check_branch
    %32 = sbr.rel (0) target = $region33
  $region32: #{vae_forward.1} parent=0 // pred_region
    _
  $region33: #{vae_forward.1} parent=0 // pred_fallthru
    _
  // Predicated region
  $region34: #{vae_forward.1} parent=0 // pred_check
    _
  $region35: #{vae_forward.1} parent=0 // pred_check_branch
    %34 = sbr.rel (0) target = $region37
  $region36: #{vae_forward.1} parent=0 // pred_region
    _
  $region37: #{vae_forward.1} parent=0 // pred_fallthru
    _
  // Predicated region
  $region38: #{vae_forward.1} parent=0 // pred_check
    _
  $region39: #{vae_forward.1} parent=0 // pred_check_branch
    %36 = sbr.rel (0) target = $region41
  $region40: #{vae_forward.1} parent=0 // pred_region
    _
  $region41: #{vae_forward.1} parent=0 // pred_fallthru
    _
  %v38 = vld [vmem:[%s0] sm:$0xff]
  %v39 = vld [vmem:[%s0 + $0x8] sm:$0xff]
  %v40 = vld [vmem:[%s0 + $0x10] sm:$0xff]
  %v41 = vld [vmem:[%s0 + $0x18] sm:$0xf]
  %v42 = vld [vmem:[%s0 + $0x1c] sm:$0xff]
  %v43 = vld [vmem:[%s0 + $0x24] sm:$0xff]
  %v44 = vld [vmem:[%s0 + $0x2c] sm:$0xff]
  %v45 = vld [vmem:[%s0 + $0x34] sm:$0xf]
  %v46 = vld [vmem:[%s2] sm:$0xff]
  %v47 = vld [vmem:[%s2 + $0x8] sm:$0xff]
  %v48 = vld [vmem:[%s2 + $0x10] sm:$0xff]
  %v49 = vld [vmem:[%s2 + $0x18] sm:$0xff]
  %v50 = vld [vmem:[%s2 + $0x20] sm:$0xff]
  %v51 = vld [vmem:[%s2 + $0x28] sm:$0xff]
  %v52 = vld [vmem:[%s2 + $0x30] sm:$0xff]
  %v53 = vld [vmem:[%s2 + $0x38] sm:$0xff]
  %v54 = vld [vmem:[%s2 + $0x40] sm:$0xff]
  %v55 = vld [vmem:[%s2 + $0x48] sm:$0xff]
  %v56 = vld [vmem:[%s2 + $0x50] sm:$0xff]
  %v57 = vld [vmem:[%s2 + $0x58] sm:$0xff]
  %v58 = vld [vmem:[%s2 + $0x60] sm:$0xff]
  %v59 = vld [vmem:[%s2 + $0x68] sm:$0xff]
  %v60 = vld [vmem:[%s2 + $0x70] sm:$0xff]
  %v61 = vld [vmem:[%s2 + $0x78] sm:$0xff]
  %v62 = vld [vmem:[%s2 + $0x80] sm:$0xff]
  %v63 = vld [vmem:[%s2 + $0x88] sm:$0xff]
  %v64 = vld [vmem:[%s2 + $0x90] sm:$0xff]
  %v65 = vld [vmem:[%s2 + $0x98] sm:$0xff]
  %v66 = vld [vmem:[%s2 + $0xa0] sm:$0xff]
  %v67 = vld [vmem:[%s2 + $0xa8] sm:$0xff]
  %v68 = vld [vmem:[%s2 + $0xb0] sm:$0xff]
  %v69 = vld [vmem:[%s2 + $0xb8] sm:$0xff]
  %v70 = vld [vmem:[%s2 + $0xc0] sm:$0xff]
  %v71 = vld [vmem:[%s2 + $0xc8] sm:$0xff]
  %v72 = vld [vmem:[%s2 + $0xd0] sm:$0xff]
  %v73 = vld [vmem:[%s2 + $0xd8] sm:$0xff]
  %v74 = vld [vmem:[%s2 + $0xe0] sm:$0xff]
  %v75 = vld [vmem:[%s2 + $0xe8] sm:$0xff]
  %v76 = vld [vmem:[%s2 + $0xf0] sm:$0xff]
  %v77 = vld [vmem:[%s2 + $0xf8] sm:$0xff]
  %v78 = vld [vmem:[%s2 + $0x100] sm:$0xff]
  %v79 = vld [vmem:[%s2 + $0x108] sm:$0xff]
  %v80 = vld [vmem:[%s2 + $0x110] sm:$0xff]
  %v81 = vld [vmem:[%s2 + $0x118] sm:$0xff]
  %v82 = vld [vmem:[%s2 + $0x120] sm:$0xff]
  %v83 = vld [vmem:[%s2 + $0x128] sm:$0xff]
  %v84 = vld [vmem:[%s2 + $0x130] sm:$0xff]
  %v85 = vld [vmem:[%s2 + $0x138] sm:$0xff]
  %v86 = vld [vmem:[%s2 + $0x140] sm:$0xff]
  %v87 = vld [vmem:[%s2 + $0x148] sm:$0xff]
  %v88 = vld [vmem:[%s2 + $0x150] sm:$0xff]
  %v89 = vld [vmem:[%s2 + $0x158] sm:$0xff]
  %v90 = vld [vmem:[%s2 + $0x160] sm:$0xff]
  %v91 = vld [vmem:[%s2 + $0x168] sm:$0xff]
  %v92 = vld [vmem:[%s2 + $0x170] sm:$0xff]
  %v93 = vld [vmem:[%s2 + $0x178] sm:$0xff]
  %v94 = vld [vmem:[%s2 + $0x180] sm:$0xff]
  %v95 = vld [vmem:[%s2 + $0x188] sm:$0xff]
  %v96 = vld [vmem:[%s2 + $0x190] sm:$0xff]
  %v97 = vld [vmem:[%s2 + $0x198] sm:$0xff]
  %v98 = vld [vmem:[%s2 + $0x1a0] sm:$0xff]
  %v99 = vld [vmem:[%s2 + $0x1a8] sm:$0xff]
  %v100 = vld [vmem:[%s2 + $0x1b0] sm:$0xff]
  %v101 = vld [vmem:[%s2 + $0x1b8] sm:$0xff]
  %v102 = vld [vmem:[%s2 + $0x1c0] sm:$0xff]
  %v103 = vld [vmem:[%s2 + $0x1c8] sm:$0xff]
  %v104 = vld [vmem:[%s2 + $0x1d0] sm:$0xff]
  %v105 = vld [vmem:[%s2 + $0x1d8] sm:$0xff]
  %v106 = vld [vmem:[%s2 + $0x1e0] sm:$0xff]
  %v107 = vld [vmem:[%s2 + $0x1e8] sm:$0xff]
  %v108 = vld [vmem:[%s2 + $0x1f0] sm:$0xff]
  %v109 = vld [vmem:[%s2 + $0x1f8] sm:$0xff]
  %v110 = vld [vmem:[%s2 + $0x200] sm:$0xff]
  %v111 = vld [vmem:[%s2 + $0x208] sm:$0xff]
  %v112 = vld [vmem:[%s2 + $0x210] sm:$0xff]
  %v113 = vld [vmem:[%s2 + $0x218] sm:$0xff]
  %v114 = vld [vmem:[%s2 + $0x220] sm:$0xff]
  %v115 = vld [vmem:[%s2 + $0x228] sm:$0xff]
  %v116 = vld [vmem:[%s2 + $0x230] sm:$0xff]
  %v117 = vld [vmem:[%s2 + $0x238] sm:$0xff]
  %v118 = vld [vmem:[%s2 + $0x240] sm:$0xff]
  %v119 = vld [vmem:[%s2 + $0x248] sm:$0xff]
  %v120 = vld [vmem:[%s2 + $0x250] sm:$0xff]
  %v121 = vld [vmem:[%s2 + $0x258] sm:$0xff]
  %v122 = vld [vmem:[%s2 + $0x260] sm:$0xff]
  %v123 = vld [vmem:[%s2 + $0x268] sm:$0xff]
  %v124 = vld [vmem:[%s2 + $0x270] sm:$0xff]
  %v125 = vld [vmem:[%s2 + $0x278] sm:$0xff]
  %v126 = vld [vmem:[%s2 + $0x280] sm:$0xff]
  %v127 = vld [vmem:[%s2 + $0x288] sm:$0xff]
  %v128 = vld [vmem:[%s2 + $0x290] sm:$0xff]
  %v129 = vld [vmem:[%s2 + $0x298] sm:$0xff]
  %v130 = vld [vmem:[%s2 + $0x2a0] sm:$0xff]
  %v131 = vld [vmem:[%s2 + $0x2a8] sm:$0xff]
  %v132 = vld [vmem:[%s2 + $0x2b0] sm:$0xff]
  %v133 = vld [vmem:[%s2 + $0x2b8] sm:$0xff]
  %v134 = vld [vmem:[%s2 + $0x2c0] sm:$0xff]
  %v135 = vld [vmem:[%s2 + $0x2c8] sm:$0xff]
  %v136 = vld [vmem:[%s2 + $0x2d0] sm:$0xff]
  %v137 = vld [vmem:[%s2 + $0x2d8] sm:$0xff]
  %v138 = vld [vmem:[%s2 + $0x2e0] sm:$0xff]
  %v139 = vld [vmem:[%s2 + $0x2e8] sm:$0xff]
  %v140 = vld [vmem:[%s2 + $0x2f0] sm:$0xff]
  %v141 = vld [vmem:[%s2 + $0x2f8] sm:$0xff]
  %v142 = vld [vmem:[%s2 + $0x300] sm:$0xff]
  %v143 = vld [vmem:[%s2 + $0x308] sm:$0xff]
  %v144 = vld [vmem:[%s2 + $0x310] sm:$0xff]
  %v145 = vld [vmem:[%s2 + $0x318] sm:$0xff]
  %v146 = vld [vmem:[%s2 + $0x320] sm:$0xff]
  %v147 = vld [vmem:[%s2 + $0x328] sm:$0xff]
  %v148 = vld [vmem:[%s2 + $0x330] sm:$0xff]
  %v149 = vld [vmem:[%s2 + $0x338] sm:$0xff]
  %v150 = vld [vmem:[%s2 + $0x340] sm:$0xff]
  %v151 = vld [vmem:[%s2 + $0x348] sm:$0xff]
  %v152 = vld [vmem:[%s2 + $0x350] sm:$0xff]
  %v153 = vld [vmem:[%s2 + $0x358] sm:$0xff]
  %v154 = vld [vmem:[%s2 + $0x360] sm:$0xff]
  %v155 = vld [vmem:[%s2 + $0x368] sm:$0xff]
  %v156 = vld [vmem:[%s2 + $0x370] sm:$0xff]
  %v157 = vld [vmem:[%s2 + $0x378] sm:$0xff]
  %v158 = vld [vmem:[%s2 + $0x380] sm:$0xff]
  %v159 = vld [vmem:[%s2 + $0x388] sm:$0xff]
  %v160 = vld [vmem:[%s2 + $0x390] sm:$0xff]
  %v161 = vld [vmem:[%s2 + $0x398] sm:$0xff]
  %v162 = vld [vmem:[%s2 + $0x3a0] sm:$0xff]
  %v163 = vld [vmem:[%s2 + $0x3a8] sm:$0xff]
  %v164 = vld [vmem:[%s2 + $0x3b0] sm:$0xff]
  %v165 = vld [vmem:[%s2 + $0x3b8] sm:$0xff]
  %v166 = vld [vmem:[%s2 + $0x3c0] sm:$0xff]
  %v167 = vld [vmem:[%s2 + $0x3c8] sm:$0xff]
  %v168 = vld [vmem:[%s2 + $0x3d0] sm:$0xff]
  %v169 = vld [vmem:[%s2 + $0x3d8] sm:$0xff]
  %v170 = vld [vmem:[%s2 + $0x3e0] sm:$0xff]
  %v171 = vld [vmem:[%s2 + $0x3e8] sm:$0xff]
  %v172 = vld [vmem:[%s2 + $0x3f0] sm:$0xff]
  %v173 = vld [vmem:[%s2 + $0x3f8] sm:$0xff]
  %v174 = vld [vmem:[%s2 + $0x400] sm:$0xff]
  %v175 = vld [vmem:[%s2 + $0x408] sm:$0xff]
  %v176 = vld [vmem:[%s2 + $0x410] sm:$0xff]
  %v177 = vld [vmem:[%s2 + $0x418] sm:$0xff]
  %v178 = vld [vmem:[%s2 + $0x420] sm:$0xff]
  %v179 = vld [vmem:[%s2 + $0x428] sm:$0xff]
  %v180 = vld [vmem:[%s2 + $0x430] sm:$0xff]
  %v181 = vld [vmem:[%s2 + $0x438] sm:$0xff]
  %v182 = vld [vmem:[%s2 + $0x440] sm:$0xff]
  %v183 = vld [vmem:[%s2 + $0x448] sm:$0xff]
  %v184 = vld [vmem:[%s2 + $0x450] sm:$0xff]
  %v185 = vld [vmem:[%s2 + $0x458] sm:$0xff]
  %v186 = vld [vmem:[%s2 + $0x460] sm:$0xff]
  %v187 = vld [vmem:[%s2 + $0x468] sm:$0xff]
  %v188 = vld [vmem:[%s2 + $0x470] sm:$0xff]
  %v189 = vld [vmem:[%s2 + $0x478] sm:$0xff]
  %v190 = vld [vmem:[%s2 + $0x480] sm:$0xff]
  %v191 = vld [vmem:[%s2 + $0x488] sm:$0xff]
  %v192 = vld [vmem:[%s2 + $0x490] sm:$0xff]
  %v193 = vld [vmem:[%s2 + $0x498] sm:$0xff]
  %v194 = vld [vmem:[%s2 + $0x4a0] sm:$0xff]
  %v195 = vld [vmem:[%s2 + $0x4a8] sm:$0xff]
  %v196 = vld [vmem:[%s2 + $0x4b0] sm:$0xff]
  %v197 = vld [vmem:[%s2 + $0x4b8] sm:$0xff]
  %v198 = vld [vmem:[%s2 + $0x4c0] sm:$0xff]
  %v199 = vld [vmem:[%s2 + $0x4c8] sm:$0xff]
  %v200 = vld [vmem:[%s2 + $0x4d0] sm:$0xff]
  %v201 = vld [vmem:[%s2 + $0x4d8] sm:$0xff]
  %v202 = vld [vmem:[%s2 + $0x4e0] sm:$0xff]
  %v203 = vld [vmem:[%s2 + $0x4e8] sm:$0xff]
  %v204 = vld [vmem:[%s2 + $0x4f0] sm:$0xff]
  %v205 = vld [vmem:[%s2 + $0x4f8] sm:$0xff]
  %v206 = vld [vmem:[%s2 + $0x500] sm:$0xff]
  %v207 = vld [vmem:[%s2 + $0x508] sm:$0xff]
  %v208 = vld [vmem:[%s2 + $0x510] sm:$0xff]
  %v209 = vld [vmem:[%s2 + $0x518] sm:$0xff]
  %v210 = vld [vmem:[%s2 + $0x520] sm:$0xff]
  %v211 = vld [vmem:[%s2 + $0x528] sm:$0xff]
  %v212 = vld [vmem:[%s2 + $0x530] sm:$0xff]
  %v213 = vld [vmem:[%s2 + $0x538] sm:$0xff]
  %v214 = vld [vmem:[%s2 + $0x540] sm:$0xff]
  %v215 = vld [vmem:[%s2 + $0x548] sm:$0xff]
  %v216 = vld [vmem:[%s2 + $0x550] sm:$0xff]
  %v217 = vld [vmem:[%s2 + $0x558] sm:$0xff]
  %v218 = vld [vmem:[%s2 + $0x560] sm:$0xff]
  %v219 = vld [vmem:[%s2 + $0x568] sm:$0xff]
  %v220 = vld [vmem:[%s2 + $0x570] sm:$0xff]
  %v221 = vld [vmem:[%s2 + $0x578] sm:$0xff]
  %v222 = vld [vmem:[%s2 + $0x580] sm:$0xff]
  %v223 = vld [vmem:[%s2 + $0x588] sm:$0xff]
  %v224 = vld [vmem:[%s2 + $0x590] sm:$0xff]
  %v225 = vld [vmem:[%s2 + $0x598] sm:$0xff]
  %v226 = vld [vmem:[%s2 + $0x5a0] sm:$0xff]
  %v227 = vld [vmem:[%s2 + $0x5a8] sm:$0xff]
  %v228 = vld [vmem:[%s2 + $0x5b0] sm:$0xff]
  %v229 = vld [vmem:[%s2 + $0x5b8] sm:$0xff]
  %v230 = vld [vmem:[%s2 + $0x5c0] sm:$0xff]
  %v231 = vld [vmem:[%s2 + $0x5c8] sm:$0xff]
  %v232 = vld [vmem:[%s2 + $0x5d0] sm:$0xff]
  %v233 = vld [vmem:[%s2 + $0x5d8] sm:$0xff]
  %v234 = vld [vmem:[%s2 + $0x5e0] sm:$0xff]
  %v235 = vld [vmem:[%s2 + $0x5e8] sm:$0xff]
  %v236 = vld [vmem:[%s2 + $0x5f0] sm:$0xff]
  %v237 = vld [vmem:[%s2 + $0x5f8] sm:$0xff]
  %v238 = vld [vmem:[%s2 + $0x600] sm:$0xff]
  %v239 = vld [vmem:[%s2 + $0x608] sm:$0xff]
  %v240 = vld [vmem:[%s2 + $0x610] sm:$0xff]
  %v241 = vld [vmem:[%s2 + $0x618] sm:$0xff]
  %v242 = vld [vmem:[%s3] sm:$0xf]
  %v244 = vlaneseq
  %v245 = vshrl.u32 %v244, 7
  %v246 = vsub.s32 0, %v245
  %v247 = vrot.slane %v242, %v246
  %v248 = vlaneseq
  %v249 = vshrl.u32 %v248, 7
  %v250 = vsub.s32 1, %v249
  %v251 = vrot.slane %v242, %v250
  %v252 = vlaneseq
  %v253 = vshrl.u32 %v252, 7
  %v254 = vsub.s32 2, %v253
  %v255 = vrot.slane %v242, %v254
  %v256 = vlaneseq
  %v257 = vshrl.u32 %v256, 7
  %v258 = vsub.s32 3, %v257
  %v259 = vrot.slane %v242, %v258
  %v272 = vunpack.c.l.b16 %v38
  %v273 = vunpack.c.h.b16 %v38
  %v274 = vunpack.c.l.b16 %v39
  %v275 = vunpack.c.h.b16 %v39
  %v276 = vunpack.c.l.b16 %v40
  %v277 = vunpack.c.h.b16 %v40
  %v278 = vunpack.c.l.b16 %v41
  %v279 = vunpack.c.l.b16 %v42
  %v280 = vunpack.c.h.b16 %v42
  %v281 = vunpack.c.l.b16 %v43
  %v282 = vunpack.c.h.b16 %v43
  %v283 = vunpack.c.l.b16 %v44
  %v284 = vunpack.c.h.b16 %v44
  %v285 = vunpack.c.l.b16 %v45
  %v286 = vpack.c.b16 %v279, %v272
  %v287 = vpack.c.b16 %v280, %v273
  %v288 = vpack.c.b16 %v281, %v274
  %v289 = vpack.c.b16 %v282, %v275
  %v290 = vpack.c.b16 %v283, %v276
  %v291 = vpack.c.b16 %v284, %v277
  %v292 = vpack.c.b16 %v285, %v278
  %v495 = vunpack.c.l.b16 %v46
  %v496 = vunpack.c.h.b16 %v46
  %v497 = vunpack.c.l.b16 %v47
  %v498 = vunpack.c.h.b16 %v47
  %v499 = vunpack.c.l.b16 %v48
  %v500 = vunpack.c.h.b16 %v48
  %v501 = vunpack.c.l.b16 %v49
  %v502 = vunpack.c.h.b16 %v49
  %v503 = vunpack.c.l.b16 %v50
  %v504 = vunpack.c.h.b16 %v50
  %v505 = vunpack.c.l.b16 %v51
  %v506 = vunpack.c.h.b16 %v51
  %v507 = vunpack.c.l.b16 %v52
  %v508 = vunpack.c.h.b16 %v52
  %v509 = vunpack.c.l.b16 %v53
  %v510 = vunpack.c.h.b16 %v53
  %v511 = vunpack.c.l.b16 %v54
  %v512 = vunpack.c.h.b16 %v54
  %v513 = vunpack.c.l.b16 %v55
  %v514 = vunpack.c.h.b16 %v55
  %v515 = vunpack.c.l.b16 %v56
  %v516 = vunpack.c.h.b16 %v56
  %v517 = vunpack.c.l.b16 %v57
  %v518 = vunpack.c.h.b16 %v57
  %v519 = vunpack.c.l.b16 %v58
  %v520 = vunpack.c.h.b16 %v58
  %v521 = vunpack.c.l.b16 %v59
  %v522 = vunpack.c.h.b16 %v59
  %v523 = vunpack.c.l.b16 %v60
  %v524 = vunpack.c.h.b16 %v60
  %v525 = vunpack.c.l.b16 %v61
  %v526 = vunpack.c.h.b16 %v61
  %v527 = vunpack.c.l.b16 %v62
  %v528 = vunpack.c.h.b16 %v62
  %v529 = vunpack.c.l.b16 %v63
  %v530 = vunpack.c.h.b16 %v63
  %v531 = vunpack.c.l.b16 %v64
  %v532 = vunpack.c.h.b16 %v64
  %v533 = vunpack.c.l.b16 %v65
  %v534 = vunpack.c.h.b16 %v65
  %v535 = vunpack.c.l.b16 %v66
  %v536 = vunpack.c.h.b16 %v66
  %v537 = vunpack.c.l.b16 %v67
  %v538 = vunpack.c.h.b16 %v67
  %v539 = vunpack.c.l.b16 %v68
  %v540 = vunpack.c.h.b16 %v68
  %v541 = vunpack.c.l.b16 %v69
  %v542 = vunpack.c.h.b16 %v69
  %v543 = vunpack.c.l.b16 %v70
  %v544 = vunpack.c.h.b16 %v70
  %v545 = vunpack.c.l.b16 %v71
  %v546 = vunpack.c.h.b16 %v71
  %v547 = vunpack.c.l.b16 %v72
  %v548 = vunpack.c.h.b16 %v72
  %v549 = vunpack.c.l.b16 %v73
  %v550 = vunpack.c.h.b16 %v73
  %v551 = vunpack.c.l.b16 %v74
  %v552 = vunpack.c.h.b16 %v74
  %v553 = vunpack.c.l.b16 %v75
  %v554 = vunpack.c.h.b16 %v75
  %v555 = vunpack.c.l.b16 %v76
  %v556 = vunpack.c.h.b16 %v76
  %v557 = vunpack.c.l.b16 %v77
  %v558 = vunpack.c.h.b16 %v77
  %v559 = vunpack.c.l.b16 %v78
  %v560 = vunpack.c.h.b16 %v78
  %v561 = vunpack.c.l.b16 %v79
  %v562 = vunpack.c.h.b16 %v79
  %v563 = vunpack.c.l.b16 %v80
  %v564 = vunpack.c.h.b16 %v80
  %v565 = vunpack.c.l.b16 %v81
  %v566 = vunpack.c.h.b16 %v81
  %v567 = vunpack.c.l.b16 %v82
  %v568 = vunpack.c.h.b16 %v82
  %v569 = vunpack.c.l.b16 %v83
  %v570 = vunpack.c.h.b16 %v83
  %v571 = vunpack.c.l.b16 %v84
  %v572 = vunpack.c.h.b16 %v84
  %v573 = vunpack.c.l.b16 %v85
  %v574 = vunpack.c.h.b16 %v85
  %v575 = vunpack.c.l.b16 %v86
  %v576 = vunpack.c.h.b16 %v86
  %v577 = vunpack.c.l.b16 %v87
  %v578 = vunpack.c.h.b16 %v87
  %v579 = vunpack.c.l.b16 %v88
  %v580 = vunpack.c.h.b16 %v88
  %v581 = vunpack.c.l.b16 %v89
  %v582 = vunpack.c.h.b16 %v89
  %v583 = vunpack.c.l.b16 %v90
  %v584 = vunpack.c.h.b16 %v90
  %v585 = vunpack.c.l.b16 %v91
  %v586 = vunpack.c.h.b16 %v91
  %v587 = vunpack.c.l.b16 %v92
  %v588 = vunpack.c.h.b16 %v92
  %v589 = vunpack.c.l.b16 %v93
  %v590 = vunpack.c.h.b16 %v93
  %v591 = vunpack.c.l.b16 %v94
  %v592 = vunpack.c.h.b16 %v94
  %v593 = vunpack.c.l.b16 %v95
  %v594 = vunpack.c.h.b16 %v95
  %v595 = vunpack.c.l.b16 %v96
  %v596 = vunpack.c.h.b16 %v96
  %v597 = vunpack.c.l.b16 %v97
  %v598 = vunpack.c.h.b16 %v97
  %v599 = vunpack.c.l.b16 %v98
  %v600 = vunpack.c.h.b16 %v98
  %v601 = vunpack.c.l.b16 %v99
  %v602 = vunpack.c.h.b16 %v99
  %v603 = vunpack.c.l.b16 %v100
  %v604 = vunpack.c.h.b16 %v100
  %v605 = vunpack.c.l.b16 %v101
  %v606 = vunpack.c.h.b16 %v101
  %v607 = vunpack.c.l.b16 %v102
  %v608 = vunpack.c.h.b16 %v102
  %v609 = vunpack.c.l.b16 %v103
  %v610 = vunpack.c.h.b16 %v103
  %v611 = vunpack.c.l.b16 %v104
  %v612 = vunpack.c.h.b16 %v104
  %v613 = vunpack.c.l.b16 %v105
  %v614 = vunpack.c.h.b16 %v105
  %v615 = vunpack.c.l.b16 %v106
  %v616 = vunpack.c.h.b16 %v106
  %v617 = vunpack.c.l.b16 %v107
  %v618 = vunpack.c.h.b16 %v107
  %v619 = vunpack.c.l.b16 %v108
  %v620 = vunpack.c.h.b16 %v108
  %v621 = vunpack.c.l.b16 %v109
  %v622 = vunpack.c.h.b16 %v109
  %v623 = vunpack.c.l.b16 %v110
  %v624 = vunpack.c.h.b16 %v110
  %v625 = vunpack.c.l.b16 %v111
  %v626 = vunpack.c.h.b16 %v111
  %v627 = vunpack.c.l.b16 %v112
  %v628 = vunpack.c.h.b16 %v112
  %v629 = vunpack.c.l.b16 %v113
  %v630 = vunpack.c.h.b16 %v113
  %v631 = vunpack.c.l.b16 %v114
  %v632 = vunpack.c.h.b16 %v114
  %v633 = vunpack.c.l.b16 %v115
  %v634 = vunpack.c.h.b16 %v115
  %v635 = vunpack.c.l.b16 %v116
  %v636 = vunpack.c.h.b16 %v116
  %v637 = vunpack.c.l.b16 %v117
  %v638 = vunpack.c.h.b16 %v117
  %v639 = vunpack.c.l.b16 %v118
  %v640 = vunpack.c.h.b16 %v118
  %v641 = vunpack.c.l.b16 %v119
  %v642 = vunpack.c.h.b16 %v119
  %v643 = vunpack.c.l.b16 %v120
  %v644 = vunpack.c.h.b16 %v120
  %v645 = vunpack.c.l.b16 %v121
  %v646 = vunpack.c.h.b16 %v121
  %v647 = vunpack.c.l.b16 %v122
  %v648 = vunpack.c.h.b16 %v122
  %v649 = vunpack.c.l.b16 %v123
  %v650 = vunpack.c.h.b16 %v123
  %v651 = vunpack.c.l.b16 %v124
  %v652 = vunpack.c.h.b16 %v124
  %v653 = vunpack.c.l.b16 %v125
  %v654 = vunpack.c.h.b16 %v125
  %v655 = vunpack.c.l.b16 %v126
  %v656 = vunpack.c.h.b16 %v126
  %v657 = vunpack.c.l.b16 %v127
  %v658 = vunpack.c.h.b16 %v127
  %v659 = vunpack.c.l.b16 %v128
  %v660 = vunpack.c.h.b16 %v128
  %v661 = vunpack.c.l.b16 %v129
  %v662 = vunpack.c.h.b16 %v129
  %v663 = vunpack.c.l.b16 %v130
  %v664 = vunpack.c.h.b16 %v130
  %v665 = vunpack.c.l.b16 %v131
  %v666 = vunpack.c.h.b16 %v131
  %v667 = vunpack.c.l.b16 %v132
  %v668 = vunpack.c.h.b16 %v132
  %v669 = vunpack.c.l.b16 %v133
  %v670 = vunpack.c.h.b16 %v133
  %v671 = vunpack.c.l.b16 %v134
  %v672 = vunpack.c.h.b16 %v134
  %v673 = vunpack.c.l.b16 %v135
  %v674 = vunpack.c.h.b16 %v135
  %v675 = vunpack.c.l.b16 %v136
  %v676 = vunpack.c.h.b16 %v136
  %v677 = vunpack.c.l.b16 %v137
  %v678 = vunpack.c.h.b16 %v137
  %v679 = vunpack.c.l.b16 %v138
  %v680 = vunpack.c.h.b16 %v138
  %v681 = vunpack.c.l.b16 %v139
  %v682 = vunpack.c.h.b16 %v139
  %v683 = vunpack.c.l.b16 %v140
  %v684 = vunpack.c.h.b16 %v140
  %v685 = vunpack.c.l.b16 %v141
  %v686 = vunpack.c.h.b16 %v141
  %v687 = vunpack.c.l.b16 %v142
  %v688 = vunpack.c.h.b16 %v142
  %v689 = vunpack.c.l.b16 %v143
  %v690 = vunpack.c.h.b16 %v143
  %v691 = vunpack.c.l.b16 %v144
  %v692 = vunpack.c.h.b16 %v144
  %v693 = vunpack.c.l.b16 %v145
  %v694 = vunpack.c.h.b16 %v145
  %v695 = vunpack.c.l.b16 %v146
  %v696 = vunpack.c.h.b16 %v146
  %v697 = vunpack.c.l.b16 %v147
  %v698 = vunpack.c.h.b16 %v147
  %v699 = vunpack.c.l.b16 %v148
  %v700 = vunpack.c.h.b16 %v148
  %v701 = vunpack.c.l.b16 %v149
  %v702 = vunpack.c.h.b16 %v149
  %v703 = vunpack.c.l.b16 %v150
  %v704 = vunpack.c.h.b16 %v150
  %v705 = vunpack.c.l.b16 %v151
  %v706 = vunpack.c.h.b16 %v151
  %v707 = vunpack.c.l.b16 %v152
  %v708 = vunpack.c.h.b16 %v152
  %v709 = vunpack.c.l.b16 %v153
  %v710 = vunpack.c.h.b16 %v153
  %v711 = vunpack.c.l.b16 %v154
  %v712 = vunpack.c.h.b16 %v154
  %v713 = vunpack.c.l.b16 %v155
  %v714 = vunpack.c.h.b16 %v155
  %v715 = vunpack.c.l.b16 %v156
  %v716 = vunpack.c.h.b16 %v156
  %v717 = vunpack.c.l.b16 %v157
  %v718 = vunpack.c.h.b16 %v157
  %v719 = vunpack.c.l.b16 %v158
  %v720 = vunpack.c.h.b16 %v158
  %v721 = vunpack.c.l.b16 %v159
  %v722 = vunpack.c.h.b16 %v159
  %v723 = vunpack.c.l.b16 %v160
  %v724 = vunpack.c.h.b16 %v160
  %v725 = vunpack.c.l.b16 %v161
  %v726 = vunpack.c.h.b16 %v161
  %v727 = vunpack.c.l.b16 %v162
  %v728 = vunpack.c.h.b16 %v162
  %v729 = vunpack.c.l.b16 %v163
  %v730 = vunpack.c.h.b16 %v163
  %v731 = vunpack.c.l.b16 %v164
  %v732 = vunpack.c.h.b16 %v164
  %v733 = vunpack.c.l.b16 %v165
  %v734 = vunpack.c.h.b16 %v165
  %v735 = vunpack.c.l.b16 %v166
  %v736 = vunpack.c.h.b16 %v166
  %v737 = vunpack.c.l.b16 %v167
  %v738 = vunpack.c.h.b16 %v167
  %v739 = vunpack.c.l.b16 %v168
  %v740 = vunpack.c.h.b16 %v168
  %v741 = vunpack.c.l.b16 %v169
  %v742 = vunpack.c.h.b16 %v169
  %v743 = vunpack.c.l.b16 %v170
  %v744 = vunpack.c.h.b16 %v170
  %v745 = vunpack.c.l.b16 %v171
  %v746 = vunpack.c.h.b16 %v171
  %v747 = vunpack.c.l.b16 %v172
  %v748 = vunpack.c.h.b16 %v172
  %v749 = vunpack.c.l.b16 %v173
  %v750 = vunpack.c.h.b16 %v173
  %v751 = vunpack.c.l.b16 %v174
  %v752 = vunpack.c.h.b16 %v174
  %v753 = vunpack.c.l.b16 %v175
  %v754 = vunpack.c.h.b16 %v175
  %v755 = vunpack.c.l.b16 %v176
  %v756 = vunpack.c.h.b16 %v176
  %v757 = vunpack.c.l.b16 %v177
  %v758 = vunpack.c.h.b16 %v177
  %v759 = vunpack.c.l.b16 %v178
  %v760 = vunpack.c.h.b16 %v178
  %v761 = vunpack.c.l.b16 %v179
  %v762 = vunpack.c.h.b16 %v179
  %v763 = vunpack.c.l.b16 %v180
  %v764 = vunpack.c.h.b16 %v180
  %v765 = vunpack.c.l.b16 %v181
  %v766 = vunpack.c.h.b16 %v181
  %v767 = vunpack.c.l.b16 %v182
  %v768 = vunpack.c.h.b16 %v182
  %v769 = vunpack.c.l.b16 %v183
  %v770 = vunpack.c.h.b16 %v183
  %v771 = vunpack.c.l.b16 %v184
  %v772 = vunpack.c.h.b16 %v184
  %v773 = vunpack.c.l.b16 %v185
  %v774 = vunpack.c.h.b16 %v185
  %v775 = vunpack.c.l.b16 %v186
  %v776 = vunpack.c.h.b16 %v186
  %v777 = vunpack.c.l.b16 %v187
  %v778 = vunpack.c.h.b16 %v187
  %v779 = vunpack.c.l.b16 %v188
  %v780 = vunpack.c.h.b16 %v188
  %v781 = vunpack.c.l.b16 %v189
  %v782 = vunpack.c.h.b16 %v189
  %v783 = vunpack.c.l.b16 %v190
  %v784 = vunpack.c.h.b16 %v190
  %v785 = vunpack.c.l.b16 %v191
  %v786 = vunpack.c.h.b16 %v191
  %v787 = vunpack.c.l.b16 %v192
  %v788 = vunpack.c.h.b16 %v192
  %v789 = vunpack.c.l.b16 %v193
  %v790 = vunpack.c.h.b16 %v193
  %v791 = vunpack.c.l.b16 %v194
  %v792 = vunpack.c.h.b16 %v194
  %v793 = vunpack.c.l.b16 %v195
  %v794 = vunpack.c.h.b16 %v195
  %v795 = vunpack.c.l.b16 %v196
  %v796 = vunpack.c.h.b16 %v196
  %v797 = vunpack.c.l.b16 %v197
  %v798 = vunpack.c.h.b16 %v197
  %v799 = vunpack.c.l.b16 %v198
  %v800 = vunpack.c.h.b16 %v198
  %v801 = vunpack.c.l.b16 %v199
  %v802 = vunpack.c.h.b16 %v199
  %v803 = vunpack.c.l.b16 %v200
  %v804 = vunpack.c.h.b16 %v200
  %v805 = vunpack.c.l.b16 %v201
  %v806 = vunpack.c.h.b16 %v201
  %v807 = vunpack.c.l.b16 %v202
  %v808 = vunpack.c.h.b16 %v202
  %v809 = vunpack.c.l.b16 %v203
  %v810 = vunpack.c.h.b16 %v203
  %v811 = vunpack.c.l.b16 %v204
  %v812 = vunpack.c.h.b16 %v204
  %v813 = vunpack.c.l.b16 %v205
  %v814 = vunpack.c.h.b16 %v205
  %v815 = vunpack.c.l.b16 %v206
  %v816 = vunpack.c.h.b16 %v206
  %v817 = vunpack.c.l.b16 %v207
  %v818 = vunpack.c.h.b16 %v207
  %v819 = vunpack.c.l.b16 %v208
  %v820 = vunpack.c.h.b16 %v208
  %v821 = vunpack.c.l.b16 %v209
  %v822 = vunpack.c.h.b16 %v209
  %v823 = vunpack.c.l.b16 %v210
  %v824 = vunpack.c.h.b16 %v210
  %v825 = vunpack.c.l.b16 %v211
  %v826 = vunpack.c.h.b16 %v211
  %v827 = vunpack.c.l.b16 %v212
  %v828 = vunpack.c.h.b16 %v212
  %v829 = vunpack.c.l.b16 %v213
  %v830 = vunpack.c.h.b16 %v213
  %v831 = vunpack.c.l.b16 %v214
  %v832 = vunpack.c.h.b16 %v214
  %v833 = vunpack.c.l.b16 %v215
  %v834 = vunpack.c.h.b16 %v215
  %v835 = vunpack.c.l.b16 %v216
  %v836 = vunpack.c.h.b16 %v216
  %v837 = vunpack.c.l.b16 %v217
  %v838 = vunpack.c.h.b16 %v217
  %v839 = vunpack.c.l.b16 %v218
  %v840 = vunpack.c.h.b16 %v218
  %v841 = vunpack.c.l.b16 %v219
  %v842 = vunpack.c.h.b16 %v219
  %v843 = vunpack.c.l.b16 %v220
  %v844 = vunpack.c.h.b16 %v220
  %v845 = vunpack.c.l.b16 %v221
  %v846 = vunpack.c.h.b16 %v221
  %v847 = vunpack.c.l.b16 %v222
  %v848 = vunpack.c.h.b16 %v222
  %v849 = vunpack.c.l.b16 %v223
  %v850 = vunpack.c.h.b16 %v223
  %v851 = vunpack.c.l.b16 %v224
  %v852 = vunpack.c.h.b16 %v224
  %v853 = vunpack.c.l.b16 %v225
  %v854 = vunpack.c.h.b16 %v225
  %v855 = vunpack.c.l.b16 %v226
  %v856 = vunpack.c.h.b16 %v226
  %v857 = vunpack.c.l.b16 %v227
  %v858 = vunpack.c.h.b16 %v227
  %v859 = vunpack.c.l.b16 %v228
  %v860 = vunpack.c.h.b16 %v228
  %v861 = vunpack.c.l.b16 %v229
  %v862 = vunpack.c.h.b16 %v229
  %v863 = vunpack.c.l.b16 %v230
  %v864 = vunpack.c.h.b16 %v230
  %v865 = vunpack.c.l.b16 %v231
  %v866 = vunpack.c.h.b16 %v231
  %v867 = vunpack.c.l.b16 %v232
  %v868 = vunpack.c.h.b16 %v232
  %v869 = vunpack.c.l.b16 %v233
  %v870 = vunpack.c.h.b16 %v233
  %v871 = vunpack.c.l.b16 %v234
  %v872 = vunpack.c.h.b16 %v234
  %v873 = vunpack.c.l.b16 %v235
  %v874 = vunpack.c.h.b16 %v235
  %v875 = vunpack.c.l.b16 %v236
  %v876 = vunpack.c.h.b16 %v236
  %v877 = vunpack.c.l.b16 %v237
  %v878 = vunpack.c.h.b16 %v237
  %v879 = vunpack.c.l.b16 %v238
  %v880 = vunpack.c.h.b16 %v238
  %v881 = vunpack.c.l.b16 %v239
  %v882 = vunpack.c.h.b16 %v239
  %v883 = vunpack.c.l.b16 %v240
  %v884 = vunpack.c.h.b16 %v240
  %v885 = vunpack.c.l.b16 %v241
  %v886 = vunpack.c.h.b16 %v241
  %v887 = vpack.c.b16 %v499, %v495
  %v888 = vpack.c.b16 %v500, %v496
  %v889 = vpack.c.b16 %v501, %v497
  %v890 = vpack.c.b16 %v502, %v498
  %v891 = vpack.c.b16 %v507, %v503
  %v892 = vpack.c.b16 %v508, %v504
  %v893 = vpack.c.b16 %v509, %v505
  %v894 = vpack.c.b16 %v510, %v506
  %v895 = vpack.c.b16 %v515, %v511
  %v896 = vpack.c.b16 %v516, %v512
  %v897 = vpack.c.b16 %v517, %v513
  %v898 = vpack.c.b16 %v518, %v514
  %v899 = vpack.c.b16 %v523, %v519
  %v900 = vpack.c.b16 %v524, %v520
  %v901 = vpack.c.b16 %v525, %v521
  %v902 = vpack.c.b16 %v526, %v522
  %v903 = vpack.c.b16 %v531, %v527
  %v904 = vpack.c.b16 %v532, %v528
  %v905 = vpack.c.b16 %v533, %v529
  %v906 = vpack.c.b16 %v534, %v530
  %v907 = vpack.c.b16 %v539, %v535
  %v908 = vpack.c.b16 %v540, %v536
  %v909 = vpack.c.b16 %v541, %v537
  %v910 = vpack.c.b16 %v542, %v538
  %v911 = vpack.c.b16 %v547, %v543
  %v912 = vpack.c.b16 %v548, %v544
  %v913 = vpack.c.b16 %v549, %v545
  %v914 = vpack.c.b16 %v550, %v546
  %v915 = vpack.c.b16 %v555, %v551
  %v916 = vpack.c.b16 %v556, %v552
  %v917 = vpack.c.b16 %v557, %v553
  %v918 = vpack.c.b16 %v558, %v554
  %v919 = vpack.c.b16 %v563, %v559
  %v920 = vpack.c.b16 %v564, %v560
  %v921 = vpack.c.b16 %v565, %v561
  %v922 = vpack.c.b16 %v566, %v562
  %v923 = vpack.c.b16 %v571, %v567
  %v924 = vpack.c.b16 %v572, %v568
  %v925 = vpack.c.b16 %v573, %v569
  %v926 = vpack.c.b16 %v574, %v570
  %v927 = vpack.c.b16 %v579, %v575
  %v928 = vpack.c.b16 %v580, %v576
  %v929 = vpack.c.b16 %v581, %v577
  %v930 = vpack.c.b16 %v582, %v578
  %v931 = vpack.c.b16 %v587, %v583
  %v932 = vpack.c.b16 %v588, %v584
  %v933 = vpack.c.b16 %v589, %v585
  %v934 = vpack.c.b16 %v590, %v586
  %v935 = vpack.c.b16 %v595, %v591
  %v936 = vpack.c.b16 %v596, %v592
  %v937 = vpack.c.b16 %v597, %v593
  %v938 = vpack.c.b16 %v598, %v594
  %v939 = vpack.c.b16 %v603, %v599
  %v940 = vpack.c.b16 %v604, %v600
  %v941 = vpack.c.b16 %v605, %v601
  %v942 = vpack.c.b16 %v606, %v602
  %v943 = vpack.c.b16 %v611, %v607
  %v944 = vpack.c.b16 %v612, %v608
  %v945 = vpack.c.b16 %v613, %v609
  %v946 = vpack.c.b16 %v614, %v610
  %v947 = vpack.c.b16 %v619, %v615
  %v948 = vpack.c.b16 %v620, %v616
  %v949 = vpack.c.b16 %v621, %v617
  %v950 = vpack.c.b16 %v622, %v618
  %v951 = vpack.c.b16 %v627, %v623
  %v952 = vpack.c.b16 %v628, %v624
  %v953 = vpack.c.b16 %v629, %v625
  %v954 = vpack.c.b16 %v630, %v626
  %v955 = vpack.c.b16 %v635, %v631
  %v956 = vpack.c.b16 %v636, %v632
  %v957 = vpack.c.b16 %v637, %v633
  %v958 = vpack.c.b16 %v638, %v634
  %v959 = vpack.c.b16 %v643, %v639
  %v960 = vpack.c.b16 %v644, %v640
  %v961 = vpack.c.b16 %v645, %v641
  %v962 = vpack.c.b16 %v646, %v642
  %v963 = vpack.c.b16 %v651, %v647
  %v964 = vpack.c.b16 %v652, %v648
  %v965 = vpack.c.b16 %v653, %v649
  %v966 = vpack.c.b16 %v654, %v650
  %v967 = vpack.c.b16 %v659, %v655
  %v968 = vpack.c.b16 %v660, %v656
  %v969 = vpack.c.b16 %v661, %v657
  %v970 = vpack.c.b16 %v662, %v658
  %v971 = vpack.c.b16 %v667, %v663
  %v972 = vpack.c.b16 %v668, %v664
  %v973 = vpack.c.b16 %v669, %v665
  %v974 = vpack.c.b16 %v670, %v666
  %v975 = vpack.c.b16 %v675, %v671
  %v976 = vpack.c.b16 %v676, %v672
  %v977 = vpack.c.b16 %v677, %v673
  %v978 = vpack.c.b16 %v678, %v674
  %v979 = vpack.c.b16 %v683, %v679
  %v980 = vpack.c.b16 %v684, %v680
  %v981 = vpack.c.b16 %v685, %v681
  %v982 = vpack.c.b16 %v686, %v682
  %v983 = vpack.c.b16 %v691, %v687
  %v984 = vpack.c.b16 %v692, %v688
  %v985 = vpack.c.b16 %v693, %v689
  %v986 = vpack.c.b16 %v694, %v690
  %v987 = vpack.c.b16 %v699, %v695
  %v988 = vpack.c.b16 %v700, %v696
  %v989 = vpack.c.b16 %v701, %v697
  %v990 = vpack.c.b16 %v702, %v698
  %v991 = vpack.c.b16 %v707, %v703
  %v992 = vpack.c.b16 %v708, %v704
  %v993 = vpack.c.b16 %v709, %v705
  %v994 = vpack.c.b16 %v710, %v706
  %v995 = vpack.c.b16 %v715, %v711
  %v996 = vpack.c.b16 %v716, %v712
  %v997 = vpack.c.b16 %v717, %v713
  %v998 = vpack.c.b16 %v718, %v714
  %v999 = vpack.c.b16 %v723, %v719
  %v1000 = vpack.c.b16 %v724, %v720
  %v1001 = vpack.c.b16 %v725, %v721
  %v1002 = vpack.c.b16 %v726, %v722
  %v1003 = vpack.c.b16 %v731, %v727
  %v1004 = vpack.c.b16 %v732, %v728
  %v1005 = vpack.c.b16 %v733, %v729
  %v1006 = vpack.c.b16 %v734, %v730
  %v1007 = vpack.c.b16 %v739, %v735
  %v1008 = vpack.c.b16 %v740, %v736
  %v1009 = vpack.c.b16 %v741, %v737
  %v1010 = vpack.c.b16 %v742, %v738
  %v1011 = vpack.c.b16 %v747, %v743
  %v1012 = vpack.c.b16 %v748, %v744
  %v1013 = vpack.c.b16 %v749, %v745
  %v1014 = vpack.c.b16 %v750, %v746
  %v1015 = vpack.c.b16 %v755, %v751
  %v1016 = vpack.c.b16 %v756, %v752
  %v1017 = vpack.c.b16 %v757, %v753
  %v1018 = vpack.c.b16 %v758, %v754
  %v1019 = vpack.c.b16 %v763, %v759
  %v1020 = vpack.c.b16 %v764, %v760
  %v1021 = vpack.c.b16 %v765, %v761
  %v1022 = vpack.c.b16 %v766, %v762
  %v1023 = vpack.c.b16 %v771, %v767
  %v1024 = vpack.c.b16 %v772, %v768
  %v1025 = vpack.c.b16 %v773, %v769
  %v1026 = vpack.c.b16 %v774, %v770
  %v1027 = vpack.c.b16 %v779, %v775
  %v1028 = vpack.c.b16 %v780, %v776
  %v1029 = vpack.c.b16 %v781, %v777
  %v1030 = vpack.c.b16 %v782, %v778
  %v1031 = vpack.c.b16 %v787, %v783
  %v1032 = vpack.c.b16 %v788, %v784
  %v1033 = vpack.c.b16 %v789, %v785
  %v1034 = vpack.c.b16 %v790, %v786
  %v1035 = vpack.c.b16 %v795, %v791
  %v1036 = vpack.c.b16 %v796, %v792
  %v1037 = vpack.c.b16 %v797, %v793
  %v1038 = vpack.c.b16 %v798, %v794
  %v1039 = vpack.c.b16 %v803, %v799
  %v1040 = vpack.c.b16 %v804, %v800
  %v1041 = vpack.c.b16 %v805, %v801
  %v1042 = vpack.c.b16 %v806, %v802
  %v1043 = vpack.c.b16 %v811, %v807
  %v1044 = vpack.c.b16 %v812, %v808
  %v1045 = vpack.c.b16 %v813, %v809
  %v1046 = vpack.c.b16 %v814, %v810
  %v1047 = vpack.c.b16 %v819, %v815
  %v1048 = vpack.c.b16 %v820, %v816
  %v1049 = vpack.c.b16 %v821, %v817
  %v1050 = vpack.c.b16 %v822, %v818
  %v1051 = vpack.c.b16 %v827, %v823
  %v1052 = vpack.c.b16 %v828, %v824
  %v1053 = vpack.c.b16 %v829, %v825
  %v1054 = vpack.c.b16 %v830, %v826
  %v1055 = vpack.c.b16 %v835, %v831
  %v1056 = vpack.c.b16 %v836, %v832
  %v1057 = vpack.c.b16 %v837, %v833
  %v1058 = vpack.c.b16 %v838, %v834
  %v1059 = vpack.c.b16 %v843, %v839
  %v1060 = vpack.c.b16 %v844, %v840
  %v1061 = vpack.c.b16 %v845, %v841
  %v1062 = vpack.c.b16 %v846, %v842
  %v1063 = vpack.c.b16 %v851, %v847
  %v1064 = vpack.c.b16 %v852, %v848
  %v1065 = vpack.c.b16 %v853, %v849
  %v1066 = vpack.c.b16 %v854, %v850
  %v1067 = vpack.c.b16 %v859, %v855
  %v1068 = vpack.c.b16 %v860, %v856
  %v1069 = vpack.c.b16 %v861, %v857
  %v1070 = vpack.c.b16 %v862, %v858
  %v1071 = vpack.c.b16 %v867, %v863
  %v1072 = vpack.c.b16 %v868, %v864
  %v1073 = vpack.c.b16 %v869, %v865
  %v1074 = vpack.c.b16 %v870, %v866
  %v1075 = vpack.c.b16 %v875, %v871
  %v1076 = vpack.c.b16 %v876, %v872
  %v1077 = vpack.c.b16 %v877, %v873
  %v1078 = vpack.c.b16 %v878, %v874
  %v1079 = vpack.c.b16 %v883, %v879
  %v1080 = vpack.c.b16 %v884, %v880
  %v1081 = vpack.c.b16 %v885, %v881
  %v1082 = vpack.c.b16 %v886, %v882
  %vm1279 = vcmask 130048
  %v1281 = vsel %vm1279, %v292, 0
  %1283 = vmatprep.subr.bf16.mxu0 %v888
  %1284 = vmatpush1.bf16.msra.mxu0 %v887
  %1285 = vmatprep.subr.bf16.mxu0 %v892
  %1286 = vmatpush1.bf16.msra.mxu0 %v891
  %1287 = vmatprep.subr.bf16.mxu0 %v896
  %1288 = vmatpush1.bf16.msra.mxu0 %v895
  %1289 = vmatprep.subr.bf16.mxu0 %v900
  %1290 = vmatpush1.bf16.msra.mxu0 %v899
  %1291 = vmatprep.subr.bf16.mxu0 %v904
  %1292 = vmatpush1.bf16.msra.mxu0 %v903
  %1293 = vmatprep.subr.bf16.mxu0 %v908
  %1294 = vmatpush1.bf16.msra.mxu0 %v907
  %1295 = vmatprep.subr.bf16.mxu0 %v912
  %1296 = vmatpush1.bf16.msra.mxu0 %v911
  %1297 = vmatprep.subr.bf16.mxu0 %v916
  %1298 = vmatpush1.bf16.msra.mxu0 %v915
  %1299 = vmatprep.subr.bf16.mxu0 %v920
  %1300 = vmatpush1.bf16.msra.mxu0 %v919
  %1301 = vmatprep.subr.bf16.mxu0 %v924
  %1302 = vmatpush1.bf16.msra.mxu0 %v923
  %1303 = vmatprep.subr.bf16.mxu0 %v928
  %1304 = vmatpush1.bf16.msra.mxu0 %v927
  %1305 = vmatprep.subr.bf16.mxu0 %v932
  %1306 = vmatpush1.bf16.msra.mxu0 %v931
  %1307 = vmatprep.subr.bf16.mxu0 %v936
  %1308 = vmatpush1.bf16.msra.mxu0 %v935
  %1309 = vmatprep.subr.bf16.mxu0 %v940
  %1310 = vmatpush1.bf16.msra.mxu0 %v939
  %1311 = vmatprep.subr.bf16.mxu0 %v944
  %1312 = vmatpush1.bf16.msra.mxu0 %v943
  %1313 = vmatprep.subr.bf16.mxu0 %v948
  %1314 = vmatpush1.bf16.msra.mxu0 %v947
  %1315 = vmatprep.mubr.bf16.mxu0 %v287
  %1316 = vmatmul.mubr.bf16.gmra.mrb[0].mxu0 %v286
  %v1317 = vpop.f32.mrb[0].mxu0
  %v1318 = vadd.f32 %v247, %v1317
  %v1319 = vpop.f32.mrb[0].mxu0
  %v1320 = vadd.f32 %v251, %v1319
  %v1321 = vpop.f32.mrb[0].mxu0
  %v1322 = vadd.f32 %v247, %v1321
  %v1323 = vpop.f32.mrb[0].mxu0
  %v1324 = vadd.f32 %v251, %v1323
  %1325 = vdwg.mxu0
  %1326 = vmatprep.subr.bf16.mxu0 %v952
  %1327 = vmatpush1.bf16.msra.mxu0 %v951
  %1328 = vmatprep.subr.bf16.mxu0 %v956
  %1329 = vmatpush1.bf16.msra.mxu0 %v955
  %1330 = vmatprep.subr.bf16.mxu0 %v960
  %1331 = vmatpush1.bf16.msra.mxu0 %v959
  %1332 = vmatprep.subr.bf16.mxu0 %v964
  %1333 = vmatpush1.bf16.msra.mxu0 %v963
  %1334 = vmatprep.subr.bf16.mxu0 %v968
  %1335 = vmatpush1.bf16.msra.mxu0 %v967
  %1336 = vmatprep.subr.bf16.mxu0 %v972
  %1337 = vmatpush1.bf16.msra.mxu0 %v971
  %1338 = vmatprep.subr.bf16.mxu0 %v976
  %1339 = vmatpush1.bf16.msra.mxu0 %v975
  %1340 = vmatprep.subr.bf16.mxu0 %v980
  %1341 = vmatpush1.bf16.msra.mxu0 %v979
  %1342 = vmatprep.subr.bf16.mxu0 %v984
  %1343 = vmatpush1.bf16.msra.mxu0 %v983
  %1344 = vmatprep.subr.bf16.mxu0 %v988
  %1345 = vmatpush1.bf16.msra.mxu0 %v987
  %1346 = vmatprep.subr.bf16.mxu0 %v992
  %1347 = vmatpush1.bf16.msra.mxu0 %v991
  %1348 = vmatprep.subr.bf16.mxu0 %v996
  %1349 = vmatpush1.bf16.msra.mxu0 %v995
  %1350 = vmatprep.subr.bf16.mxu0 %v1000
  %1351 = vmatpush1.bf16.msra.mxu0 %v999
  %1352 = vmatprep.subr.bf16.mxu0 %v1004
  %1353 = vmatpush1.bf16.msra.mxu0 %v1003
  %1354 = vmatprep.subr.bf16.mxu0 %v1008
  %1355 = vmatpush1.bf16.msra.mxu0 %v1007
  %1356 = vmatprep.subr.bf16.mxu0 %v1012
  %1357 = vmatpush1.bf16.msra.mxu0 %v1011
  %1358 = vmatprep.mubr.bf16.mxu0 %v289
  %1359 = vmatmul.mubr.bf16.gmra.mrb[0].mxu0 %v288
  %v1360 = vpop.f32.mrb[0].mxu0
  %v1361 = vadd.f32 %v1318, %v1360
  %v1362 = vpop.f32.mrb[0].mxu0
  %v1363 = vadd.f32 %v1320, %v1362
  %v1364 = vpop.f32.mrb[0].mxu0
  %v1365 = vadd.f32 %v1322, %v1364
  %v1366 = vpop.f32.mrb[0].mxu0
  %v1367 = vadd.f32 %v1324, %v1366
  %1368 = vdwg.mxu0
  %1369 = vmatprep.subr.bf16.mxu0 %v1016
  %1370 = vmatpush1.bf16.msra.mxu0 %v1015
  %1371 = vmatprep.subr.bf16.mxu0 %v1020
  %1372 = vmatpush1.bf16.msra.mxu0 %v1019
  %1373 = vmatprep.subr.bf16.mxu0 %v1024
  %1374 = vmatpush1.bf16.msra.mxu0 %v1023
  %1375 = vmatprep.subr.bf16.mxu0 %v1028
  %1376 = vmatpush1.bf16.msra.mxu0 %v1027
  %1377 = vmatprep.subr.bf16.mxu0 %v1032
  %1378 = vmatpush1.bf16.msra.mxu0 %v1031
  %1379 = vmatprep.subr.bf16.mxu0 %v1036
  %1380 = vmatpush1.bf16.msra.mxu0 %v1035
  %1381 = vmatprep.subr.bf16.mxu0 %v1040
  %1382 = vmatpush1.bf16.msra.mxu0 %v1039
  %1383 = vmatprep.subr.bf16.mxu0 %v1044
  %1384 = vmatpush1.bf16.msra.mxu0 %v1043
  %1385 = vmatprep.subr.bf16.mxu0 %v1048
  %1386 = vmatpush1.bf16.msra.mxu0 %v1047
  %1387 = vmatprep.subr.bf16.mxu0 %v1052
  %1388 = vmatpush1.bf16.msra.mxu0 %v1051
  %1389 = vmatprep.subr.bf16.mxu0 %v1056
  %1390 = vmatpush1.bf16.msra.mxu0 %v1055
  %1391 = vmatprep.subr.bf16.mxu0 %v1060
  %1392 = vmatpush1.bf16.msra.mxu0 %v1059
  %1393 = vmatprep.subr.bf16.mxu0 %v1064
  %1394 = vmatpush1.bf16.msra.mxu0 %v1063
  %1395 = vmatprep.subr.bf16.mxu0 %v1068
  %1396 = vmatpush1.bf16.msra.mxu0 %v1067
  %1397 = vmatprep.subr.bf16.mxu0 %v1072
  %1398 = vmatpush1.bf16.msra.mxu0 %v1071
  %1399 = vmatprep.subr.bf16.mxu0 %v1076
  %1400 = vmatpush1.bf16.msra.mxu0 %v1075
  %1401 = vmatprep.mubr.bf16.mxu0 %v291
  %1402 = vmatmul.mubr.bf16.gmra.mrb[0].mxu0 %v290
  %v1403 = vpop.f32.mrb[0].mxu0
  %v1404 = vadd.f32 %v1361, %v1403
  %v1405 = vpop.f32.mrb[0].mxu0
  %v1406 = vadd.f32 %v1363, %v1405
  %v1407 = vpop.f32.mrb[0].mxu0
  %v1408 = vadd.f32 %v1365, %v1407
  %v1409 = vpop.f32.mrb[0].mxu0
  %v1410 = vadd.f32 %v1367, %v1409
  %1411 = vdwg.mxu0
  %1412 = vmatprep.subr.bf16.mxu0 %v1080
  %1413 = vmatpush1.bf16.msra.mxu0 %v1079
  %1414 = vmatprep.subr.bf16.mxu0 0
  %1415 = vmatpush1.bf16.msra.mxu0 0
  %1416 = vmatprep.subr.bf16.mxu0 0
  %1417 = vmatpush1.bf16.msra.mxu0 0
  %1418 = vmatprep.subr.bf16.mxu0 0
  %1419 = vmatpush1.bf16.msra.mxu0 0
  %1420 = vmatprep.subr.bf16.mxu0 0
  %1421 = vmatpush1.bf16.msra.mxu0 0
  %1422 = vmatprep.subr.bf16.mxu0 0
  %1423 = vmatpush1.bf16.msra.mxu0 0
  %1424 = vmatprep.subr.bf16.mxu0 0
  %1425 = vmatpush1.bf16.msra.mxu0 0
  %1426 = vmatprep.subr.bf16.mxu0 0
  %1427 = vmatpush1.bf16.msra.mxu0 0
  %1428 = vmatprep.subr.bf16.mxu0 0
  %1429 = vmatpush1.bf16.msra.mxu0 0
  %1430 = vmatprep.subr.bf16.mxu0 0
  %1431 = vmatpush1.bf16.msra.mxu0 0
  %1432 = vmatprep.subr.bf16.mxu0 0
  %1433 = vmatpush1.bf16.msra.mxu0 0
  %1434 = vmatprep.subr.bf16.mxu0 0
  %1435 = vmatpush1.bf16.msra.mxu0 0
  %1436 = vmatprep.subr.bf16.mxu0 0
  %1437 = vmatpush1.bf16.msra.mxu0 0
  %1438 = vmatprep.subr.bf16.mxu0 0
  %1439 = vmatpush1.bf16.msra.mxu0 0
  %1440 = vmatprep.subr.bf16.mxu0 0
  %1441 = vmatpush1.bf16.msra.mxu0 0
  %1442 = vmatprep.subr.bf16.mxu0 0
  %1443 = vmatpush1.bf16.msra.mxu0 0
  %1444 = vmatprep.mubr.bf16.mxu0 0
  %1445 = vmatmul.mubr.bf16.gmra.mrb[0].mxu0 %v1281
  %v1446 = vpop.f32.mrb[0].mxu0
  %v1447 = vadd.f32 %v1404, %v1446
  %v1448 = vpop.f32.mrb[0].mxu0
  %v1449 = vadd.f32 %v1406, %v1448
  %v1450 = vpop.f32.mrb[0].mxu0
  %v1451 = vadd.f32 %v1408, %v1450
  %v1452 = vpop.f32.mrb[0].mxu0
  %v1453 = vadd.f32 %v1410, %v1452
  %1454 = vdwg.mxu0
  %1455 = vmatprep.subr.bf16.mxu0 %v890
  %1456 = vmatpush1.bf16.msra.mxu0 %v889
  %1457 = vmatprep.subr.bf16.mxu0 %v894
  %1458 = vmatpush1.bf16.msra.mxu0 %v893
  %1459 = vmatprep.subr.bf16.mxu0 %v898
  %1460 = vmatpush1.bf16.msra.mxu0 %v897
  %1461 = vmatprep.subr.bf16.mxu0 %v902
  %1462 = vmatpush1.bf16.msra.mxu0 %v901
  %1463 = vmatprep.subr.bf16.mxu0 %v906
  %1464 = vmatpush1.bf16.msra.mxu0 %v905
  %1465 = vmatprep.subr.bf16.mxu0 %v910
  %1466 = vmatpush1.bf16.msra.mxu0 %v909
  %1467 = vmatprep.subr.bf16.mxu0 %v914
  %1468 = vmatpush1.bf16.msra.mxu0 %v913
  %1469 = vmatprep.subr.bf16.mxu0 %v918
  %1470 = vmatpush1.bf16.msra.mxu0 %v917
  %1471 = vmatprep.subr.bf16.mxu0 %v922
  %1472 = vmatpush1.bf16.msra.mxu0 %v921
  %1473 = vmatprep.subr.bf16.mxu0 %v926
  %1474 = vmatpush1.bf16.msra.mxu0 %v925
  %1475 = vmatprep.subr.bf16.mxu0 %v930
  %1476 = vmatpush1.bf16.msra.mxu0 %v929
  %1477 = vmatprep.subr.bf16.mxu0 %v934
  %1478 = vmatpush1.bf16.msra.mxu0 %v933
  %1479 = vmatprep.subr.bf16.mxu0 %v938
  %1480 = vmatpush1.bf16.msra.mxu0 %v937
  %1481 = vmatprep.subr.bf16.mxu0 %v942
  %1482 = vmatpush1.bf16.msra.mxu0 %v941
  %1483 = vmatprep.subr.bf16.mxu0 %v946
  %1484 = vmatpush1.bf16.msra.mxu0 %v945
  %1485 = vmatprep.subr.bf16.mxu0 %v950
  %1486 = vmatpush1.bf16.msra.mxu0 %v949
  %1487 = vmatprep.mubr.bf16.mxu0 %v287
  %1488 = vmatmul.mubr.bf16.gmra.mrb[0].mxu0 %v286
  %v1489 = vpop.f32.mrb[0].mxu0
  %v1490 = vadd.f32 %v255, %v1489
  %v1491 = vpop.f32.mrb[0].mxu0
  %v1492 = vadd.f32 %v259, %v1491
  %v1493 = vpop.f32.mrb[0].mxu0
  %v1494 = vadd.f32 %v255, %v1493
  %v1495 = vpop.f32.mrb[0].mxu0
  %v1496 = vadd.f32 %v259, %v1495
  %1497 = vdwg.mxu0
  %1498 = vmatprep.subr.bf16.mxu0 %v954
  %1499 = vmatpush1.bf16.msra.mxu0 %v953
  %1500 = vmatprep.subr.bf16.mxu0 %v958
  %1501 = vmatpush1.bf16.msra.mxu0 %v957
  %1502 = vmatprep.subr.bf16.mxu0 %v962
  %1503 = vmatpush1.bf16.msra.mxu0 %v961
  %1504 = vmatprep.subr.bf16.mxu0 %v966
  %1505 = vmatpush1.bf16.msra.mxu0 %v965
  %1506 = vmatprep.subr.bf16.mxu0 %v970
  %1507 = vmatpush1.bf16.msra.mxu0 %v969
  %1508 = vmatprep.subr.bf16.mxu0 %v974
  %1509 = vmatpush1.bf16.msra.mxu0 %v973
  %1510 = vmatprep.subr.bf16.mxu0 %v978
  %1511 = vmatpush1.bf16.msra.mxu0 %v977
  %1512 = vmatprep.subr.bf16.mxu0 %v982
  %1513 = vmatpush1.bf16.msra.mxu0 %v981
  %1514 = vmatprep.subr.bf16.mxu0 %v986
  %1515 = vmatpush1.bf16.msra.mxu0 %v985
  %1516 = vmatprep.subr.bf16.mxu0 %v990
  %1517 = vmatpush1.bf16.msra.mxu0 %v989
  %1518 = vmatprep.subr.bf16.mxu0 %v994
  %1519 = vmatpush1.bf16.msra.mxu0 %v993
  %1520 = vmatprep.subr.bf16.mxu0 %v998
  %1521 = vmatpush1.bf16.msra.mxu0 %v997
  %1522 = vmatprep.subr.bf16.mxu0 %v1002
  %1523 = vmatpush1.bf16.msra.mxu0 %v1001
  %1524 = vmatprep.subr.bf16.mxu0 %v1006
  %1525 = vmatpush1.bf16.msra.mxu0 %v1005
  %1526 = vmatprep.subr.bf16.mxu0 %v1010
  %1527 = vmatpush1.bf16.msra.mxu0 %v1009
  %1528 = vmatprep.subr.bf16.mxu0 %v1014
  %1529 = vmatpush1.bf16.msra.mxu0 %v1013
  %1530 = vmatprep.mubr.bf16.mxu0 %v289
  %1531 = vmatmul.mubr.bf16.gmra.mrb[0].mxu0 %v288
  %v1532 = vpop.f32.mrb[0].mxu0
  %v1533 = vadd.f32 %v1490, %v1532
  %v1534 = vpop.f32.mrb[0].mxu0
  %v1535 = vadd.f32 %v1492, %v1534
  %v1536 = vpop.f32.mrb[0].mxu0
  %v1537 = vadd.f32 %v1494, %v1536
  %v1538 = vpop.f32.mrb[0].mxu0
  %v1539 = vadd.f32 %v1496, %v1538
  %1540 = vdwg.mxu0
  %1541 = vmatprep.subr.bf16.mxu0 %v1018
  %1542 = vmatpush1.bf16.msra.mxu0 %v1017
  %1543 = vmatprep.subr.bf16.mxu0 %v1022
  %1544 = vmatpush1.bf16.msra.mxu0 %v1021
  %1545 = vmatprep.subr.bf16.mxu0 %v1026
  %1546 = vmatpush1.bf16.msra.mxu0 %v1025
  %1547 = vmatprep.subr.bf16.mxu0 %v1030
  %1548 = vmatpush1.bf16.msra.mxu0 %v1029
  %1549 = vmatprep.subr.bf16.mxu0 %v1034
  %1550 = vmatpush1.bf16.msra.mxu0 %v1033
  %1551 = vmatprep.subr.bf16.mxu0 %v1038
  %1552 = vmatpush1.bf16.msra.mxu0 %v1037
  %1553 = vmatprep.subr.bf16.mxu0 %v1042
  %1554 = vmatpush1.bf16.msra.mxu0 %v1041
  %1555 = vmatprep.subr.bf16.mxu0 %v1046
  %1556 = vmatpush1.bf16.msra.mxu0 %v1045
  %1557 = vmatprep.subr.bf16.mxu0 %v1050
  %1558 = vmatpush1.bf16.msra.mxu0 %v1049
  %1559 = vmatprep.subr.bf16.mxu0 %v1054
  %1560 = vmatpush1.bf16.msra.mxu0 %v1053
  %1561 = vmatprep.subr.bf16.mxu0 %v1058
  %1562 = vmatpush1.bf16.msra.mxu0 %v1057
  %1563 = vmatprep.subr.bf16.mxu0 %v1062
  %1564 = vmatpush1.bf16.msra.mxu0 %v1061
  %1565 = vmatprep.subr.bf16.mxu0 %v1066
  %1566 = vmatpush1.bf16.msra.mxu0 %v1065
  %1567 = vmatprep.subr.bf16.mxu0 %v1070
  %1568 = vmatpush1.bf16.msra.mxu0 %v1069
  %1569 = vmatprep.subr.bf16.mxu0 %v1074
  %1570 = vmatpush1.bf16.msra.mxu0 %v1073
  %1571 = vmatprep.subr.bf16.mxu0 %v1078
  %1572 = vmatpush1.bf16.msra.mxu0 %v1077
  %1573 = vmatprep.mubr.bf16.mxu0 %v291
  %1574 = vmatmul.mubr.bf16.gmra.mrb[0].mxu0 %v290
  %v1575 = vpop.f32.mrb[0].mxu0
  %v1576 = vadd.f32 %v1533, %v1575
  %v1577 = vpop.f32.mrb[0].mxu0
  %v1578 = vadd.f32 %v1535, %v1577
  %v1579 = vpop.f32.mrb[0].mxu0
  %v1580 = vadd.f32 %v1537, %v1579
  %v1581 = vpop.f32.mrb[0].mxu0
  %v1582 = vadd.f32 %v1539, %v1581
  %1583 = vdwg.mxu0
  %1584 = vmatprep.subr.bf16.mxu0 %v1082
  %1585 = vmatpush1.bf16.msra.mxu0 %v1081
  %1586 = vmatprep.subr.bf16.mxu0 0
  %1587 = vmatpush1.bf16.msra.mxu0 0
  %1588 = vmatprep.subr.bf16.mxu0 0
  %1589 = vmatpush1.bf16.msra.mxu0 0
  %1590 = vmatprep.subr.bf16.mxu0 0
  %1591 = vmatpush1.bf16.msra.mxu0 0
  %1592 = vmatprep.subr.bf16.mxu0 0
  %1593 = vmatpush1.bf16.msra.mxu0 0
  %1594 = vmatprep.subr.bf16.mxu0 0
  %1595 = vmatpush1.bf16.msra.mxu0 0
  %1596 = vmatprep.subr.bf16.mxu0 0
  %1597 = vmatpush1.bf16.msra.mxu0 0
  %1598 = vmatprep.subr.bf16.mxu0 0
  %1599 = vmatpush1.bf16.msra.mxu0 0
  %1600 = vmatprep.subr.bf16.mxu0 0
  %1601 = vmatpush1.bf16.msra.mxu0 0
  %1602 = vmatprep.subr.bf16.mxu0 0
  %1603 = vmatpush1.bf16.msra.mxu0 0
  %1604 = vmatprep.subr.bf16.mxu0 0
  %1605 = vmatpush1.bf16.msra.mxu0 0
  %1606 = vmatprep.subr.bf16.mxu0 0
  %1607 = vmatpush1.bf16.msra.mxu0 0
  %1608 = vmatprep.subr.bf16.mxu0 0
  %1609 = vmatpush1.bf16.msra.mxu0 0
  %1610 = vmatprep.subr.bf16.mxu0 0
  %1611 = vmatpush1.bf16.msra.mxu0 0
  %1612 = vmatprep.subr.bf16.mxu0 0
  %1613 = vmatpush1.bf16.msra.mxu0 0
  %1614 = vmatprep.subr.bf16.mxu0 0
  %1615 = vmatpush1.bf16.msra.mxu0 0
  %1616 = vmatprep.mubr.bf16.mxu0 0
  %1617 = vmatmul.mubr.bf16.gmra.mrb[0].mxu0 %v1281
  %v1618 = vpop.f32.mrb[0].mxu0
  %v1619 = vadd.f32 %v1576, %v1618
  %v1620 = vpop.f32.mrb[0].mxu0
  %v1621 = vadd.f32 %v1578, %v1620
  %v1622 = vpop.f32.mrb[0].mxu0
  %v1623 = vadd.f32 %v1580, %v1622
  %v1624 = vpop.f32.mrb[0].mxu0
  %v1625 = vadd.f32 %v1582, %v1624
  %1626 = vdwg.mxu0
  %v1627 = vmax.f32 %v1447, 0.0
  %v1628 = vmax.f32 %v1449, 0.0
  %v1629 = vmax.f32 %v1619, 0.0
  %v1630 = vmax.f32 %v1621, 0.0
  %v1631 = vmax.f32 %v1451, 0.0
  %v1632 = vmax.f32 %v1453, 0.0
  %v1633 = vmax.f32 %v1623, 0.0
  %v1634 = vmax.f32 %v1625, 0.0
  %v1635 = vld [vmem:[%s4] sm:$0xff]
  %v1636 = vld [vmem:[%s4 + $0x8] sm:$0xff]
  %v1637 = vld [vmem:[%s4 + $0x10] sm:$0xff]
  %v1638 = vld [vmem:[%s4 + $0x18] sm:$0xff]
  %v1639 = vld [vmem:[%s4 + $0x20] sm:$0xff]
  %v1640 = vld [vmem:[%s4 + $0x28] sm:$0xff]
  %v1641 = vld [vmem:[%s4 + $0x30] sm:$0xff]
  %v1642 = vld [vmem:[%s4 + $0x38] sm:$0xff]
  %v1643 = vld [vmem:[%s4 + $0x40] sm:$0xff]
  %v1644 = vld [vmem:[%s4 + $0x48] sm:$0xff]
  %v1645 = vld [vmem:[%s4 + $0x50] sm:$0xff]
  %v1646 = vld [vmem:[%s4 + $0x58] sm:$0xff]
  %v1647 = vld [vmem:[%s4 + $0x60] sm:$0xff]
  %v1648 = vld [vmem:[%s4 + $0x68] sm:$0xff]
  %v1649 = vld [vmem:[%s4 + $0x70] sm:$0xff]
  %v1650 = vld [vmem:[%s4 + $0x78] sm:$0xff]
  %v1651 = vld [vmem:[%s4 + $0x80] sm:$0xff]
  %v1652 = vld [vmem:[%s4 + $0x88] sm:$0xff]
  %v1653 = vld [vmem:[%s4 + $0x90] sm:$0xff]
  %v1654 = vld [vmem:[%s4 + $0x98] sm:$0xff]
  %v1655 = vld [vmem:[%s4 + $0xa0] sm:$0xff]
  %v1656 = vld [vmem:[%s4 + $0xa8] sm:$0xff]
  %v1657 = vld [vmem:[%s4 + $0xb0] sm:$0xff]
  %v1658 = vld [vmem:[%s4 + $0xb8] sm:$0xff]
  %v1659 = vld [vmem:[%s4 + $0xc0] sm:$0xff]
  %v1660 = vld [vmem:[%s4 + $0xc8] sm:$0xff]
  %v1661 = vld [vmem:[%s4 + $0xd0] sm:$0xff]
  %v1662 = vld [vmem:[%s4 + $0xd8] sm:$0xff]
  %v1663 = vld [vmem:[%s4 + $0xe0] sm:$0xff]
  %v1664 = vld [vmem:[%s4 + $0xe8] sm:$0xff]
  %v1665 = vld [vmem:[%s4 + $0xf0] sm:$0xff]
  %v1666 = vld [vmem:[%s4 + $0xf8] sm:$0xff]
  %v1667 = vld [vmem:[%s4 + $0x100] sm:$0xff]
  %v1668 = vld [vmem:[%s4 + $0x108] sm:$0xff]
  %v1669 = vld [vmem:[%s4 + $0x110] sm:$0xff]
  %v1670 = vld [vmem:[%s4 + $0x118] sm:$0xff]
  %v1671 = vld [vmem:[%s4 + $0x120] sm:$0xff]
  %v1672 = vld [vmem:[%s4 + $0x128] sm:$0xff]
  %v1673 = vld [vmem:[%s4 + $0x130] sm:$0xff]
  %v1674 = vld [vmem:[%s4 + $0x138] sm:$0xff]
  %v1675 = vld [vmem:[%s4 + $0x140] sm:$0xff]
  %v1676 = vld [vmem:[%s4 + $0x148] sm:$0xff]
  %v1677 = vld [vmem:[%s4 + $0x150] sm:$0xff]
  %v1678 = vld [vmem:[%s4 + $0x158] sm:$0xff]
  %v1679 = vld [vmem:[%s4 + $0x160] sm:$0xff]
  %v1680 = vld [vmem:[%s4 + $0x168] sm:$0xff]
  %v1681 = vld [vmem:[%s4 + $0x170] sm:$0xff]
  %v1682 = vld [vmem:[%s4 + $0x178] sm:$0xff]
  %v1683 = vld [vmem:[%s4 + $0x180] sm:$0xff]
  %v1684 = vld [vmem:[%s4 + $0x188] sm:$0xff]
  %v1685 = vld [vmem:[%s4 + $0x190] sm:$0xff]
  %v1686 = vld [vmem:[%s4 + $0x198] sm:$0xff]
  %v1687 = vld [vmem:[%s4 + $0x1a0] sm:$0xff]
  %v1688 = vld [vmem:[%s4 + $0x1a8] sm:$0xff]
  %v1689 = vld [vmem:[%s4 + $0x1b0] sm:$0xff]
  %v1690 = vld [vmem:[%s4 + $0x1b8] sm:$0xff]
  %v1691 = vld [vmem:[%s4 + $0x1c0] sm:$0xff]
  %v1692 = vld [vmem:[%s4 + $0x1c8] sm:$0xff]
  %v1693 = vld [vmem:[%s4 + $0x1d0] sm:$0xff]
  %v1694 = vld [vmem:[%s4 + $0x1d8] sm:$0xff]
  %v1695 = vld [vmem:[%s4 + $0x1e0] sm:$0xff]
  %v1696 = vld [vmem:[%s4 + $0x1e8] sm:$0xff]
  %v1697 = vld [vmem:[%s4 + $0x1f0] sm:$0xff]
  %v1698 = vld [vmem:[%s4 + $0x1f8] sm:$0xff]
  %v1699 = vld [vmem:[%s4 + $0x200] sm:$0xff]
  %v1700 = vld [vmem:[%s4 + $0x208] sm:$0xff]
  %v1701 = vld [vmem:[%s4 + $0x210] sm:$0xff]
  %v1702 = vld [vmem:[%s4 + $0x218] sm:$0xff]
  %v1703 = vld [vmem:[%s4 + $0x220] sm:$0xff]
  %v1704 = vld [vmem:[%s4 + $0x228] sm:$0xff]
  %v1705 = vld [vmem:[%s4 + $0x230] sm:$0xff]
  %v1706 = vld [vmem:[%s4 + $0x238] sm:$0xff]
  %v1707 = vld [vmem:[%s4 + $0x240] sm:$0xff]
  %v1708 = vld [vmem:[%s4 + $0x248] sm:$0xff]
  %v1709 = vld [vmem:[%s4 + $0x250] sm:$0xff]
  %v1710 = vld [vmem:[%s4 + $0x258] sm:$0xff]
  %v1711 = vld [vmem:[%s4 + $0x260] sm:$0xff]
  %v1712 = vld [vmem:[%s4 + $0x268] sm:$0xff]
  %v1713 = vld [vmem:[%s4 + $0x270] sm:$0xff]
  %v1714 = vld [vmem:[%s4 + $0x278] sm:$0xff]
  %v1715 = vld [vmem:[%s4 + $0x280] sm:$0xff]
  %v1716 = vld [vmem:[%s4 + $0x288] sm:$0xff]
  %v1717 = vld [vmem:[%s4 + $0x290] sm:$0xff]
  %v1718 = vld [vmem:[%s4 + $0x298] sm:$0xff]
  %v1719 = vld [vmem:[%s4 + $0x2a0] sm:$0xff]
  %v1720 = vld [vmem:[%s4 + $0x2a8] sm:$0xff]
  %v1721 = vld [vmem:[%s4 + $0x2b0] sm:$0xff]
  %v1722 = vld [vmem:[%s4 + $0x2b8] sm:$0xff]
  %v1723 = vld [vmem:[%s4 + $0x2c0] sm:$0xff]
  %v1724 = vld [vmem:[%s4 + $0x2c8] sm:$0xff]
  %v1725 = vld [vmem:[%s4 + $0x2d0] sm:$0xff]
  %v1726 = vld [vmem:[%s4 + $0x2d8] sm:$0xff]
  %v1727 = vld [vmem:[%s4 + $0x2e0] sm:$0xff]
  %v1728 = vld [vmem:[%s4 + $0x2e8] sm:$0xff]
  %v1729 = vld [vmem:[%s4 + $0x2f0] sm:$0xff]
  %v1730 = vld [vmem:[%s4 + $0x2f8] sm:$0xff]
  %v1731 = vld [vmem:[%s4 + $0x300] sm:$0xff]
  %v1732 = vld [vmem:[%s4 + $0x308] sm:$0xff]
  %v1733 = vld [vmem:[%s4 + $0x310] sm:$0xff]
  %v1734 = vld [vmem:[%s4 + $0x318] sm:$0xff]
  %v1735 = vld [vmem:[%s4 + $0x320] sm:$0xff]
  %v1736 = vld [vmem:[%s4 + $0x328] sm:$0xff]
  %v1737 = vld [vmem:[%s4 + $0x330] sm:$0xff]
  %v1738 = vld [vmem:[%s4 + $0x338] sm:$0xff]
  %v1739 = vld [vmem:[%s4 + $0x340] sm:$0xff]
  %v1740 = vld [vmem:[%s4 + $0x348] sm:$0xff]
  %v1741 = vld [vmem:[%s4 + $0x350] sm:$0xff]
  %v1742 = vld [vmem:[%s4 + $0x358] sm:$0xff]
  %v1743 = vld [vmem:[%s4 + $0x360] sm:$0xff]
  %v1744 = vld [vmem:[%s4 + $0x368] sm:$0xff]
  %v1745 = vld [vmem:[%s4 + $0x370] sm:$0xff]
  %v1746 = vld [vmem:[%s4 + $0x378] sm:$0xff]
  %v1747 = vld [vmem:[%s4 + $0x380] sm:$0xff]
  %v1748 = vld [vmem:[%s4 + $0x388] sm:$0xff]
  %v1749 = vld [vmem:[%s4 + $0x390] sm:$0xff]
  %v1750 = vld [vmem:[%s4 + $0x398] sm:$0xff]
  %v1751 = vld [vmem:[%s4 + $0x3a0] sm:$0xff]
  %v1752 = vld [vmem:[%s4 + $0x3a8] sm:$0xff]
  %v1753 = vld [vmem:[%s4 + $0x3b0] sm:$0xff]
  %v1754 = vld [vmem:[%s4 + $0x3b8] sm:$0xff]
  %v1755 = vld [vmem:[%s4 + $0x3c0] sm:$0xff]
  %v1756 = vld [vmem:[%s4 + $0x3c8] sm:$0xff]
  %v1757 = vld [vmem:[%s4 + $0x3d0] sm:$0xff]
  %v1758 = vld [vmem:[%s4 + $0x3d8] sm:$0xff]
  %v1759 = vld [vmem:[%s4 + $0x3e0] sm:$0xff]
  %v1760 = vld [vmem:[%s4 + $0x3e8] sm:$0xff]
  %v1761 = vld [vmem:[%s4 + $0x3f0] sm:$0xff]
  %v1762 = vld [vmem:[%s4 + $0x3f8] sm:$0xff]
  %v1763 = vld [vmem:[%s5] sm:$0x3]
  %v1765 = vlaneseq
  %v1766 = vshrl.u32 %v1765, 7
  %v1767 = vsub.s32 0, %v1766
  %v1768 = vrot.slane %v1763, %v1767
  %v1769 = vlaneseq
  %v1770 = vshrl.u32 %v1769, 7
  %v1771 = vsub.s32 1, %v1770
  %v1772 = vrot.slane %v1763, %v1771
  %1775 = vmatprep.subr.mxu0 %v1636
  %1776 = vmatpush1.msra.mxu0 %v1635
  %1777 = vmatprep.subr.mxu0 %v1638
  %1778 = vmatpush1.msra.mxu0 %v1637
  %1779 = vmatprep.subr.mxu0 %v1640
  %1780 = vmatpush1.msra.mxu0 %v1639
  %1781 = vmatprep.subr.mxu0 %v1642
  %1782 = vmatpush1.msra.mxu0 %v1641
  %1783 = vmatprep.subr.mxu0 %v1644
  %1784 = vmatpush1.msra.mxu0 %v1643
  %1785 = vmatprep.subr.mxu0 %v1646
  %1786 = vmatpush1.msra.mxu0 %v1645
  %1787 = vmatprep.subr.mxu0 %v1648
  %1788 = vmatpush1.msra.mxu0 %v1647
  %1789 = vmatprep.subr.mxu0 %v1650
  %1790 = vmatpush1.msra.mxu0 %v1649
  %1791 = vmatprep.subr.mxu0 %v1652
  %1792 = vmatpush1.msra.mxu0 %v1651
  %1793 = vmatprep.subr.mxu0 %v1654
  %1794 = vmatpush1.msra.mxu0 %v1653
  %1795 = vmatprep.subr.mxu0 %v1656
  %1796 = vmatpush1.msra.mxu0 %v1655
  %1797 = vmatprep.subr.mxu0 %v1658
  %1798 = vmatpush1.msra.mxu0 %v1657
  %1799 = vmatprep.subr.mxu0 %v1660
  %1800 = vmatpush1.msra.mxu0 %v1659
  %1801 = vmatprep.subr.mxu0 %v1662
  %1802 = vmatpush1.msra.mxu0 %v1661
  %1803 = vmatprep.subr.mxu0 %v1664
  %1804 = vmatpush1.msra.mxu0 %v1663
  %1805 = vmatprep.subr.mxu0 %v1666
  %1806 = vmatpush1.msra.mxu0 %v1665
  %1807 = vmatprep.subr.mxu0 %v1668
  %1808 = vmatpush1.msra.mxu0 %v1667
  %1809 = vmatprep.subr.mxu0 %v1670
  %1810 = vmatpush1.msra.mxu0 %v1669
  %1811 = vmatprep.subr.mxu0 %v1672
  %1812 = vmatpush1.msra.mxu0 %v1671
  %1813 = vmatprep.subr.mxu0 %v1674
  %1814 = vmatpush1.msra.mxu0 %v1673
  %1815 = vmatprep.subr.mxu0 %v1676
  %1816 = vmatpush1.msra.mxu0 %v1675
  %1817 = vmatprep.subr.mxu0 %v1678
  %1818 = vmatpush1.msra.mxu0 %v1677
  %1819 = vmatprep.subr.mxu0 %v1680
  %1820 = vmatpush1.msra.mxu0 %v1679
  %1821 = vmatprep.subr.mxu0 %v1682
  %1822 = vmatpush1.msra.mxu0 %v1681
  %1823 = vmatprep.subr.mxu0 %v1684
  %1824 = vmatpush1.msra.mxu0 %v1683
  %1825 = vmatprep.subr.mxu0 %v1686
  %1826 = vmatpush1.msra.mxu0 %v1685
  %1827 = vmatprep.subr.mxu0 %v1688
  %1828 = vmatpush1.msra.mxu0 %v1687
  %1829 = vmatprep.subr.mxu0 %v1690
  %1830 = vmatpush1.msra.mxu0 %v1689
  %1831 = vmatprep.subr.mxu0 %v1692
  %1832 = vmatpush1.msra.mxu0 %v1691
  %1833 = vmatprep.subr.mxu0 %v1694
  %1834 = vmatpush1.msra.mxu0 %v1693
  %1835 = vmatprep.subr.mxu0 %v1696
  %1836 = vmatpush1.msra.mxu0 %v1695
  %1837 = vmatprep.subr.mxu0 %v1698
  %1838 = vmatpush1.msra.mxu0 %v1697
  %1839 = vmatprep.mubr.f32.mxu0 %v1628
  %1840 = vmatmul.mubr.f32.gmra.mrb[0].mxu0 %v1627
  %v1841 = vpop.f32.mrb[0].mxu0
  %v1842 = vadd.f32 %v1768, %v1841
  %v1843 = vpop.f32.mrb[0].mxu0
  %v1844 = vadd.f32 %v1772, %v1843
  %1845 = vmatprep.mubr.f32.mxu0 %v1632
  %1846 = vmatmul.mubr.f32.gmra.mrb[0].mxu0 %v1631
  %v1847 = vpop.f32.mrb[0].mxu0
  %v1848 = vadd.f32 %v1768, %v1847
  %v1849 = vpop.f32.mrb[0].mxu0
  %v1850 = vadd.f32 %v1772, %v1849
  %1851 = vdwg.mxu0
  %1852 = vmatprep.subr.mxu0 %v1700
  %1853 = vmatpush1.msra.mxu0 %v1699
  %1854 = vmatprep.subr.mxu0 %v1702
  %1855 = vmatpush1.msra.mxu0 %v1701
  %1856 = vmatprep.subr.mxu0 %v1704
  %1857 = vmatpush1.msra.mxu0 %v1703
  %1858 = vmatprep.subr.mxu0 %v1706
  %1859 = vmatpush1.msra.mxu0 %v1705
  %1860 = vmatprep.subr.mxu0 %v1708
  %1861 = vmatpush1.msra.mxu0 %v1707
  %1862 = vmatprep.subr.mxu0 %v1710
  %1863 = vmatpush1.msra.mxu0 %v1709
  %1864 = vmatprep.subr.mxu0 %v1712
  %1865 = vmatpush1.msra.mxu0 %v1711
  %1866 = vmatprep.subr.mxu0 %v1714
  %1867 = vmatpush1.msra.mxu0 %v1713
  %1868 = vmatprep.subr.mxu0 %v1716
  %1869 = vmatpush1.msra.mxu0 %v1715
  %1870 = vmatprep.subr.mxu0 %v1718
  %1871 = vmatpush1.msra.mxu0 %v1717
  %1872 = vmatprep.subr.mxu0 %v1720
  %1873 = vmatpush1.msra.mxu0 %v1719
  %1874 = vmatprep.subr.mxu0 %v1722
  %1875 = vmatpush1.msra.mxu0 %v1721
  %1876 = vmatprep.subr.mxu0 %v1724
  %1877 = vmatpush1.msra.mxu0 %v1723
  %1878 = vmatprep.subr.mxu0 %v1726
  %1879 = vmatpush1.msra.mxu0 %v1725
  %1880 = vmatprep.subr.mxu0 %v1728
  %1881 = vmatpush1.msra.mxu0 %v1727
  %1882 = vmatprep.subr.mxu0 %v1730
  %1883 = vmatpush1.msra.mxu0 %v1729
  %1884 = vmatprep.subr.mxu0 %v1732
  %1885 = vmatpush1.msra.mxu0 %v1731
  %1886 = vmatprep.subr.mxu0 %v1734
  %1887 = vmatpush1.msra.mxu0 %v1733
  %1888 = vmatprep.subr.mxu0 %v1736
  %1889 = vmatpush1.msra.mxu0 %v1735
  %1890 = vmatprep.subr.mxu0 %v1738
  %1891 = vmatpush1.msra.mxu0 %v1737
  %1892 = vmatprep.subr.mxu0 %v1740
  %1893 = vmatpush1.msra.mxu0 %v1739
  %1894 = vmatprep.subr.mxu0 %v1742
  %1895 = vmatpush1.msra.mxu0 %v1741
  %1896 = vmatprep.subr.mxu0 %v1744
  %1897 = vmatpush1.msra.mxu0 %v1743
  %1898 = vmatprep.subr.mxu0 %v1746
  %1899 = vmatpush1.msra.mxu0 %v1745
  %1900 = vmatprep.subr.mxu0 %v1748
  %1901 = vmatpush1.msra.mxu0 %v1747
  %1902 = vmatprep.subr.mxu0 %v1750
  %1903 = vmatpush1.msra.mxu0 %v1749
  %1904 = vmatprep.subr.mxu0 %v1752
  %1905 = vmatpush1.msra.mxu0 %v1751
  %1906 = vmatprep.subr.mxu0 %v1754
  %1907 = vmatpush1.msra.mxu0 %v1753
  %1908 = vmatprep.subr.mxu0 %v1756
  %1909 = vmatpush1.msra.mxu0 %v1755
  %1910 = vmatprep.subr.mxu0 %v1758
  %1911 = vmatpush1.msra.mxu0 %v1757
  %1912 = vmatprep.subr.mxu0 %v1760
  %1913 = vmatpush1.msra.mxu0 %v1759
  %1914 = vmatprep.subr.mxu0 %v1762
  %1915 = vmatpush1.msra.mxu0 %v1761
  %1916 = vmatprep.mubr.f32.mxu0 %v1630
  %1917 = vmatmul.mubr.f32.gmra.mrb[0].mxu0 %v1629
  %v1918 = vpop.f32.mrb[0].mxu0
  %v1919 = vadd.f32 %v1842, %v1918
  %v1920 = vpop.f32.mrb[0].mxu0
  %v1921 = vadd.f32 %v1844, %v1920
  %1922 = vmatprep.mubr.f32.mxu0 %v1634
  %1923 = vmatmul.mubr.f32.gmra.mrb[0].mxu0 %v1633
  %v1924 = vpop.f32.mrb[0].mxu0
  %v1925 = vadd.f32 %v1848, %v1924
  %v1926 = vpop.f32.mrb[0].mxu0
  %v1927 = vadd.f32 %v1850, %v1926
  %1928 = vdwg.mxu0
  %1929 = vst [vmem:[%s11] sm:$0xff] %v1919
  %1930 = vst [vmem:[%s11 + $0x8] sm:$0xff] %v1921
  %1931 = vst [vmem:[%s11 + $0x10] sm:$0xff] %v1925
  %1932 = vst [vmem:[%s11 + $0x18] sm:$0xff] %v1927
  %v1933 = vmul.f32 %v1921, 0.5
  %v1934 = vmul.f32 %v1927, 0.5
  %v1935 = vmul.f32 %v1933, 1.442695
  %v1936 = vpow.pop %v1935
  %v1937 = vmul.f32 %v1934, 1.442695
  %v1938 = vpow.pop %v1937
  %v1939 = vld [vmem:[%s1] sm:$0xf]
  %v1940 = vld [vmem:[%s1 + $0x4] sm:$0xf]
  %v1941 = vunpack.c.l.bf16 %v1939
  %v1942 = vunpack.c.l.bf16 %v1940
  %v1943 = vmul.f32 %v1941, %v1936
  %v1944 = vmul.f32 %v1942, %v1938
  %v1945 = vadd.f32 %v1919, %v1943
  %v1946 = vadd.f32 %v1925, %v1944
  %v1947 = vpack.c.bf16 %v1946, %v1945
  %v1948 = vld [vmem:[%s6] sm:$0xff]
  %v1949 = vld [vmem:[%s6 + $0x8] sm:$0xff]
  %v1950 = vld [vmem:[%s6 + $0x10] sm:$0xff]
  %v1951 = vld [vmem:[%s6 + $0x18] sm:$0xff]
  %v1952 = vld [vmem:[%s6 + $0x20] sm:$0xff]
  %v1953 = vld [vmem:[%s6 + $0x28] sm:$0xff]
  %v1954 = vld [vmem:[%s6 + $0x30] sm:$0xff]
  %v1955 = vld [vmem:[%s6 + $0x38] sm:$0xff]
  %v1956 = vld [vmem:[%s6 + $0x40] sm:$0xff]
  %v1957 = vld [vmem:[%s6 + $0x48] sm:$0xff]
  %v1958 = vld [vmem:[%s6 + $0x50] sm:$0xff]
  %v1959 = vld [vmem:[%s6 + $0x58] sm:$0xff]
  %v1960 = vld [vmem:[%s6 + $0x60] sm:$0xff]
  %v1961 = vld [vmem:[%s6 + $0x68] sm:$0xff]
  %v1962 = vld [vmem:[%s6 + $0x70] sm:$0xff]
  %v1963 = vld [vmem:[%s6 + $0x78] sm:$0xff]
  %v1964 = vld [vmem:[%s6 + $0x80] sm:$0xff]
  %v1965 = vld [vmem:[%s6 + $0x88] sm:$0xff]
  %v1966 = vld [vmem:[%s6 + $0x90] sm:$0xff]
  %v1967 = vld [vmem:[%s6 + $0x98] sm:$0xff]
  %v1968 = vld [vmem:[%s6 + $0xa0] sm:$0xff]
  %v1969 = vld [vmem:[%s6 + $0xa8] sm:$0xff]
  %v1970 = vld [vmem:[%s6 + $0xb0] sm:$0xff]
  %v1971 = vld [vmem:[%s6 + $0xb8] sm:$0xff]
  %v1972 = vld [vmem:[%s6 + $0xc0] sm:$0xff]
  %v1973 = vld [vmem:[%s6 + $0xc8] sm:$0xff]
  %v1974 = vld [vmem:[%s6 + $0xd0] sm:$0xff]
  %v1975 = vld [vmem:[%s6 + $0xd8] sm:$0xff]
  %v1976 = vld [vmem:[%s6 + $0xe0] sm:$0xff]
  %v1977 = vld [vmem:[%s6 + $0xe8] sm:$0xff]
  %v1978 = vld [vmem:[%s6 + $0xf0] sm:$0xff]
  %v1979 = vld [vmem:[%s6 + $0xf8] sm:$0xff]
  %v1980 = vld [vmem:[%s7] sm:$0xf]
  %v1982 = vlaneseq
  %v1983 = vshrl.u32 %v1982, 7
  %v1984 = vsub.s32 0, %v1983
  %v1985 = vrot.slane %v1980, %v1984
  %v1986 = vlaneseq
  %v1987 = vshrl.u32 %v1986, 7
  %v1988 = vsub.s32 1, %v1987
  %v1989 = vrot.slane %v1980, %v1988
  %v1990 = vlaneseq
  %v1991 = vshrl.u32 %v1990, 7
  %v1992 = vsub.s32 2, %v1991
  %v1993 = vrot.slane %v1980, %v1992
  %v1994 = vlaneseq
  %v1995 = vshrl.u32 %v1994, 7
  %v1996 = vsub.s32 3, %v1995
  %v1997 = vrot.slane %v1980, %v1996
  %v2034 = vunpack.c.l.b16 %v1948
  %v2035 = vunpack.c.h.b16 %v1948
  %v2036 = vunpack.c.l.b16 %v1949
  %v2037 = vunpack.c.h.b16 %v1949
  %v2038 = vunpack.c.l.b16 %v1950
  %v2039 = vunpack.c.h.b16 %v1950
  %v2040 = vunpack.c.l.b16 %v1951
  %v2041 = vunpack.c.h.b16 %v1951
  %v2042 = vunpack.c.l.b16 %v1952
  %v2043 = vunpack.c.h.b16 %v1952
  %v2044 = vunpack.c.l.b16 %v1953
  %v2045 = vunpack.c.h.b16 %v1953
  %v2046 = vunpack.c.l.b16 %v1954
  %v2047 = vunpack.c.h.b16 %v1954
  %v2048 = vunpack.c.l.b16 %v1955
  %v2049 = vunpack.c.h.b16 %v1955
  %v2050 = vunpack.c.l.b16 %v1956
  %v2051 = vunpack.c.h.b16 %v1956
  %v2052 = vunpack.c.l.b16 %v1957
  %v2053 = vunpack.c.h.b16 %v1957
  %v2054 = vunpack.c.l.b16 %v1958
  %v2055 = vunpack.c.h.b16 %v1958
  %v2056 = vunpack.c.l.b16 %v1959
  %v2057 = vunpack.c.h.b16 %v1959
  %v2058 = vunpack.c.l.b16 %v1960
  %v2059 = vunpack.c.h.b16 %v1960
  %v2060 = vunpack.c.l.b16 %v1961
  %v2061 = vunpack.c.h.b16 %v1961
  %v2062 = vunpack.c.l.b16 %v1962
  %v2063 = vunpack.c.h.b16 %v1962
  %v2064 = vunpack.c.l.b16 %v1963
  %v2065 = vunpack.c.h.b16 %v1963
  %v2066 = vunpack.c.l.b16 %v1964
  %v2067 = vunpack.c.h.b16 %v1964
  %v2068 = vunpack.c.l.b16 %v1965
  %v2069 = vunpack.c.h.b16 %v1965
  %v2070 = vunpack.c.l.b16 %v1966
  %v2071 = vunpack.c.h.b16 %v1966
  %v2072 = vunpack.c.l.b16 %v1967
  %v2073 = vunpack.c.h.b16 %v1967
  %v2074 = vunpack.c.l.b16 %v1968
  %v2075 = vunpack.c.h.b16 %v1968
  %v2076 = vunpack.c.l.b16 %v1969
  %v2077 = vunpack.c.h.b16 %v1969
  %v2078 = vunpack.c.l.b16 %v1970
  %v2079 = vunpack.c.h.b16 %v1970
  %v2080 = vunpack.c.l.b16 %v1971
  %v2081 = vunpack.c.h.b16 %v1971
  %v2082 = vunpack.c.l.b16 %v1972
  %v2083 = vunpack.c.h.b16 %v1972
  %v2084 = vunpack.c.l.b16 %v1973
  %v2085 = vunpack.c.h.b16 %v1973
  %v2086 = vunpack.c.l.b16 %v1974
  %v2087 = vunpack.c.h.b16 %v1974
  %v2088 = vunpack.c.l.b16 %v1975
  %v2089 = vunpack.c.h.b16 %v1975
  %v2090 = vunpack.c.l.b16 %v1976
  %v2091 = vunpack.c.h.b16 %v1976
  %v2092 = vunpack.c.l.b16 %v1977
  %v2093 = vunpack.c.h.b16 %v1977
  %v2094 = vunpack.c.l.b16 %v1978
  %v2095 = vunpack.c.h.b16 %v1978
  %v2096 = vunpack.c.l.b16 %v1979
  %v2097 = vunpack.c.h.b16 %v1979
  %v2098 = vpack.c.b16 %v2038, %v2034
  %v2099 = vpack.c.b16 %v2039, %v2035
  %v2100 = vpack.c.b16 %v2040, %v2036
  %v2101 = vpack.c.b16 %v2041, %v2037
  %v2102 = vpack.c.b16 %v2046, %v2042
  %v2103 = vpack.c.b16 %v2047, %v2043
  %v2104 = vpack.c.b16 %v2048, %v2044
  %v2105 = vpack.c.b16 %v2049, %v2045
  %v2106 = vpack.c.b16 %v2054, %v2050
  %v2107 = vpack.c.b16 %v2055, %v2051
  %v2108 = vpack.c.b16 %v2056, %v2052
  %v2109 = vpack.c.b16 %v2057, %v2053
  %v2110 = vpack.c.b16 %v2062, %v2058
  %v2111 = vpack.c.b16 %v2063, %v2059
  %v2112 = vpack.c.b16 %v2064, %v2060
  %v2113 = vpack.c.b16 %v2065, %v2061
  %v2114 = vpack.c.b16 %v2070, %v2066
  %v2115 = vpack.c.b16 %v2071, %v2067
  %v2116 = vpack.c.b16 %v2072, %v2068
  %v2117 = vpack.c.b16 %v2073, %v2069
  %v2118 = vpack.c.b16 %v2078, %v2074
  %v2119 = vpack.c.b16 %v2079, %v2075
  %v2120 = vpack.c.b16 %v2080, %v2076
  %v2121 = vpack.c.b16 %v2081, %v2077
  %v2122 = vpack.c.b16 %v2086, %v2082
  %v2123 = vpack.c.b16 %v2087, %v2083
  %v2124 = vpack.c.b16 %v2088, %v2084
  %v2125 = vpack.c.b16 %v2089, %v2085
  %v2126 = vpack.c.b16 %v2094, %v2090
  %v2127 = vpack.c.b16 %v2095, %v2091
  %v2128 = vpack.c.b16 %v2096, %v2092
  %v2129 = vpack.c.b16 %v2097, %v2093
  %2162 = vmatprep.subr.bf16.mxu0 %v2099
  %2163 = vmatpush1.bf16.msra.mxu0 %v2098
  %2164 = vmatprep.subr.bf16.mxu0 %v2103
  %2165 = vmatpush1.bf16.msra.mxu0 %v2102
  %2166 = vmatprep.subr.bf16.mxu0 %v2107
  %2167 = vmatpush1.bf16.msra.mxu0 %v2106
  %2168 = vmatprep.subr.bf16.mxu0 %v2111
  %2169 = vmatpush1.bf16.msra.mxu0 %v2110
  %2170 = vmatprep.subr.bf16.mxu0 %v2115
  %2171 = vmatpush1.bf16.msra.mxu0 %v2114
  %2172 = vmatprep.subr.bf16.mxu0 %v2119
  %2173 = vmatpush1.bf16.msra.mxu0 %v2118
  %2174 = vmatprep.subr.bf16.mxu0 %v2123
  %2175 = vmatpush1.bf16.msra.mxu0 %v2122
  %2176 = vmatprep.subr.bf16.mxu0 %v2127
  %2177 = vmatpush1.bf16.msra.mxu0 %v2126
  %2178 = vmatprep.subr.bf16.mxu0 0
  %2179 = vmatpush1.bf16.msra.mxu0 0
  %2180 = vmatprep.subr.bf16.mxu0 0
  %2181 = vmatpush1.bf16.msra.mxu0 0
  %2182 = vmatprep.subr.bf16.mxu0 0
  %2183 = vmatpush1.bf16.msra.mxu0 0
  %2184 = vmatprep.subr.bf16.mxu0 0
  %2185 = vmatpush1.bf16.msra.mxu0 0
  %2186 = vmatprep.subr.bf16.mxu0 0
  %2187 = vmatpush1.bf16.msra.mxu0 0
  %2188 = vmatprep.subr.bf16.mxu0 0
  %2189 = vmatpush1.bf16.msra.mxu0 0
  %2190 = vmatprep.subr.bf16.mxu0 0
  %2191 = vmatpush1.bf16.msra.mxu0 0
  %2192 = vmatprep.subr.bf16.mxu0 0
  %2193 = vmatpush1.bf16.msra.mxu0 0
  %2194 = vmatprep.mubr.bf16.mxu0 0
  %2195 = vmatmul.mubr.bf16.gmra.mrb[0].mxu0 %v1947
  %v2196 = vpop.f32.mrb[0].mxu0
  %v2197 = vadd.f32 %v1985, %v2196
  %v2198 = vpop.f32.mrb[0].mxu0
  %v2199 = vadd.f32 %v1989, %v2198
  %v2200 = vpop.f32.mrb[0].mxu0
  %v2201 = vadd.f32 %v1985, %v2200
  %v2202 = vpop.f32.mrb[0].mxu0
  %v2203 = vadd.f32 %v1989, %v2202
  %2204 = vdwg.mxu0
  %2205 = vmatprep.subr.bf16.mxu0 %v2101
  %2206 = vmatpush1.bf16.msra.mxu0 %v2100
  %2207 = vmatprep.subr.bf16.mxu0 %v2105
  %2208 = vmatpush1.bf16.msra.mxu0 %v2104
  %2209 = vmatprep.subr.bf16.mxu0 %v2109
  %2210 = vmatpush1.bf16.msra.mxu0 %v2108
  %2211 = vmatprep.subr.bf16.mxu0 %v2113
  %2212 = vmatpush1.bf16.msra.mxu0 %v2112
  %2213 = vmatprep.subr.bf16.mxu0 %v2117
  %2214 = vmatpush1.bf16.msra.mxu0 %v2116
  %2215 = vmatprep.subr.bf16.mxu0 %v2121
  %2216 = vmatpush1.bf16.msra.mxu0 %v2120
  %2217 = vmatprep.subr.bf16.mxu0 %v2125
  %2218 = vmatpush1.bf16.msra.mxu0 %v2124
  %2219 = vmatprep.subr.bf16.mxu0 %v2129
  %2220 = vmatpush1.bf16.msra.mxu0 %v2128
  %2221 = vmatprep.subr.bf16.mxu0 0
  %2222 = vmatpush1.bf16.msra.mxu0 0
  %2223 = vmatprep.subr.bf16.mxu0 0
  %2224 = vmatpush1.bf16.msra.mxu0 0
  %2225 = vmatprep.subr.bf16.mxu0 0
  %2226 = vmatpush1.bf16.msra.mxu0 0
  %2227 = vmatprep.subr.bf16.mxu0 0
  %2228 = vmatpush1.bf16.msra.mxu0 0
  %2229 = vmatprep.subr.bf16.mxu0 0
  %2230 = vmatpush1.bf16.msra.mxu0 0
  %2231 = vmatprep.subr.bf16.mxu0 0
  %2232 = vmatpush1.bf16.msra.mxu0 0
  %2233 = vmatprep.subr.bf16.mxu0 0
  %2234 = vmatpush1.bf16.msra.mxu0 0
  %2235 = vmatprep.subr.bf16.mxu0 0
  %2236 = vmatpush1.bf16.msra.mxu0 0
  %2237 = vmatprep.mubr.bf16.mxu0 0
  %2238 = vmatmul.mubr.bf16.gmra.mrb[0].mxu0 %v1947
  %v2239 = vpop.f32.mrb[0].mxu0
  %v2240 = vadd.f32 %v1993, %v2239
  %v2241 = vpop.f32.mrb[0].mxu0
  %v2242 = vadd.f32 %v1997, %v2241
  %v2243 = vpop.f32.mrb[0].mxu0
  %v2244 = vadd.f32 %v1993, %v2243
  %v2245 = vpop.f32.mrb[0].mxu0
  %v2246 = vadd.f32 %v1997, %v2245
  %2247 = vdwg.mxu0
  %v2248 = vmax.f32 %v2197, 0.0
  %v2249 = vmax.f32 %v2199, 0.0
  %v2250 = vmax.f32 %v2240, 0.0
  %v2251 = vmax.f32 %v2242, 0.0
  %v2252 = vmax.f32 %v2201, 0.0
  %v2253 = vmax.f32 %v2203, 0.0
  %v2254 = vmax.f32 %v2244, 0.0
  %v2255 = vmax.f32 %v2246, 0.0
  %v2256 = vpack.c.bf16 %v2252, %v2248
  %v2257 = vpack.c.bf16 %v2253, %v2249
  %v2258 = vpack.c.bf16 %v2254, %v2250
  %v2259 = vpack.c.bf16 %v2255, %v2251
  %v2260 = vld [vmem:[%s8] sm:$0xff]
  %v2261 = vld [vmem:[%s8 + $0x8] sm:$0xff]
  %v2262 = vld [vmem:[%s8 + $0x10] sm:$0xff]
  %v2263 = vld [vmem:[%s8 + $0x18] sm:$0xf]
  %v2264 = vld [vmem:[%s8 + $0x1c] sm:$0xff]
  %v2265 = vld [vmem:[%s8 + $0x24] sm:$0xff]
  %v2266 = vld [vmem:[%s8 + $0x2c] sm:$0xff]
  %v2267 = vld [vmem:[%s8 + $0x34] sm:$0xf]
  %v2268 = vld [vmem:[%s8 + $0x38] sm:$0xff]
  %v2269 = vld [vmem:[%s8 + $0x40] sm:$0xff]
  %v2270 = vld [vmem:[%s8 + $0x48] sm:$0xff]
  %v2271 = vld [vmem:[%s8 + $0x50] sm:$0xf]
  %v2272 = vld [vmem:[%s8 + $0x54] sm:$0xff]
  %v2273 = vld [vmem:[%s8 + $0x5c] sm:$0xff]
  %v2274 = vld [vmem:[%s8 + $0x64] sm:$0xff]
  %v2275 = vld [vmem:[%s8 + $0x6c] sm:$0xf]
  %v2276 = vld [vmem:[%s8 + $0x70] sm:$0xff]
  %v2277 = vld [vmem:[%s8 + $0x78] sm:$0xff]
  %v2278 = vld [vmem:[%s8 + $0x80] sm:$0xff]
  %v2279 = vld [vmem:[%s8 + $0x88] sm:$0xf]
  %v2280 = vld [vmem:[%s8 + $0x8c] sm:$0xff]
  %v2281 = vld [vmem:[%s8 + $0x94] sm:$0xff]
  %v2282 = vld [vmem:[%s8 + $0x9c] sm:$0xff]
  %v2283 = vld [vmem:[%s8 + $0xa4] sm:$0xf]
  %v2284 = vld [vmem:[%s8 + $0xa8] sm:$0xff]
  %v2285 = vld [vmem:[%s8 + $0xb0] sm:$0xff]
  %v2286 = vld [vmem:[%s8 + $0xb8] sm:$0xff]
  %v2287 = vld [vmem:[%s8 + $0xc0] sm:$0xf]
  %v2288 = vld [vmem:[%s8 + $0xc4] sm:$0xff]
  %v2289 = vld [vmem:[%s8 + $0xcc] sm:$0xff]
  %v2290 = vld [vmem:[%s8 + $0xd4] sm:$0xff]
  %v2291 = vld [vmem:[%s8 + $0xdc] sm:$0xf]
  %v2292 = vld [vmem:[%s8 + $0xe0] sm:$0xff]
  %v2293 = vld [vmem:[%s8 + $0xe8] sm:$0xff]
  %v2294 = vld [vmem:[%s8 + $0xf0] sm:$0xff]
  %v2295 = vld [vmem:[%s8 + $0xf8] sm:$0xf]
  %v2296 = vld [vmem:[%s8 + $0xfc] sm:$0xff]
  %v2297 = vld [vmem:[%s8 + $0x104] sm:$0xff]
  %v2298 = vld [vmem:[%s8 + $0x10c] sm:$0xff]
  %v2299 = vld [vmem:[%s8 + $0x114] sm:$0xf]
  %v2300 = vld [vmem:[%s8 + $0x118] sm:$0xff]
  %v2301 = vld [vmem:[%s8 + $0x120] sm:$0xff]
  %v2302 = vld [vmem:[%s8 + $0x128] sm:$0xff]
  %v2303 = vld [vmem:[%s8 + $0x130] sm:$0xf]
  %v2304 = vld [vmem:[%s8 + $0x134] sm:$0xff]
  %v2305 = vld [vmem:[%s8 + $0x13c] sm:$0xff]
  %v2306 = vld [vmem:[%s8 + $0x144] sm:$0xff]
  %v2307 = vld [vmem:[%s8 + $0x14c] sm:$0xf]
  %v2308 = vld [vmem:[%s8 + $0x150] sm:$0xff]
  %v2309 = vld [vmem:[%s8 + $0x158] sm:$0xff]
  %v2310 = vld [vmem:[%s8 + $0x160] sm:$0xff]
  %v2311 = vld [vmem:[%s8 + $0x168] sm:$0xf]
  %v2312 = vld [vmem:[%s8 + $0x16c] sm:$0xff]
  %v2313 = vld [vmem:[%s8 + $0x174] sm:$0xff]
  %v2314 = vld [vmem:[%s8 + $0x17c] sm:$0xff]
  %v2315 = vld [vmem:[%s8 + $0x184] sm:$0xf]
  %v2316 = vld [vmem:[%s8 + $0x188] sm:$0xff]
  %v2317 = vld [vmem:[%s8 + $0x190] sm:$0xff]
  %v2318 = vld [vmem:[%s8 + $0x198] sm:$0xff]
  %v2319 = vld [vmem:[%s8 + $0x1a0] sm:$0xf]
  %v2320 = vld [vmem:[%s8 + $0x1a4] sm:$0xff]
  %v2321 = vld [vmem:[%s8 + $0x1ac] sm:$0xff]
  %v2322 = vld [vmem:[%s8 + $0x1b4] sm:$0xff]
  %v2323 = vld [vmem:[%s8 + $0x1bc] sm:$0xf]
  %v2324 = vld [vmem:[%s8 + $0x1c0] sm:$0xff]
  %v2325 = vld [vmem:[%s8 + $0x1c8] sm:$0xff]
  %v2326 = vld [vmem:[%s8 + $0x1d0] sm:$0xff]
  %v2327 = vld [vmem:[%s8 + $0x1d8] sm:$0xf]
  %v2328 = vld [vmem:[%s8 + $0x1dc] sm:$0xff]
  %v2329 = vld [vmem:[%s8 + $0x1e4] sm:$0xff]
  %v2330 = vld [vmem:[%s8 + $0x1ec] sm:$0xff]
  %v2331 = vld [vmem:[%s8 + $0x1f4] sm:$0xf]
  %v2332 = vld [vmem:[%s8 + $0x1f8] sm:$0xff]
  %v2333 = vld [vmem:[%s8 + $0x200] sm:$0xff]
  %v2334 = vld [vmem:[%s8 + $0x208] sm:$0xff]
  %v2335 = vld [vmem:[%s8 + $0x210] sm:$0xf]
  %v2336 = vld [vmem:[%s8 + $0x214] sm:$0xff]
  %v2337 = vld [vmem:[%s8 + $0x21c] sm:$0xff]
  %v2338 = vld [vmem:[%s8 + $0x224] sm:$0xff]
  %v2339 = vld [vmem:[%s8 + $0x22c] sm:$0xf]
  %v2340 = vld [vmem:[%s8 + $0x230] sm:$0xff]
  %v2341 = vld [vmem:[%s8 + $0x238] sm:$0xff]
  %v2342 = vld [vmem:[%s8 + $0x240] sm:$0xff]
  %v2343 = vld [vmem:[%s8 + $0x248] sm:$0xf]
  %v2344 = vld [vmem:[%s8 + $0x24c] sm:$0xff]
  %v2345 = vld [vmem:[%s8 + $0x254] sm:$0xff]
  %v2346 = vld [vmem:[%s8 + $0x25c] sm:$0xff]
  %v2347 = vld [vmem:[%s8 + $0x264] sm:$0xf]
  %v2348 = vld [vmem:[%s8 + $0x268] sm:$0xff]
  %v2349 = vld [vmem:[%s8 + $0x270] sm:$0xff]
  %v2350 = vld [vmem:[%s8 + $0x278] sm:$0xff]
  %v2351 = vld [vmem:[%s8 + $0x280] sm:$0xf]
  %v2352 = vld [vmem:[%s8 + $0x284] sm:$0xff]
  %v2353 = vld [vmem:[%s8 + $0x28c] sm:$0xff]
  %v2354 = vld [vmem:[%s8 + $0x294] sm:$0xff]
  %v2355 = vld [vmem:[%s8 + $0x29c] sm:$0xf]
  %v2356 = vld [vmem:[%s8 + $0x2a0] sm:$0xff]
  %v2357 = vld [vmem:[%s8 + $0x2a8] sm:$0xff]
  %v2358 = vld [vmem:[%s8 + $0x2b0] sm:$0xff]
  %v2359 = vld [vmem:[%s8 + $0x2b8] sm:$0xf]
  %v2360 = vld [vmem:[%s8 + $0x2bc] sm:$0xff]
  %v2361 = vld [vmem:[%s8 + $0x2c4] sm:$0xff]
  %v2362 = vld [vmem:[%s8 + $0x2cc] sm:$0xff]
  %v2363 = vld [vmem:[%s8 + $0x2d4] sm:$0xf]
  %v2364 = vld [vmem:[%s8 + $0x2d8] sm:$0xff]
  %v2365 = vld [vmem:[%s8 + $0x2e0] sm:$0xff]
  %v2366 = vld [vmem:[%s8 + $0x2e8] sm:$0xff]
  %v2367 = vld [vmem:[%s8 + $0x2f0] sm:$0xf]
  %v2368 = vld [vmem:[%s8 + $0x2f4] sm:$0xff]
  %v2369 = vld [vmem:[%s8 + $0x2fc] sm:$0xff]
  %v2370 = vld [vmem:[%s8 + $0x304] sm:$0xff]
  %v2371 = vld [vmem:[%s8 + $0x30c] sm:$0xf]
  %v2372 = vld [vmem:[%s8 + $0x310] sm:$0xff]
  %v2373 = vld [vmem:[%s8 + $0x318] sm:$0xff]
  %v2374 = vld [vmem:[%s8 + $0x320] sm:$0xff]
  %v2375 = vld [vmem:[%s8 + $0x328] sm:$0xf]
  %v2376 = vld [vmem:[%s8 + $0x32c] sm:$0xff]
  %v2377 = vld [vmem:[%s8 + $0x334] sm:$0xff]
  %v2378 = vld [vmem:[%s8 + $0x33c] sm:$0xff]
  %v2379 = vld [vmem:[%s8 + $0x344] sm:$0xf]
  %v2380 = vld [vmem:[%s8 + $0x348] sm:$0xff]
  %v2381 = vld [vmem:[%s8 + $0x350] sm:$0xff]
  %v2382 = vld [vmem:[%s8 + $0x358] sm:$0xff]
  %v2383 = vld [vmem:[%s8 + $0x360] sm:$0xf]
  %v2384 = vld [vmem:[%s8 + $0x364] sm:$0xff]
  %v2385 = vld [vmem:[%s8 + $0x36c] sm:$0xff]
  %v2386 = vld [vmem:[%s8 + $0x374] sm:$0xff]
  %v2387 = vld [vmem:[%s8 + $0x37c] sm:$0xf]
  %v2388 = vld [vmem:[%s8 + $0x380] sm:$0xff]
  %v2389 = vld [vmem:[%s8 + $0x388] sm:$0xff]
  %v2390 = vld [vmem:[%s8 + $0x390] sm:$0xff]
  %v2391 = vld [vmem:[%s8 + $0x398] sm:$0xf]
  %v2392 = vld [vmem:[%s8 + $0x39c] sm:$0xff]
  %v2393 = vld [vmem:[%s8 + $0x3a4] sm:$0xff]
  %v2394 = vld [vmem:[%s8 + $0x3ac] sm:$0xff]
  %v2395 = vld [vmem:[%s8 + $0x3b4] sm:$0xf]
  %v2396 = vld [vmem:[%s8 + $0x3b8] sm:$0xff]
  %v2397 = vld [vmem:[%s8 + $0x3c0] sm:$0xff]
  %v2398 = vld [vmem:[%s8 + $0x3c8] sm:$0xff]
  %v2399 = vld [vmem:[%s8 + $0x3d0] sm:$0xf]
  %v2400 = vld [vmem:[%s8 + $0x3d4] sm:$0xff]
  %v2401 = vld [vmem:[%s8 + $0x3dc] sm:$0xff]
  %v2402 = vld [vmem:[%s8 + $0x3e4] sm:$0xff]
  %v2403 = vld [vmem:[%s8 + $0x3ec] sm:$0xf]
  %v2404 = vld [vmem:[%s8 + $0x3f0] sm:$0xff]
  %v2405 = vld [vmem:[%s8 + $0x3f8] sm:$0xff]
  %v2406 = vld [vmem:[%s8 + $0x400] sm:$0xff]
  %v2407 = vld [vmem:[%s8 + $0x408] sm:$0xf]
  %v2408 = vld [vmem:[%s8 + $0x40c] sm:$0xff]
  %v2409 = vld [vmem:[%s8 + $0x414] sm:$0xff]
  %v2410 = vld [vmem:[%s8 + $0x41c] sm:$0xff]
  %v2411 = vld [vmem:[%s8 + $0x424] sm:$0xf]
  %v2412 = vld [vmem:[%s8 + $0x428] sm:$0xff]
  %v2413 = vld [vmem:[%s8 + $0x430] sm:$0xff]
  %v2414 = vld [vmem:[%s8 + $0x438] sm:$0xff]
  %v2415 = vld [vmem:[%s8 + $0x440] sm:$0xf]
  %v2416 = vld [vmem:[%s8 + $0x444] sm:$0xff]
  %v2417 = vld [vmem:[%s8 + $0x44c] sm:$0xff]
  %v2418 = vld [vmem:[%s8 + $0x454] sm:$0xff]
  %v2419 = vld [vmem:[%s8 + $0x45c] sm:$0xf]
  %v2420 = vld [vmem:[%s8 + $0x460] sm:$0xff]
  %v2421 = vld [vmem:[%s8 + $0x468] sm:$0xff]
  %v2422 = vld [vmem:[%s8 + $0x470] sm:$0xff]
  %v2423 = vld [vmem:[%s8 + $0x478] sm:$0xf]
  %v2424 = vld [vmem:[%s8 + $0x47c] sm:$0xff]
  %v2425 = vld [vmem:[%s8 + $0x484] sm:$0xff]
  %v2426 = vld [vmem:[%s8 + $0x48c] sm:$0xff]
  %v2427 = vld [vmem:[%s8 + $0x494] sm:$0xf]
  %v2428 = vld [vmem:[%s8 + $0x498] sm:$0xff]
  %v2429 = vld [vmem:[%s8 + $0x4a0] sm:$0xff]
  %v2430 = vld [vmem:[%s8 + $0x4a8] sm:$0xff]
  %v2431 = vld [vmem:[%s8 + $0x4b0] sm:$0xf]
  %v2432 = vld [vmem:[%s8 + $0x4b4] sm:$0xff]
  %v2433 = vld [vmem:[%s8 + $0x4bc] sm:$0xff]
  %v2434 = vld [vmem:[%s8 + $0x4c4] sm:$0xff]
  %v2435 = vld [vmem:[%s8 + $0x4cc] sm:$0xf]
  %v2436 = vld [vmem:[%s8 + $0x4d0] sm:$0xff]
  %v2437 = vld [vmem:[%s8 + $0x4d8] sm:$0xff]
  %v2438 = vld [vmem:[%s8 + $0x4e0] sm:$0xff]
  %v2439 = vld [vmem:[%s8 + $0x4e8] sm:$0xf]
  %v2440 = vld [vmem:[%s8 + $0x4ec] sm:$0xff]
  %v2441 = vld [vmem:[%s8 + $0x4f4] sm:$0xff]
  %v2442 = vld [vmem:[%s8 + $0x4fc] sm:$0xff]
  %v2443 = vld [vmem:[%s8 + $0x504] sm:$0xf]
  %v2444 = vld [vmem:[%s8 + $0x508] sm:$0xff]
  %v2445 = vld [vmem:[%s8 + $0x510] sm:$0xff]
  %v2446 = vld [vmem:[%s8 + $0x518] sm:$0xff]
  %v2447 = vld [vmem:[%s8 + $0x520] sm:$0xf]
  %v2448 = vld [vmem:[%s8 + $0x524] sm:$0xff]
  %v2449 = vld [vmem:[%s8 + $0x52c] sm:$0xff]
  %v2450 = vld [vmem:[%s8 + $0x534] sm:$0xff]
  %v2451 = vld [vmem:[%s8 + $0x53c] sm:$0xf]
  %v2452 = vld [vmem:[%s8 + $0x540] sm:$0xff]
  %v2453 = vld [vmem:[%s8 + $0x548] sm:$0xff]
  %v2454 = vld [vmem:[%s8 + $0x550] sm:$0xff]
  %v2455 = vld [vmem:[%s8 + $0x558] sm:$0xf]
  %v2456 = vld [vmem:[%s8 + $0x55c] sm:$0xff]
  %v2457 = vld [vmem:[%s8 + $0x564] sm:$0xff]
  %v2458 = vld [vmem:[%s8 + $0x56c] sm:$0xff]
  %v2459 = vld [vmem:[%s8 + $0x574] sm:$0xf]
  %v2460 = vld [vmem:[%s8 + $0x578] sm:$0xff]
  %v2461 = vld [vmem:[%s8 + $0x580] sm:$0xff]
  %v2462 = vld [vmem:[%s8 + $0x588] sm:$0xff]
  %v2463 = vld [vmem:[%s8 + $0x590] sm:$0xf]
  %v2464 = vld [vmem:[%s8 + $0x594] sm:$0xff]
  %v2465 = vld [vmem:[%s8 + $0x59c] sm:$0xff]
  %v2466 = vld [vmem:[%s8 + $0x5a4] sm:$0xff]
  %v2467 = vld [vmem:[%s8 + $0x5ac] sm:$0xf]
  %v2468 = vld [vmem:[%s8 + $0x5b0] sm:$0xff]
  %v2469 = vld [vmem:[%s8 + $0x5b8] sm:$0xff]
  %v2470 = vld [vmem:[%s8 + $0x5c0] sm:$0xff]
  %v2471 = vld [vmem:[%s8 + $0x5c8] sm:$0xf]
  %v2472 = vld [vmem:[%s8 + $0x5cc] sm:$0xff]
  %v2473 = vld [vmem:[%s8 + $0x5d4] sm:$0xff]
  %v2474 = vld [vmem:[%s8 + $0x5dc] sm:$0xff]
  %v2475 = vld [vmem:[%s8 + $0x5e4] sm:$0xf]
  %v2476 = vld [vmem:[%s8 + $0x5e8] sm:$0xff]
  %v2477 = vld [vmem:[%s8 + $0x5f0] sm:$0xff]
  %v2478 = vld [vmem:[%s8 + $0x5f8] sm:$0xff]
  %v2479 = vld [vmem:[%s8 + $0x600] sm:$0xf]
  %v2480 = vld [vmem:[%s8 + $0x604] sm:$0xff]
  %v2481 = vld [vmem:[%s8 + $0x60c] sm:$0xff]
  %v2482 = vld [vmem:[%s8 + $0x614] sm:$0xff]
  %v2483 = vld [vmem:[%s8 + $0x61c] sm:$0xf]
  %v2484 = vld [vmem:[%s8 + $0x620] sm:$0xff]
  %v2485 = vld [vmem:[%s8 + $0x628] sm:$0xff]
  %v2486 = vld [vmem:[%s8 + $0x630] sm:$0xff]
  %v2487 = vld [vmem:[%s8 + $0x638] sm:$0xf]
  %v2488 = vld [vmem:[%s8 + $0x63c] sm:$0xff]
  %v2489 = vld [vmem:[%s8 + $0x644] sm:$0xff]
  %v2490 = vld [vmem:[%s8 + $0x64c] sm:$0xff]
  %v2491 = vld [vmem:[%s8 + $0x654] sm:$0xf]
  %v2492 = vld [vmem:[%s8 + $0x658] sm:$0xff]
  %v2493 = vld [vmem:[%s8 + $0x660] sm:$0xff]
  %v2494 = vld [vmem:[%s8 + $0x668] sm:$0xff]
  %v2495 = vld [vmem:[%s8 + $0x670] sm:$0xf]
  %v2496 = vld [vmem:[%s8 + $0x674] sm:$0xff]
  %v2497 = vld [vmem:[%s8 + $0x67c] sm:$0xff]
  %v2498 = vld [vmem:[%s8 + $0x684] sm:$0xff]
  %v2499 = vld [vmem:[%s8 + $0x68c] sm:$0xf]
  %v2500 = vld [vmem:[%s8 + $0x690] sm:$0xff]
  %v2501 = vld [vmem:[%s8 + $0x698] sm:$0xff]
  %v2502 = vld [vmem:[%s8 + $0x6a0] sm:$0xff]
  %v2503 = vld [vmem:[%s8 + $0x6a8] sm:$0xf]
  %v2504 = vld [vmem:[%s8 + $0x6ac] sm:$0xff]
  %v2505 = vld [vmem:[%s8 + $0x6b4] sm:$0xff]
  %v2506 = vld [vmem:[%s8 + $0x6bc] sm:$0xff]
  %v2507 = vld [vmem:[%s8 + $0x6c4] sm:$0xf]
  %v2508 = vld [vmem:[%s8 + $0x6c8] sm:$0xff]
  %v2509 = vld [vmem:[%s8 + $0x6d0] sm:$0xff]
  %v2510 = vld [vmem:[%s8 + $0x6d8] sm:$0xff]
  %v2511 = vld [vmem:[%s8 + $0x6e0] sm:$0xf]
  %v2512 = vld [vmem:[%s8 + $0x6e4] sm:$0xff]
  %v2513 = vld [vmem:[%s8 + $0x6ec] sm:$0xff]
  %v2514 = vld [vmem:[%s8 + $0x6f4] sm:$0xff]
  %v2515 = vld [vmem:[%s8 + $0x6fc] sm:$0xf]
  %v2516 = vld [vmem:[%s9] sm:$0x7f]
  %v2518 = vlaneseq
  %v2519 = vshrl.u32 %v2518, 7
  %v2520 = vsub.s32 0, %v2519
  %v2521 = vrot.slane %v2516, %v2520
  %v2522 = vlaneseq
  %v2523 = vshrl.u32 %v2522, 7
  %v2524 = vsub.s32 1, %v2523
  %v2525 = vrot.slane %v2516, %v2524
  %v2526 = vlaneseq
  %v2527 = vshrl.u32 %v2526, 7
  %v2528 = vsub.s32 2, %v2527
  %v2529 = vrot.slane %v2516, %v2528
  %v2530 = vlaneseq
  %v2531 = vshrl.u32 %v2530, 7
  %v2532 = vsub.s32 3, %v2531
  %v2533 = vrot.slane %v2516, %v2532
  %v2534 = vlaneseq
  %v2535 = vshrl.u32 %v2534, 7
  %v2536 = vsub.s32 4, %v2535
  %v2537 = vrot.slane %v2516, %v2536
  %v2538 = vlaneseq
  %v2539 = vshrl.u32 %v2538, 7
  %v2540 = vsub.s32 5, %v2539
  %v2541 = vrot.slane %v2516, %v2540
  %v2542 = vlaneseq
  %v2543 = vshrl.u32 %v2542, 7
  %v2544 = vsub.s32 6, %v2543
  %v2545 = vrot.slane %v2516, %v2544
  %v2809 = vunpack.c.l.b16 %v2260
  %v2810 = vunpack.c.h.b16 %v2260
  %v2811 = vunpack.c.l.b16 %v2261
  %v2812 = vunpack.c.h.b16 %v2261
  %v2813 = vunpack.c.l.b16 %v2262
  %v2814 = vunpack.c.h.b16 %v2262
  %v2815 = vunpack.c.l.b16 %v2263
  %v2816 = vunpack.c.l.b16 %v2264
  %v2817 = vunpack.c.h.b16 %v2264
  %v2818 = vunpack.c.l.b16 %v2265
  %v2819 = vunpack.c.h.b16 %v2265
  %v2820 = vunpack.c.l.b16 %v2266
  %v2821 = vunpack.c.h.b16 %v2266
  %v2822 = vunpack.c.l.b16 %v2267
  %v2823 = vunpack.c.l.b16 %v2268
  %v2824 = vunpack.c.h.b16 %v2268
  %v2825 = vunpack.c.l.b16 %v2269
  %v2826 = vunpack.c.h.b16 %v2269
  %v2827 = vunpack.c.l.b16 %v2270
  %v2828 = vunpack.c.h.b16 %v2270
  %v2829 = vunpack.c.l.b16 %v2271
  %v2830 = vunpack.c.l.b16 %v2272
  %v2831 = vunpack.c.h.b16 %v2272
  %v2832 = vunpack.c.l.b16 %v2273
  %v2833 = vunpack.c.h.b16 %v2273
  %v2834 = vunpack.c.l.b16 %v2274
  %v2835 = vunpack.c.h.b16 %v2274
  %v2836 = vunpack.c.l.b16 %v2275
  %v2837 = vunpack.c.l.b16 %v2276
  %v2838 = vunpack.c.h.b16 %v2276
  %v2839 = vunpack.c.l.b16 %v2277
  %v2840 = vunpack.c.h.b16 %v2277
  %v2841 = vunpack.c.l.b16 %v2278
  %v2842 = vunpack.c.h.b16 %v2278
  %v2843 = vunpack.c.l.b16 %v2279
  %v2844 = vunpack.c.l.b16 %v2280
  %v2845 = vunpack.c.h.b16 %v2280
  %v2846 = vunpack.c.l.b16 %v2281
  %v2847 = vunpack.c.h.b16 %v2281
  %v2848 = vunpack.c.l.b16 %v2282
  %v2849 = vunpack.c.h.b16 %v2282
  %v2850 = vunpack.c.l.b16 %v2283
  %v2851 = vunpack.c.l.b16 %v2284
  %v2852 = vunpack.c.h.b16 %v2284
  %v2853 = vunpack.c.l.b16 %v2285
  %v2854 = vunpack.c.h.b16 %v2285
  %v2855 = vunpack.c.l.b16 %v2286
  %v2856 = vunpack.c.h.b16 %v2286
  %v2857 = vunpack.c.l.b16 %v2287
  %v2858 = vunpack.c.l.b16 %v2288
  %v2859 = vunpack.c.h.b16 %v2288
  %v2860 = vunpack.c.l.b16 %v2289
  %v2861 = vunpack.c.h.b16 %v2289
  %v2862 = vunpack.c.l.b16 %v2290
  %v2863 = vunpack.c.h.b16 %v2290
  %v2864 = vunpack.c.l.b16 %v2291
  %v2865 = vunpack.c.l.b16 %v2292
  %v2866 = vunpack.c.h.b16 %v2292
  %v2867 = vunpack.c.l.b16 %v2293
  %v2868 = vunpack.c.h.b16 %v2293
  %v2869 = vunpack.c.l.b16 %v2294
  %v2870 = vunpack.c.h.b16 %v2294
  %v2871 = vunpack.c.l.b16 %v2295
  %v2872 = vunpack.c.l.b16 %v2296
  %v2873 = vunpack.c.h.b16 %v2296
  %v2874 = vunpack.c.l.b16 %v2297
  %v2875 = vunpack.c.h.b16 %v2297
  %v2876 = vunpack.c.l.b16 %v2298
  %v2877 = vunpack.c.h.b16 %v2298
  %v2878 = vunpack.c.l.b16 %v2299
  %v2879 = vunpack.c.l.b16 %v2300
  %v2880 = vunpack.c.h.b16 %v2300
  %v2881 = vunpack.c.l.b16 %v2301
  %v2882 = vunpack.c.h.b16 %v2301
  %v2883 = vunpack.c.l.b16 %v2302
  %v2884 = vunpack.c.h.b16 %v2302
  %v2885 = vunpack.c.l.b16 %v2303
  %v2886 = vunpack.c.l.b16 %v2304
  %v2887 = vunpack.c.h.b16 %v2304
  %v2888 = vunpack.c.l.b16 %v2305
  %v2889 = vunpack.c.h.b16 %v2305
  %v2890 = vunpack.c.l.b16 %v2306
  %v2891 = vunpack.c.h.b16 %v2306
  %v2892 = vunpack.c.l.b16 %v2307
  %v2893 = vunpack.c.l.b16 %v2308
  %v2894 = vunpack.c.h.b16 %v2308
  %v2895 = vunpack.c.l.b16 %v2309
  %v2896 = vunpack.c.h.b16 %v2309
  %v2897 = vunpack.c.l.b16 %v2310
  %v2898 = vunpack.c.h.b16 %v2310
  %v2899 = vunpack.c.l.b16 %v2311
  %v2900 = vunpack.c.l.b16 %v2312
  %v2901 = vunpack.c.h.b16 %v2312
  %v2902 = vunpack.c.l.b16 %v2313
  %v2903 = vunpack.c.h.b16 %v2313
  %v2904 = vunpack.c.l.b16 %v2314
  %v2905 = vunpack.c.h.b16 %v2314
  %v2906 = vunpack.c.l.b16 %v2315
  %v2907 = vunpack.c.l.b16 %v2316
  %v2908 = vunpack.c.h.b16 %v2316
  %v2909 = vunpack.c.l.b16 %v2317
  %v2910 = vunpack.c.h.b16 %v2317
  %v2911 = vunpack.c.l.b16 %v2318
  %v2912 = vunpack.c.h.b16 %v2318
  %v2913 = vunpack.c.l.b16 %v2319
  %v2914 = vunpack.c.l.b16 %v2320
  %v2915 = vunpack.c.h.b16 %v2320
  %v2916 = vunpack.c.l.b16 %v2321
  %v2917 = vunpack.c.h.b16 %v2321
  %v2918 = vunpack.c.l.b16 %v2322
  %v2919 = vunpack.c.h.b16 %v2322
  %v2920 = vunpack.c.l.b16 %v2323
  %v2921 = vunpack.c.l.b16 %v2324
  %v2922 = vunpack.c.h.b16 %v2324
  %v2923 = vunpack.c.l.b16 %v2325
  %v2924 = vunpack.c.h.b16 %v2325
  %v2925 = vunpack.c.l.b16 %v2326
  %v2926 = vunpack.c.h.b16 %v2326
  %v2927 = vunpack.c.l.b16 %v2327
  %v2928 = vunpack.c.l.b16 %v2328
  %v2929 = vunpack.c.h.b16 %v2328
  %v2930 = vunpack.c.l.b16 %v2329
  %v2931 = vunpack.c.h.b16 %v2329
  %v2932 = vunpack.c.l.b16 %v2330
  %v2933 = vunpack.c.h.b16 %v2330
  %v2934 = vunpack.c.l.b16 %v2331
  %v2935 = vunpack.c.l.b16 %v2332
  %v2936 = vunpack.c.h.b16 %v2332
  %v2937 = vunpack.c.l.b16 %v2333
  %v2938 = vunpack.c.h.b16 %v2333
  %v2939 = vunpack.c.l.b16 %v2334
  %v2940 = vunpack.c.h.b16 %v2334
  %v2941 = vunpack.c.l.b16 %v2335
  %v2942 = vunpack.c.l.b16 %v2336
  %v2943 = vunpack.c.h.b16 %v2336
  %v2944 = vunpack.c.l.b16 %v2337
  %v2945 = vunpack.c.h.b16 %v2337
  %v2946 = vunpack.c.l.b16 %v2338
  %v2947 = vunpack.c.h.b16 %v2338
  %v2948 = vunpack.c.l.b16 %v2339
  %v2949 = vunpack.c.l.b16 %v2340
  %v2950 = vunpack.c.h.b16 %v2340
  %v2951 = vunpack.c.l.b16 %v2341
  %v2952 = vunpack.c.h.b16 %v2341
  %v2953 = vunpack.c.l.b16 %v2342
  %v2954 = vunpack.c.h.b16 %v2342
  %v2955 = vunpack.c.l.b16 %v2343
  %v2956 = vunpack.c.l.b16 %v2344
  %v2957 = vunpack.c.h.b16 %v2344
  %v2958 = vunpack.c.l.b16 %v2345
  %v2959 = vunpack.c.h.b16 %v2345
  %v2960 = vunpack.c.l.b16 %v2346
  %v2961 = vunpack.c.h.b16 %v2346
  %v2962 = vunpack.c.l.b16 %v2347
  %v2963 = vunpack.c.l.b16 %v2348
  %v2964 = vunpack.c.h.b16 %v2348
  %v2965 = vunpack.c.l.b16 %v2349
  %v2966 = vunpack.c.h.b16 %v2349
  %v2967 = vunpack.c.l.b16 %v2350
  %v2968 = vunpack.c.h.b16 %v2350
  %v2969 = vunpack.c.l.b16 %v2351
  %v2970 = vunpack.c.l.b16 %v2352
  %v2971 = vunpack.c.h.b16 %v2352
  %v2972 = vunpack.c.l.b16 %v2353
  %v2973 = vunpack.c.h.b16 %v2353
  %v2974 = vunpack.c.l.b16 %v2354
  %v2975 = vunpack.c.h.b16 %v2354
  %v2976 = vunpack.c.l.b16 %v2355
  %v2977 = vunpack.c.l.b16 %v2356
  %v2978 = vunpack.c.h.b16 %v2356
  %v2979 = vunpack.c.l.b16 %v2357
  %v2980 = vunpack.c.h.b16 %v2357
  %v2981 = vunpack.c.l.b16 %v2358
  %v2982 = vunpack.c.h.b16 %v2358
  %v2983 = vunpack.c.l.b16 %v2359
  %v2984 = vunpack.c.l.b16 %v2360
  %v2985 = vunpack.c.h.b16 %v2360
  %v2986 = vunpack.c.l.b16 %v2361
  %v2987 = vunpack.c.h.b16 %v2361
  %v2988 = vunpack.c.l.b16 %v2362
  %v2989 = vunpack.c.h.b16 %v2362
  %v2990 = vunpack.c.l.b16 %v2363
  %v2991 = vunpack.c.l.b16 %v2364
  %v2992 = vunpack.c.h.b16 %v2364
  %v2993 = vunpack.c.l.b16 %v2365
  %v2994 = vunpack.c.h.b16 %v2365
  %v2995 = vunpack.c.l.b16 %v2366
  %v2996 = vunpack.c.h.b16 %v2366
  %v2997 = vunpack.c.l.b16 %v2367
  %v2998 = vunpack.c.l.b16 %v2368
  %v2999 = vunpack.c.h.b16 %v2368
  %v3000 = vunpack.c.l.b16 %v2369
  %v3001 = vunpack.c.h.b16 %v2369
  %v3002 = vunpack.c.l.b16 %v2370
  %v3003 = vunpack.c.h.b16 %v2370
  %v3004 = vunpack.c.l.b16 %v2371
  %v3005 = vunpack.c.l.b16 %v2372
  %v3006 = vunpack.c.h.b16 %v2372
  %v3007 = vunpack.c.l.b16 %v2373
  %v3008 = vunpack.c.h.b16 %v2373
  %v3009 = vunpack.c.l.b16 %v2374
  %v3010 = vunpack.c.h.b16 %v2374
  %v3011 = vunpack.c.l.b16 %v2375
  %v3012 = vunpack.c.l.b16 %v2376
  %v3013 = vunpack.c.h.b16 %v2376
  %v3014 = vunpack.c.l.b16 %v2377
  %v3015 = vunpack.c.h.b16 %v2377
  %v3016 = vunpack.c.l.b16 %v2378
  %v3017 = vunpack.c.h.b16 %v2378
  %v3018 = vunpack.c.l.b16 %v2379
  %v3019 = vunpack.c.l.b16 %v2380
  %v3020 = vunpack.c.h.b16 %v2380
  %v3021 = vunpack.c.l.b16 %v2381
  %v3022 = vunpack.c.h.b16 %v2381
  %v3023 = vunpack.c.l.b16 %v2382
  %v3024 = vunpack.c.h.b16 %v2382
  %v3025 = vunpack.c.l.b16 %v2383
  %v3026 = vunpack.c.l.b16 %v2384
  %v3027 = vunpack.c.h.b16 %v2384
  %v3028 = vunpack.c.l.b16 %v2385
  %v3029 = vunpack.c.h.b16 %v2385
  %v3030 = vunpack.c.l.b16 %v2386
  %v3031 = vunpack.c.h.b16 %v2386
  %v3032 = vunpack.c.l.b16 %v2387
  %v3033 = vunpack.c.l.b16 %v2388
  %v3034 = vunpack.c.h.b16 %v2388
  %v3035 = vunpack.c.l.b16 %v2389
  %v3036 = vunpack.c.h.b16 %v2389
  %v3037 = vunpack.c.l.b16 %v2390
  %v3038 = vunpack.c.h.b16 %v2390
  %v3039 = vunpack.c.l.b16 %v2391
  %v3040 = vunpack.c.l.b16 %v2392
  %v3041 = vunpack.c.h.b16 %v2392
  %v3042 = vunpack.c.l.b16 %v2393
  %v3043 = vunpack.c.h.b16 %v2393
  %v3044 = vunpack.c.l.b16 %v2394
  %v3045 = vunpack.c.h.b16 %v2394
  %v3046 = vunpack.c.l.b16 %v2395
  %v3047 = vunpack.c.l.b16 %v2396
  %v3048 = vunpack.c.h.b16 %v2396
  %v3049 = vunpack.c.l.b16 %v2397
  %v3050 = vunpack.c.h.b16 %v2397
  %v3051 = vunpack.c.l.b16 %v2398
  %v3052 = vunpack.c.h.b16 %v2398
  %v3053 = vunpack.c.l.b16 %v2399
  %v3054 = vunpack.c.l.b16 %v2400
  %v3055 = vunpack.c.h.b16 %v2400
  %v3056 = vunpack.c.l.b16 %v2401
  %v3057 = vunpack.c.h.b16 %v2401
  %v3058 = vunpack.c.l.b16 %v2402
  %v3059 = vunpack.c.h.b16 %v2402
  %v3060 = vunpack.c.l.b16 %v2403
  %v3061 = vunpack.c.l.b16 %v2404
  %v3062 = vunpack.c.h.b16 %v2404
  %v3063 = vunpack.c.l.b16 %v2405
  %v3064 = vunpack.c.h.b16 %v2405
  %v3065 = vunpack.c.l.b16 %v2406
  %v3066 = vunpack.c.h.b16 %v2406
  %v3067 = vunpack.c.l.b16 %v2407
  %v3068 = vunpack.c.l.b16 %v2408
  %v3069 = vunpack.c.h.b16 %v2408
  %v3070 = vunpack.c.l.b16 %v2409
  %v3071 = vunpack.c.h.b16 %v2409
  %v3072 = vunpack.c.l.b16 %v2410
  %v3073 = vunpack.c.h.b16 %v2410
  %v3074 = vunpack.c.l.b16 %v2411
  %v3075 = vunpack.c.l.b16 %v2412
  %v3076 = vunpack.c.h.b16 %v2412
  %v3077 = vunpack.c.l.b16 %v2413
  %v3078 = vunpack.c.h.b16 %v2413
  %v3079 = vunpack.c.l.b16 %v2414
  %v3080 = vunpack.c.h.b16 %v2414
  %v3081 = vunpack.c.l.b16 %v2415
  %v3082 = vunpack.c.l.b16 %v2416
  %v3083 = vunpack.c.h.b16 %v2416
  %v3084 = vunpack.c.l.b16 %v2417
  %v3085 = vunpack.c.h.b16 %v2417
  %v3086 = vunpack.c.l.b16 %v2418
  %v3087 = vunpack.c.h.b16 %v2418
  %v3088 = vunpack.c.l.b16 %v2419
  %v3089 = vunpack.c.l.b16 %v2420
  %v3090 = vunpack.c.h.b16 %v2420
  %v3091 = vunpack.c.l.b16 %v2421
  %v3092 = vunpack.c.h.b16 %v2421
  %v3093 = vunpack.c.l.b16 %v2422
  %v3094 = vunpack.c.h.b16 %v2422
  %v3095 = vunpack.c.l.b16 %v2423
  %v3096 = vunpack.c.l.b16 %v2424
  %v3097 = vunpack.c.h.b16 %v2424
  %v3098 = vunpack.c.l.b16 %v2425
  %v3099 = vunpack.c.h.b16 %v2425
  %v3100 = vunpack.c.l.b16 %v2426
  %v3101 = vunpack.c.h.b16 %v2426
  %v3102 = vunpack.c.l.b16 %v2427
  %v3103 = vunpack.c.l.b16 %v2428
  %v3104 = vunpack.c.h.b16 %v2428
  %v3105 = vunpack.c.l.b16 %v2429
  %v3106 = vunpack.c.h.b16 %v2429
  %v3107 = vunpack.c.l.b16 %v2430
  %v3108 = vunpack.c.h.b16 %v2430
  %v3109 = vunpack.c.l.b16 %v2431
  %v3110 = vunpack.c.l.b16 %v2432
  %v3111 = vunpack.c.h.b16 %v2432
  %v3112 = vunpack.c.l.b16 %v2433
  %v3113 = vunpack.c.h.b16 %v2433
  %v3114 = vunpack.c.l.b16 %v2434
  %v3115 = vunpack.c.h.b16 %v2434
  %v3116 = vunpack.c.l.b16 %v2435
  %v3117 = vunpack.c.l.b16 %v2436
  %v3118 = vunpack.c.h.b16 %v2436
  %v3119 = vunpack.c.l.b16 %v2437
  %v3120 = vunpack.c.h.b16 %v2437
  %v3121 = vunpack.c.l.b16 %v2438
  %v3122 = vunpack.c.h.b16 %v2438
  %v3123 = vunpack.c.l.b16 %v2439
  %v3124 = vunpack.c.l.b16 %v2440
  %v3125 = vunpack.c.h.b16 %v2440
  %v3126 = vunpack.c.l.b16 %v2441
  %v3127 = vunpack.c.h.b16 %v2441
  %v3128 = vunpack.c.l.b16 %v2442
  %v3129 = vunpack.c.h.b16 %v2442
  %v3130 = vunpack.c.l.b16 %v2443
  %v3131 = vunpack.c.l.b16 %v2444
  %v3132 = vunpack.c.h.b16 %v2444
  %v3133 = vunpack.c.l.b16 %v2445
  %v3134 = vunpack.c.h.b16 %v2445
  %v3135 = vunpack.c.l.b16 %v2446
  %v3136 = vunpack.c.h.b16 %v2446
  %v3137 = vunpack.c.l.b16 %v2447
  %v3138 = vunpack.c.l.b16 %v2448
  %v3139 = vunpack.c.h.b16 %v2448
  %v3140 = vunpack.c.l.b16 %v2449
  %v3141 = vunpack.c.h.b16 %v2449
  %v3142 = vunpack.c.l.b16 %v2450
  %v3143 = vunpack.c.h.b16 %v2450
  %v3144 = vunpack.c.l.b16 %v2451
  %v3145 = vunpack.c.l.b16 %v2452
  %v3146 = vunpack.c.h.b16 %v2452
  %v3147 = vunpack.c.l.b16 %v2453
  %v3148 = vunpack.c.h.b16 %v2453
  %v3149 = vunpack.c.l.b16 %v2454
  %v3150 = vunpack.c.h.b16 %v2454
  %v3151 = vunpack.c.l.b16 %v2455
  %v3152 = vunpack.c.l.b16 %v2456
  %v3153 = vunpack.c.h.b16 %v2456
  %v3154 = vunpack.c.l.b16 %v2457
  %v3155 = vunpack.c.h.b16 %v2457
  %v3156 = vunpack.c.l.b16 %v2458
  %v3157 = vunpack.c.h.b16 %v2458
  %v3158 = vunpack.c.l.b16 %v2459
  %v3159 = vunpack.c.l.b16 %v2460
  %v3160 = vunpack.c.h.b16 %v2460
  %v3161 = vunpack.c.l.b16 %v2461
  %v3162 = vunpack.c.h.b16 %v2461
  %v3163 = vunpack.c.l.b16 %v2462
  %v3164 = vunpack.c.h.b16 %v2462
  %v3165 = vunpack.c.l.b16 %v2463
  %v3166 = vunpack.c.l.b16 %v2464
  %v3167 = vunpack.c.h.b16 %v2464
  %v3168 = vunpack.c.l.b16 %v2465
  %v3169 = vunpack.c.h.b16 %v2465
  %v3170 = vunpack.c.l.b16 %v2466
  %v3171 = vunpack.c.h.b16 %v2466
  %v3172 = vunpack.c.l.b16 %v2467
  %v3173 = vunpack.c.l.b16 %v2468
  %v3174 = vunpack.c.h.b16 %v2468
  %v3175 = vunpack.c.l.b16 %v2469
  %v3176 = vunpack.c.h.b16 %v2469
  %v3177 = vunpack.c.l.b16 %v2470
  %v3178 = vunpack.c.h.b16 %v2470
  %v3179 = vunpack.c.l.b16 %v2471
  %v3180 = vunpack.c.l.b16 %v2472
  %v3181 = vunpack.c.h.b16 %v2472
  %v3182 = vunpack.c.l.b16 %v2473
  %v3183 = vunpack.c.h.b16 %v2473
  %v3184 = vunpack.c.l.b16 %v2474
  %v3185 = vunpack.c.h.b16 %v2474
  %v3186 = vunpack.c.l.b16 %v2475
  %v3187 = vunpack.c.l.b16 %v2476
  %v3188 = vunpack.c.h.b16 %v2476
  %v3189 = vunpack.c.l.b16 %v2477
  %v3190 = vunpack.c.h.b16 %v2477
  %v3191 = vunpack.c.l.b16 %v2478
  %v3192 = vunpack.c.h.b16 %v2478
  %v3193 = vunpack.c.l.b16 %v2479
  %v3194 = vunpack.c.l.b16 %v2480
  %v3195 = vunpack.c.h.b16 %v2480
  %v3196 = vunpack.c.l.b16 %v2481
  %v3197 = vunpack.c.h.b16 %v2481
  %v3198 = vunpack.c.l.b16 %v2482
  %v3199 = vunpack.c.h.b16 %v2482
  %v3200 = vunpack.c.l.b16 %v2483
  %v3201 = vunpack.c.l.b16 %v2484
  %v3202 = vunpack.c.h.b16 %v2484
  %v3203 = vunpack.c.l.b16 %v2485
  %v3204 = vunpack.c.h.b16 %v2485
  %v3205 = vunpack.c.l.b16 %v2486
  %v3206 = vunpack.c.h.b16 %v2486
  %v3207 = vunpack.c.l.b16 %v2487
  %v3208 = vunpack.c.l.b16 %v2488
  %v3209 = vunpack.c.h.b16 %v2488
  %v3210 = vunpack.c.l.b16 %v2489
  %v3211 = vunpack.c.h.b16 %v2489
  %v3212 = vunpack.c.l.b16 %v2490
  %v3213 = vunpack.c.h.b16 %v2490
  %v3214 = vunpack.c.l.b16 %v2491
  %v3215 = vunpack.c.l.b16 %v2492
  %v3216 = vunpack.c.h.b16 %v2492
  %v3217 = vunpack.c.l.b16 %v2493
  %v3218 = vunpack.c.h.b16 %v2493
  %v3219 = vunpack.c.l.b16 %v2494
  %v3220 = vunpack.c.h.b16 %v2494
  %v3221 = vunpack.c.l.b16 %v2495
  %v3222 = vunpack.c.l.b16 %v2496
  %v3223 = vunpack.c.h.b16 %v2496
  %v3224 = vunpack.c.l.b16 %v2497
  %v3225 = vunpack.c.h.b16 %v2497
  %v3226 = vunpack.c.l.b16 %v2498
  %v3227 = vunpack.c.h.b16 %v2498
  %v3228 = vunpack.c.l.b16 %v2499
  %v3229 = vunpack.c.l.b16 %v2500
  %v3230 = vunpack.c.h.b16 %v2500
  %v3231 = vunpack.c.l.b16 %v2501
  %v3232 = vunpack.c.h.b16 %v2501
  %v3233 = vunpack.c.l.b16 %v2502
  %v3234 = vunpack.c.h.b16 %v2502
  %v3235 = vunpack.c.l.b16 %v2503
  %v3236 = vunpack.c.l.b16 %v2504
  %v3237 = vunpack.c.h.b16 %v2504
  %v3238 = vunpack.c.l.b16 %v2505
  %v3239 = vunpack.c.h.b16 %v2505
  %v3240 = vunpack.c.l.b16 %v2506
  %v3241 = vunpack.c.h.b16 %v2506
  %v3242 = vunpack.c.l.b16 %v2507
  %v3243 = vunpack.c.l.b16 %v2508
  %v3244 = vunpack.c.h.b16 %v2508
  %v3245 = vunpack.c.l.b16 %v2509
  %v3246 = vunpack.c.h.b16 %v2509
  %v3247 = vunpack.c.l.b16 %v2510
  %v3248 = vunpack.c.h.b16 %v2510
  %v3249 = vunpack.c.l.b16 %v2511
  %v3250 = vunpack.c.l.b16 %v2512
  %v3251 = vunpack.c.h.b16 %v2512
  %v3252 = vunpack.c.l.b16 %v2513
  %v3253 = vunpack.c.h.b16 %v2513
  %v3254 = vunpack.c.l.b16 %v2514
  %v3255 = vunpack.c.h.b16 %v2514
  %v3256 = vunpack.c.l.b16 %v2515
  %v3257 = vpack.c.b16 %v2816, %v2809
  %v3258 = vpack.c.b16 %v2817, %v2810
  %v3259 = vpack.c.b16 %v2818, %v2811
  %v3260 = vpack.c.b16 %v2819, %v2812
  %v3261 = vpack.c.b16 %v2820, %v2813
  %v3262 = vpack.c.b16 %v2821, %v2814
  %v3263 = vpack.c.b16 %v2822, %v2815
  %v3264 = vpack.c.b16 %v2830, %v2823
  %v3265 = vpack.c.b16 %v2831, %v2824
  %v3266 = vpack.c.b16 %v2832, %v2825
  %v3267 = vpack.c.b16 %v2833, %v2826
  %v3268 = vpack.c.b16 %v2834, %v2827
  %v3269 = vpack.c.b16 %v2835, %v2828
  %v3270 = vpack.c.b16 %v2836, %v2829
  %v3271 = vpack.c.b16 %v2844, %v2837
  %v3272 = vpack.c.b16 %v2845, %v2838
  %v3273 = vpack.c.b16 %v2846, %v2839
  %v3274 = vpack.c.b16 %v2847, %v2840
  %v3275 = vpack.c.b16 %v2848, %v2841
  %v3276 = vpack.c.b16 %v2849, %v2842
  %v3277 = vpack.c.b16 %v2850, %v2843
  %v3278 = vpack.c.b16 %v2858, %v2851
  %v3279 = vpack.c.b16 %v2859, %v2852
  %v3280 = vpack.c.b16 %v2860, %v2853
  %v3281 = vpack.c.b16 %v2861, %v2854
  %v3282 = vpack.c.b16 %v2862, %v2855
  %v3283 = vpack.c.b16 %v2863, %v2856
  %v3284 = vpack.c.b16 %v2864, %v2857
  %v3285 = vpack.c.b16 %v2872, %v2865
  %v3286 = vpack.c.b16 %v2873, %v2866
  %v3287 = vpack.c.b16 %v2874, %v2867
  %v3288 = vpack.c.b16 %v2875, %v2868
  %v3289 = vpack.c.b16 %v2876, %v2869
  %v3290 = vpack.c.b16 %v2877, %v2870
  %v3291 = vpack.c.b16 %v2878, %v2871
  %v3292 = vpack.c.b16 %v2886, %v2879
  %v3293 = vpack.c.b16 %v2887, %v2880
  %v3294 = vpack.c.b16 %v2888, %v2881
  %v3295 = vpack.c.b16 %v2889, %v2882
  %v3296 = vpack.c.b16 %v2890, %v2883
  %v3297 = vpack.c.b16 %v2891, %v2884
  %v3298 = vpack.c.b16 %v2892, %v2885
  %v3299 = vpack.c.b16 %v2900, %v2893
  %v3300 = vpack.c.b16 %v2901, %v2894
  %v3301 = vpack.c.b16 %v2902, %v2895
  %v3302 = vpack.c.b16 %v2903, %v2896
  %v3303 = vpack.c.b16 %v2904, %v2897
  %v3304 = vpack.c.b16 %v2905, %v2898
  %v3305 = vpack.c.b16 %v2906, %v2899
  %v3306 = vpack.c.b16 %v2914, %v2907
  %v3307 = vpack.c.b16 %v2915, %v2908
  %v3308 = vpack.c.b16 %v2916, %v2909
  %v3309 = vpack.c.b16 %v2917, %v2910
  %v3310 = vpack.c.b16 %v2918, %v2911
  %v3311 = vpack.c.b16 %v2919, %v2912
  %v3312 = vpack.c.b16 %v2920, %v2913
  %v3313 = vpack.c.b16 %v2928, %v2921
  %v3314 = vpack.c.b16 %v2929, %v2922
  %v3315 = vpack.c.b16 %v2930, %v2923
  %v3316 = vpack.c.b16 %v2931, %v2924
  %v3317 = vpack.c.b16 %v2932, %v2925
  %v3318 = vpack.c.b16 %v2933, %v2926
  %v3319 = vpack.c.b16 %v2934, %v2927
  %v3320 = vpack.c.b16 %v2942, %v2935
  %v3321 = vpack.c.b16 %v2943, %v2936
  %v3322 = vpack.c.b16 %v2944, %v2937
  %v3323 = vpack.c.b16 %v2945, %v2938
  %v3324 = vpack.c.b16 %v2946, %v2939
  %v3325 = vpack.c.b16 %v2947, %v2940
  %v3326 = vpack.c.b16 %v2948, %v2941
  %v3327 = vpack.c.b16 %v2956, %v2949
  %v3328 = vpack.c.b16 %v2957, %v2950
  %v3329 = vpack.c.b16 %v2958, %v2951
  %v3330 = vpack.c.b16 %v2959, %v2952
  %v3331 = vpack.c.b16 %v2960, %v2953
  %v3332 = vpack.c.b16 %v2961, %v2954
  %v3333 = vpack.c.b16 %v2962, %v2955
  %v3334 = vpack.c.b16 %v2970, %v2963
  %v3335 = vpack.c.b16 %v2971, %v2964
  %v3336 = vpack.c.b16 %v2972, %v2965
  %v3337 = vpack.c.b16 %v2973, %v2966
  %v3338 = vpack.c.b16 %v2974, %v2967
  %v3339 = vpack.c.b16 %v2975, %v2968
  %v3340 = vpack.c.b16 %v2976, %v2969
  %v3341 = vpack.c.b16 %v2984, %v2977
  %v3342 = vpack.c.b16 %v2985, %v2978
  %v3343 = vpack.c.b16 %v2986, %v2979
  %v3344 = vpack.c.b16 %v2987, %v2980
  %v3345 = vpack.c.b16 %v2988, %v2981
  %v3346 = vpack.c.b16 %v2989, %v2982
  %v3347 = vpack.c.b16 %v2990, %v2983
  %v3348 = vpack.c.b16 %v2998, %v2991
  %v3349 = vpack.c.b16 %v2999, %v2992
  %v3350 = vpack.c.b16 %v3000, %v2993
  %v3351 = vpack.c.b16 %v3001, %v2994
  %v3352 = vpack.c.b16 %v3002, %v2995
  %v3353 = vpack.c.b16 %v3003, %v2996
  %v3354 = vpack.c.b16 %v3004, %v2997
  %v3355 = vpack.c.b16 %v3012, %v3005
  %v3356 = vpack.c.b16 %v3013, %v3006
  %v3357 = vpack.c.b16 %v3014, %v3007
  %v3358 = vpack.c.b16 %v3015, %v3008
  %v3359 = vpack.c.b16 %v3016, %v3009
  %v3360 = vpack.c.b16 %v3017, %v3010
  %v3361 = vpack.c.b16 %v3018, %v3011
  %v3362 = vpack.c.b16 %v3026, %v3019
  %v3363 = vpack.c.b16 %v3027, %v3020
  %v3364 = vpack.c.b16 %v3028, %v3021
  %v3365 = vpack.c.b16 %v3029, %v3022
  %v3366 = vpack.c.b16 %v3030, %v3023
  %v3367 = vpack.c.b16 %v3031, %v3024
  %v3368 = vpack.c.b16 %v3032, %v3025
  %v3369 = vpack.c.b16 %v3040, %v3033
  %v3370 = vpack.c.b16 %v3041, %v3034
  %v3371 = vpack.c.b16 %v3042, %v3035
  %v3372 = vpack.c.b16 %v3043, %v3036
  %v3373 = vpack.c.b16 %v3044, %v3037
  %v3374 = vpack.c.b16 %v3045, %v3038
  %v3375 = vpack.c.b16 %v3046, %v3039
  %v3376 = vpack.c.b16 %v3054, %v3047
  %v3377 = vpack.c.b16 %v3055, %v3048
  %v3378 = vpack.c.b16 %v3056, %v3049
  %v3379 = vpack.c.b16 %v3057, %v3050
  %v3380 = vpack.c.b16 %v3058, %v3051
  %v3381 = vpack.c.b16 %v3059, %v3052
  %v3382 = vpack.c.b16 %v3060, %v3053
  %v3383 = vpack.c.b16 %v3068, %v3061
  %v3384 = vpack.c.b16 %v3069, %v3062
  %v3385 = vpack.c.b16 %v3070, %v3063
  %v3386 = vpack.c.b16 %v3071, %v3064
  %v3387 = vpack.c.b16 %v3072, %v3065
  %v3388 = vpack.c.b16 %v3073, %v3066
  %v3389 = vpack.c.b16 %v3074, %v3067
  %v3390 = vpack.c.b16 %v3082, %v3075
  %v3391 = vpack.c.b16 %v3083, %v3076
  %v3392 = vpack.c.b16 %v3084, %v3077
  %v3393 = vpack.c.b16 %v3085, %v3078
  %v3394 = vpack.c.b16 %v3086, %v3079
  %v3395 = vpack.c.b16 %v3087, %v3080
  %v3396 = vpack.c.b16 %v3088, %v3081
  %v3397 = vpack.c.b16 %v3096, %v3089
  %v3398 = vpack.c.b16 %v3097, %v3090
  %v3399 = vpack.c.b16 %v3098, %v3091
  %v3400 = vpack.c.b16 %v3099, %v3092
  %v3401 = vpack.c.b16 %v3100, %v3093
  %v3402 = vpack.c.b16 %v3101, %v3094
  %v3403 = vpack.c.b16 %v3102, %v3095
  %v3404 = vpack.c.b16 %v3110, %v3103
  %v3405 = vpack.c.b16 %v3111, %v3104
  %v3406 = vpack.c.b16 %v3112, %v3105
  %v3407 = vpack.c.b16 %v3113, %v3106
  %v3408 = vpack.c.b16 %v3114, %v3107
  %v3409 = vpack.c.b16 %v3115, %v3108
  %v3410 = vpack.c.b16 %v3116, %v3109
  %v3411 = vpack.c.b16 %v3124, %v3117
  %v3412 = vpack.c.b16 %v3125, %v3118
  %v3413 = vpack.c.b16 %v3126, %v3119
  %v3414 = vpack.c.b16 %v3127, %v3120
  %v3415 = vpack.c.b16 %v3128, %v3121
  %v3416 = vpack.c.b16 %v3129, %v3122
  %v3417 = vpack.c.b16 %v3130, %v3123
  %v3418 = vpack.c.b16 %v3138, %v3131
  %v3419 = vpack.c.b16 %v3139, %v3132
  %v3420 = vpack.c.b16 %v3140, %v3133
  %v3421 = vpack.c.b16 %v3141, %v3134
  %v3422 = vpack.c.b16 %v3142, %v3135
  %v3423 = vpack.c.b16 %v3143, %v3136
  %v3424 = vpack.c.b16 %v3144, %v3137
  %v3425 = vpack.c.b16 %v3152, %v3145
  %v3426 = vpack.c.b16 %v3153, %v3146
  %v3427 = vpack.c.b16 %v3154, %v3147
  %v3428 = vpack.c.b16 %v3155, %v3148
  %v3429 = vpack.c.b16 %v3156, %v3149
  %v3430 = vpack.c.b16 %v3157, %v3150
  %v3431 = vpack.c.b16 %v3158, %v3151
  %v3432 = vpack.c.b16 %v3166, %v3159
  %v3433 = vpack.c.b16 %v3167, %v3160
  %v3434 = vpack.c.b16 %v3168, %v3161
  %v3435 = vpack.c.b16 %v3169, %v3162
  %v3436 = vpack.c.b16 %v3170, %v3163
  %v3437 = vpack.c.b16 %v3171, %v3164
  %v3438 = vpack.c.b16 %v3172, %v3165
  %v3439 = vpack.c.b16 %v3180, %v3173
  %v3440 = vpack.c.b16 %v3181, %v3174
  %v3441 = vpack.c.b16 %v3182, %v3175
  %v3442 = vpack.c.b16 %v3183, %v3176
  %v3443 = vpack.c.b16 %v3184, %v3177
  %v3444 = vpack.c.b16 %v3185, %v3178
  %v3445 = vpack.c.b16 %v3186, %v3179
  %v3446 = vpack.c.b16 %v3194, %v3187
  %v3447 = vpack.c.b16 %v3195, %v3188
  %v3448 = vpack.c.b16 %v3196, %v3189
  %v3449 = vpack.c.b16 %v3197, %v3190
  %v3450 = vpack.c.b16 %v3198, %v3191
  %v3451 = vpack.c.b16 %v3199, %v3192
  %v3452 = vpack.c.b16 %v3200, %v3193
  %v3453 = vpack.c.b16 %v3208, %v3201
  %v3454 = vpack.c.b16 %v3209, %v3202
  %v3455 = vpack.c.b16 %v3210, %v3203
  %v3456 = vpack.c.b16 %v3211, %v3204
  %v3457 = vpack.c.b16 %v3212, %v3205
  %v3458 = vpack.c.b16 %v3213, %v3206
  %v3459 = vpack.c.b16 %v3214, %v3207
  %v3460 = vpack.c.b16 %v3222, %v3215
  %v3461 = vpack.c.b16 %v3223, %v3216
  %v3462 = vpack.c.b16 %v3224, %v3217
  %v3463 = vpack.c.b16 %v3225, %v3218
  %v3464 = vpack.c.b16 %v3226, %v3219
  %v3465 = vpack.c.b16 %v3227, %v3220
  %v3466 = vpack.c.b16 %v3228, %v3221
  %v3467 = vpack.c.b16 %v3236, %v3229
  %v3468 = vpack.c.b16 %v3237, %v3230
  %v3469 = vpack.c.b16 %v3238, %v3231
  %v3470 = vpack.c.b16 %v3239, %v3232
  %v3471 = vpack.c.b16 %v3240, %v3233
  %v3472 = vpack.c.b16 %v3241, %v3234
  %v3473 = vpack.c.b16 %v3242, %v3235
  %v3474 = vpack.c.b16 %v3250, %v3243
  %v3475 = vpack.c.b16 %v3251, %v3244
  %v3476 = vpack.c.b16 %v3252, %v3245
  %v3477 = vpack.c.b16 %v3253, %v3246
  %v3478 = vpack.c.b16 %v3254, %v3247
  %v3479 = vpack.c.b16 %v3255, %v3248
  %v3480 = vpack.c.b16 %v3256, %v3249
  %3705 = vmatprep.subr.bf16.mxu0 %v3258
  %3706 = vmatpush1.bf16.msra.mxu0 %v3257
  %3707 = vmatprep.subr.bf16.mxu0 %v3265
  %3708 = vmatpush1.bf16.msra.mxu0 %v3264
  %3709 = vmatprep.subr.bf16.mxu0 %v3272
  %3710 = vmatpush1.bf16.msra.mxu0 %v3271
  %3711 = vmatprep.subr.bf16.mxu0 %v3279
  %3712 = vmatpush1.bf16.msra.mxu0 %v3278
  %3713 = vmatprep.subr.bf16.mxu0 %v3286
  %3714 = vmatpush1.bf16.msra.mxu0 %v3285
  %3715 = vmatprep.subr.bf16.mxu0 %v3293
  %3716 = vmatpush1.bf16.msra.mxu0 %v3292
  %3717 = vmatprep.subr.bf16.mxu0 %v3300
  %3718 = vmatpush1.bf16.msra.mxu0 %v3299
  %3719 = vmatprep.subr.bf16.mxu0 %v3307
  %3720 = vmatpush1.bf16.msra.mxu0 %v3306
  %3721 = vmatprep.subr.bf16.mxu0 %v3314
  %3722 = vmatpush1.bf16.msra.mxu0 %v3313
  %3723 = vmatprep.subr.bf16.mxu0 %v3321
  %3724 = vmatpush1.bf16.msra.mxu0 %v3320
  %3725 = vmatprep.subr.bf16.mxu0 %v3328
  %3726 = vmatpush1.bf16.msra.mxu0 %v3327
  %3727 = vmatprep.subr.bf16.mxu0 %v3335
  %3728 = vmatpush1.bf16.msra.mxu0 %v3334
  %3729 = vmatprep.subr.bf16.mxu0 %v3342
  %3730 = vmatpush1.bf16.msra.mxu0 %v3341
  %3731 = vmatprep.subr.bf16.mxu0 %v3349
  %3732 = vmatpush1.bf16.msra.mxu0 %v3348
  %3733 = vmatprep.subr.bf16.mxu0 %v3356
  %3734 = vmatpush1.bf16.msra.mxu0 %v3355
  %3735 = vmatprep.subr.bf16.mxu0 %v3363
  %3736 = vmatpush1.bf16.msra.mxu0 %v3362
  %3737 = vmatprep.mubr.bf16.mxu0 %v2257
  %3738 = vmatmul.mubr.bf16.gmra.mrb[0].mxu0 %v2256
  %v3739 = vpop.f32.mrb[0].mxu0
  %v3740 = vadd.f32 %v2521, %v3739
  %v3741 = vpop.f32.mrb[0].mxu0
  %v3742 = vadd.f32 %v2525, %v3741
  %v3743 = vpop.f32.mrb[0].mxu0
  %v3744 = vadd.f32 %v2521, %v3743
  %v3745 = vpop.f32.mrb[0].mxu0
  %v3746 = vadd.f32 %v2525, %v3745
  %3747 = vdwg.mxu0
  %3748 = vmatprep.subr.bf16.mxu0 %v3370
  %3749 = vmatpush1.bf16.msra.mxu0 %v3369
  %3750 = vmatprep.subr.bf16.mxu0 %v3377
  %3751 = vmatpush1.bf16.msra.mxu0 %v3376
  %3752 = vmatprep.subr.bf16.mxu0 %v3384
  %3753 = vmatpush1.bf16.msra.mxu0 %v3383
  %3754 = vmatprep.subr.bf16.mxu0 %v3391
  %3755 = vmatpush1.bf16.msra.mxu0 %v3390
  %3756 = vmatprep.subr.bf16.mxu0 %v3398
  %3757 = vmatpush1.bf16.msra.mxu0 %v3397
  %3758 = vmatprep.subr.bf16.mxu0 %v3405
  %3759 = vmatpush1.bf16.msra.mxu0 %v3404
  %3760 = vmatprep.subr.bf16.mxu0 %v3412
  %3761 = vmatpush1.bf16.msra.mxu0 %v3411
  %3762 = vmatprep.subr.bf16.mxu0 %v3419
  %3763 = vmatpush1.bf16.msra.mxu0 %v3418
  %3764 = vmatprep.subr.bf16.mxu0 %v3426
  %3765 = vmatpush1.bf16.msra.mxu0 %v3425
  %3766 = vmatprep.subr.bf16.mxu0 %v3433
  %3767 = vmatpush1.bf16.msra.mxu0 %v3432
  %3768 = vmatprep.subr.bf16.mxu0 %v3440
  %3769 = vmatpush1.bf16.msra.mxu0 %v3439
  %3770 = vmatprep.subr.bf16.mxu0 %v3447
  %3771 = vmatpush1.bf16.msra.mxu0 %v3446
  %3772 = vmatprep.subr.bf16.mxu0 %v3454
  %3773 = vmatpush1.bf16.msra.mxu0 %v3453
  %3774 = vmatprep.subr.bf16.mxu0 %v3461
  %3775 = vmatpush1.bf16.msra.mxu0 %v3460
  %3776 = vmatprep.subr.bf16.mxu0 %v3468
  %3777 = vmatpush1.bf16.msra.mxu0 %v3467
  %3778 = vmatprep.subr.bf16.mxu0 %v3475
  %3779 = vmatpush1.bf16.msra.mxu0 %v3474
  %3780 = vmatprep.mubr.bf16.mxu0 %v2259
  %3781 = vmatmul.mubr.bf16.gmra.mrb[0].mxu0 %v2258
  %v3782 = vpop.f32.mrb[0].mxu0
  %v3783 = vadd.f32 %v3740, %v3782
  %v3784 = vpop.f32.mrb[0].mxu0
  %v3785 = vadd.f32 %v3742, %v3784
  %v3786 = vpop.f32.mrb[0].mxu0
  %v3787 = vadd.f32 %v3744, %v3786
  %v3788 = vpop.f32.mrb[0].mxu0
  %v3789 = vadd.f32 %v3746, %v3788
  %3790 = vdwg.mxu0
  %3791 = vmatprep.subr.bf16.mxu0 %v3260
  %3792 = vmatpush1.bf16.msra.mxu0 %v3259
  %3793 = vmatprep.subr.bf16.mxu0 %v3267
  %3794 = vmatpush1.bf16.msra.mxu0 %v3266
  %3795 = vmatprep.subr.bf16.mxu0 %v3274
  %3796 = vmatpush1.bf16.msra.mxu0 %v3273
  %3797 = vmatprep.subr.bf16.mxu0 %v3281
  %3798 = vmatpush1.bf16.msra.mxu0 %v3280
  %3799 = vmatprep.subr.bf16.mxu0 %v3288
  %3800 = vmatpush1.bf16.msra.mxu0 %v3287
  %3801 = vmatprep.subr.bf16.mxu0 %v3295
  %3802 = vmatpush1.bf16.msra.mxu0 %v3294
  %3803 = vmatprep.subr.bf16.mxu0 %v3302
  %3804 = vmatpush1.bf16.msra.mxu0 %v3301
  %3805 = vmatprep.subr.bf16.mxu0 %v3309
  %3806 = vmatpush1.bf16.msra.mxu0 %v3308
  %3807 = vmatprep.subr.bf16.mxu0 %v3316
  %3808 = vmatpush1.bf16.msra.mxu0 %v3315
  %3809 = vmatprep.subr.bf16.mxu0 %v3323
  %3810 = vmatpush1.bf16.msra.mxu0 %v3322
  %3811 = vmatprep.subr.bf16.mxu0 %v3330
  %3812 = vmatpush1.bf16.msra.mxu0 %v3329
  %3813 = vmatprep.subr.bf16.mxu0 %v3337
  %3814 = vmatpush1.bf16.msra.mxu0 %v3336
  %3815 = vmatprep.subr.bf16.mxu0 %v3344
  %3816 = vmatpush1.bf16.msra.mxu0 %v3343
  %3817 = vmatprep.subr.bf16.mxu0 %v3351
  %3818 = vmatpush1.bf16.msra.mxu0 %v3350
  %3819 = vmatprep.subr.bf16.mxu0 %v3358
  %3820 = vmatpush1.bf16.msra.mxu0 %v3357
  %3821 = vmatprep.subr.bf16.mxu0 %v3365
  %3822 = vmatpush1.bf16.msra.mxu0 %v3364
  %3823 = vmatprep.mubr.bf16.mxu0 %v2257
  %3824 = vmatmul.mubr.bf16.gmra.mrb[0].mxu0 %v2256
  %v3825 = vpop.f32.mrb[0].mxu0
  %v3826 = vadd.f32 %v2529, %v3825
  %v3827 = vpop.f32.mrb[0].mxu0
  %v3828 = vadd.f32 %v2533, %v3827
  %v3829 = vpop.f32.mrb[0].mxu0
  %v3830 = vadd.f32 %v2529, %v3829
  %v3831 = vpop.f32.mrb[0].mxu0
  %v3832 = vadd.f32 %v2533, %v3831
  %3833 = vdwg.mxu0
  %3834 = vmatprep.subr.bf16.mxu0 %v3372
  %3835 = vmatpush1.bf16.msra.mxu0 %v3371
  %3836 = vmatprep.subr.bf16.mxu0 %v3379
  %3837 = vmatpush1.bf16.msra.mxu0 %v3378
  %3838 = vmatprep.subr.bf16.mxu0 %v3386
  %3839 = vmatpush1.bf16.msra.mxu0 %v3385
  %3840 = vmatprep.subr.bf16.mxu0 %v3393
  %3841 = vmatpush1.bf16.msra.mxu0 %v3392
  %3842 = vmatprep.subr.bf16.mxu0 %v3400
  %3843 = vmatpush1.bf16.msra.mxu0 %v3399
  %3844 = vmatprep.subr.bf16.mxu0 %v3407
  %3845 = vmatpush1.bf16.msra.mxu0 %v3406
  %3846 = vmatprep.subr.bf16.mxu0 %v3414
  %3847 = vmatpush1.bf16.msra.mxu0 %v3413
  %3848 = vmatprep.subr.bf16.mxu0 %v3421
  %3849 = vmatpush1.bf16.msra.mxu0 %v3420
  %3850 = vmatprep.subr.bf16.mxu0 %v3428
  %3851 = vmatpush1.bf16.msra.mxu0 %v3427
  %3852 = vmatprep.subr.bf16.mxu0 %v3435
  %3853 = vmatpush1.bf16.msra.mxu0 %v3434
  %3854 = vmatprep.subr.bf16.mxu0 %v3442
  %3855 = vmatpush1.bf16.msra.mxu0 %v3441
  %3856 = vmatprep.subr.bf16.mxu0 %v3449
  %3857 = vmatpush1.bf16.msra.mxu0 %v3448
  %3858 = vmatprep.subr.bf16.mxu0 %v3456
  %3859 = vmatpush1.bf16.msra.mxu0 %v3455
  %3860 = vmatprep.subr.bf16.mxu0 %v3463
  %3861 = vmatpush1.bf16.msra.mxu0 %v3462
  %3862 = vmatprep.subr.bf16.mxu0 %v3470
  %3863 = vmatpush1.bf16.msra.mxu0 %v3469
  %3864 = vmatprep.subr.bf16.mxu0 %v3477
  %3865 = vmatpush1.bf16.msra.mxu0 %v3476
  %3866 = vmatprep.mubr.bf16.mxu0 %v2259
  %3867 = vmatmul.mubr.bf16.gmra.mrb[0].mxu0 %v2258
  %v3868 = vpop.f32.mrb[0].mxu0
  %v3869 = vadd.f32 %v3826, %v3868
  %v3870 = vpop.f32.mrb[0].mxu0
  %v3871 = vadd.f32 %v3828, %v3870
  %v3872 = vpop.f32.mrb[0].mxu0
  %v3873 = vadd.f32 %v3830, %v3872
  %v3874 = vpop.f32.mrb[0].mxu0
  %v3875 = vadd.f32 %v3832, %v3874
  %3876 = vdwg.mxu0
  %3877 = vmatprep.subr.bf16.mxu0 %v3262
  %3878 = vmatpush1.bf16.msra.mxu0 %v3261
  %3879 = vmatprep.subr.bf16.mxu0 %v3269
  %3880 = vmatpush1.bf16.msra.mxu0 %v3268
  %3881 = vmatprep.subr.bf16.mxu0 %v3276
  %3882 = vmatpush1.bf16.msra.mxu0 %v3275
  %3883 = vmatprep.subr.bf16.mxu0 %v3283
  %3884 = vmatpush1.bf16.msra.mxu0 %v3282
  %3885 = vmatprep.subr.bf16.mxu0 %v3290
  %3886 = vmatpush1.bf16.msra.mxu0 %v3289
  %3887 = vmatprep.subr.bf16.mxu0 %v3297
  %3888 = vmatpush1.bf16.msra.mxu0 %v3296
  %3889 = vmatprep.subr.bf16.mxu0 %v3304
  %3890 = vmatpush1.bf16.msra.mxu0 %v3303
  %3891 = vmatprep.subr.bf16.mxu0 %v3311
  %3892 = vmatpush1.bf16.msra.mxu0 %v3310
  %3893 = vmatprep.subr.bf16.mxu0 %v3318
  %3894 = vmatpush1.bf16.msra.mxu0 %v3317
  %3895 = vmatprep.subr.bf16.mxu0 %v3325
  %3896 = vmatpush1.bf16.msra.mxu0 %v3324
  %3897 = vmatprep.subr.bf16.mxu0 %v3332
  %3898 = vmatpush1.bf16.msra.mxu0 %v3331
  %3899 = vmatprep.subr.bf16.mxu0 %v3339
  %3900 = vmatpush1.bf16.msra.mxu0 %v3338
  %3901 = vmatprep.subr.bf16.mxu0 %v3346
  %3902 = vmatpush1.bf16.msra.mxu0 %v3345
  %3903 = vmatprep.subr.bf16.mxu0 %v3353
  %3904 = vmatpush1.bf16.msra.mxu0 %v3352
  %3905 = vmatprep.subr.bf16.mxu0 %v3360
  %3906 = vmatpush1.bf16.msra.mxu0 %v3359
  %3907 = vmatprep.subr.bf16.mxu0 %v3367
  %3908 = vmatpush1.bf16.msra.mxu0 %v3366
  %3909 = vmatprep.mubr.bf16.mxu0 %v2257
  %3910 = vmatmul.mubr.bf16.gmra.mrb[0].mxu0 %v2256
  %v3911 = vpop.f32.mrb[0].mxu0
  %v3912 = vadd.f32 %v2537, %v3911
  %v3913 = vpop.f32.mrb[0].mxu0
  %v3914 = vadd.f32 %v2541, %v3913
  %v3915 = vpop.f32.mrb[0].mxu0
  %v3916 = vadd.f32 %v2537, %v3915
  %v3917 = vpop.f32.mrb[0].mxu0
  %v3918 = vadd.f32 %v2541, %v3917
  %3919 = vdwg.mxu0
  %3920 = vmatprep.subr.bf16.mxu0 %v3374
  %3921 = vmatpush1.bf16.msra.mxu0 %v3373
  %3922 = vmatprep.subr.bf16.mxu0 %v3381
  %3923 = vmatpush1.bf16.msra.mxu0 %v3380
  %3924 = vmatprep.subr.bf16.mxu0 %v3388
  %3925 = vmatpush1.bf16.msra.mxu0 %v3387
  %3926 = vmatprep.subr.bf16.mxu0 %v3395
  %3927 = vmatpush1.bf16.msra.mxu0 %v3394
  %3928 = vmatprep.subr.bf16.mxu0 %v3402
  %3929 = vmatpush1.bf16.msra.mxu0 %v3401
  %3930 = vmatprep.subr.bf16.mxu0 %v3409
  %3931 = vmatpush1.bf16.msra.mxu0 %v3408
  %3932 = vmatprep.subr.bf16.mxu0 %v3416
  %3933 = vmatpush1.bf16.msra.mxu0 %v3415
  %3934 = vmatprep.subr.bf16.mxu0 %v3423
  %3935 = vmatpush1.bf16.msra.mxu0 %v3422
  %3936 = vmatprep.subr.bf16.mxu0 %v3430
  %3937 = vmatpush1.bf16.msra.mxu0 %v3429
  %3938 = vmatprep.subr.bf16.mxu0 %v3437
  %3939 = vmatpush1.bf16.msra.mxu0 %v3436
  %3940 = vmatprep.subr.bf16.mxu0 %v3444
  %3941 = vmatpush1.bf16.msra.mxu0 %v3443
  %3942 = vmatprep.subr.bf16.mxu0 %v3451
  %3943 = vmatpush1.bf16.msra.mxu0 %v3450
  %3944 = vmatprep.subr.bf16.mxu0 %v3458
  %3945 = vmatpush1.bf16.msra.mxu0 %v3457
  %3946 = vmatprep.subr.bf16.mxu0 %v3465
  %3947 = vmatpush1.bf16.msra.mxu0 %v3464
  %3948 = vmatprep.subr.bf16.mxu0 %v3472
  %3949 = vmatpush1.bf16.msra.mxu0 %v3471
  %3950 = vmatprep.subr.bf16.mxu0 %v3479
  %3951 = vmatpush1.bf16.msra.mxu0 %v3478
  %3952 = vmatprep.mubr.bf16.mxu0 %v2259
  %3953 = vmatmul.mubr.bf16.gmra.mrb[0].mxu0 %v2258
  %v3954 = vpop.f32.mrb[0].mxu0
  %v3955 = vadd.f32 %v3912, %v3954
  %v3956 = vpop.f32.mrb[0].mxu0
  %v3957 = vadd.f32 %v3914, %v3956
  %v3958 = vpop.f32.mrb[0].mxu0
  %v3959 = vadd.f32 %v3916, %v3958
  %v3960 = vpop.f32.mrb[0].mxu0
  %v3961 = vadd.f32 %v3918, %v3960
  %3962 = vdwg.mxu0
  %3963 = vmatprep.subr.bf16.mxu0 0
  %3964 = vmatpush1.bf16.msra.mxu0 %v3263
  %3965 = vmatprep.subr.bf16.mxu0 0
  %3966 = vmatpush1.bf16.msra.mxu0 %v3270
  %3967 = vmatprep.subr.bf16.mxu0 0
  %3968 = vmatpush1.bf16.msra.mxu0 %v3277
  %3969 = vmatprep.subr.bf16.mxu0 0
  %3970 = vmatpush1.bf16.msra.mxu0 %v3284
  %3971 = vmatprep.subr.bf16.mxu0 0
  %3972 = vmatpush1.bf16.msra.mxu0 %v3291
  %3973 = vmatprep.subr.bf16.mxu0 0
  %3974 = vmatpush1.bf16.msra.mxu0 %v3298
  %3975 = vmatprep.subr.bf16.mxu0 0
  %3976 = vmatpush1.bf16.msra.mxu0 %v3305
  %3977 = vmatprep.subr.bf16.mxu0 0
  %3978 = vmatpush1.bf16.msra.mxu0 %v3312
  %3979 = vmatprep.subr.bf16.mxu0 0
  %3980 = vmatpush1.bf16.msra.mxu0 %v3319
  %3981 = vmatprep.subr.bf16.mxu0 0
  %3982 = vmatpush1.bf16.msra.mxu0 %v3326
  %3983 = vmatprep.subr.bf16.mxu0 0
  %3984 = vmatpush1.bf16.msra.mxu0 %v3333
  %3985 = vmatprep.subr.bf16.mxu0 0
  %3986 = vmatpush1.bf16.msra.mxu0 %v3340
  %3987 = vmatprep.subr.bf16.mxu0 0
  %3988 = vmatpush1.bf16.msra.mxu0 %v3347
  %3989 = vmatprep.subr.bf16.mxu0 0
  %3990 = vmatpush1.bf16.msra.mxu0 %v3354
  %3991 = vmatprep.subr.bf16.mxu0 0
  %3992 = vmatpush1.bf16.msra.mxu0 %v3361
  %3993 = vmatprep.subr.bf16.mxu0 0
  %3994 = vmatpush1.bf16.msra.mxu0 %v3368
  %3995 = vmatprep.mubr.bf16.mxu0 %v2257
  %3996 = vmatmul.mubr.bf16.gmra.mrb[0].mxu0 %v2256
  %v3997 = vpop.f32.mrb[0].mxu0
  %v3998 = vadd.f32 %v2545, %v3997
  %v3999 = vpop.f32.mrb[0].mxu0
  %v4000 = vpop.f32.mrb[0].mxu0
  %v4001 = vadd.f32 %v2545, %v4000
  %v4002 = vpop.f32.mrb[0].mxu0
  %4003 = vdwg.mxu0
  %4004 = vmatprep.subr.bf16.mxu0 0
  %4005 = vmatpush1.bf16.msra.mxu0 %v3375
  %4006 = vmatprep.subr.bf16.mxu0 0
  %4007 = vmatpush1.bf16.msra.mxu0 %v3382
  %4008 = vmatprep.subr.bf16.mxu0 0
  %4009 = vmatpush1.bf16.msra.mxu0 %v3389
  %4010 = vmatprep.subr.bf16.mxu0 0
  %4011 = vmatpush1.bf16.msra.mxu0 %v3396
  %4012 = vmatprep.subr.bf16.mxu0 0
  %4013 = vmatpush1.bf16.msra.mxu0 %v3403
  %4014 = vmatprep.subr.bf16.mxu0 0
  %4015 = vmatpush1.bf16.msra.mxu0 %v3410
  %4016 = vmatprep.subr.bf16.mxu0 0
  %4017 = vmatpush1.bf16.msra.mxu0 %v3417
  %4018 = vmatprep.subr.bf16.mxu0 0
  %4019 = vmatpush1.bf16.msra.mxu0 %v3424
  %4020 = vmatprep.subr.bf16.mxu0 0
  %4021 = vmatpush1.bf16.msra.mxu0 %v3431
  %4022 = vmatprep.subr.bf16.mxu0 0
  %4023 = vmatpush1.bf16.msra.mxu0 %v3438
  %4024 = vmatprep.subr.bf16.mxu0 0
  %4025 = vmatpush1.bf16.msra.mxu0 %v3445
  %4026 = vmatprep.subr.bf16.mxu0 0
  %4027 = vmatpush1.bf16.msra.mxu0 %v3452
  %4028 = vmatprep.subr.bf16.mxu0 0
  %4029 = vmatpush1.bf16.msra.mxu0 %v3459
  %4030 = vmatprep.subr.bf16.mxu0 0
  %4031 = vmatpush1.bf16.msra.mxu0 %v3466
  %4032 = vmatprep.subr.bf16.mxu0 0
  %4033 = vmatpush1.bf16.msra.mxu0 %v3473
  %4034 = vmatprep.subr.bf16.mxu0 0
  %4035 = vmatpush1.bf16.msra.mxu0 %v3480
  %4036 = vmatprep.mubr.bf16.mxu0 %v2259
  %4037 = vmatmul.mubr.bf16.gmra.mrb[0].mxu0 %v2258
  %v4038 = vpop.f32.mrb[0].mxu0
  %v4039 = vadd.f32 %v3998, %v4038
  %v4040 = vpop.f32.mrb[0].mxu0
  %v4041 = vpop.f32.mrb[0].mxu0
  %v4042 = vadd.f32 %v4001, %v4041
  %v4043 = vpop.f32.mrb[0].mxu0
  %4044 = vdwg.mxu0
  %v4045 = vxor.u32 %v3783, 2147483648
  %v4046 = vxor.u32 %v3785, 2147483648
  %v4047 = vxor.u32 %v3869, 2147483648
  %v4048 = vxor.u32 %v3871, 2147483648
  %v4049 = vxor.u32 %v3955, 2147483648
  %v4050 = vxor.u32 %v3957, 2147483648
  %v4051 = vxor.u32 %v4039, 2147483648
  %v4052 = vxor.u32 %v3787, 2147483648
  %v4053 = vxor.u32 %v3789, 2147483648
  %v4054 = vxor.u32 %v3873, 2147483648
  %v4055 = vxor.u32 %v3875, 2147483648
  %v4056 = vxor.u32 %v3959, 2147483648
  %v4057 = vxor.u32 %v3961, 2147483648
  %v4058 = vxor.u32 %v4042, 2147483648
  %v4059 = vmul.f32 %v4045, 1.442695
  %v4060 = vpow.pop %v4059
  %v4061 = vmul.f32 %v4046, 1.442695
  %v4062 = vpow.pop %v4061
  %v4063 = vmul.f32 %v4047, 1.442695
  %v4064 = vpow.pop %v4063
  %v4065 = vmul.f32 %v4048, 1.442695
  %v4066 = vpow.pop %v4065
  %v4067 = vmul.f32 %v4049, 1.442695
  %v4068 = vpow.pop %v4067
  %v4069 = vmul.f32 %v4050, 1.442695
  %v4070 = vpow.pop %v4069
  %v4071 = vmul.f32 %v4051, 1.442695
  %v4072 = vpow.pop %v4071
  %v4073 = vmul.f32 %v4052, 1.442695
  %v4074 = vpow.pop %v4073
  %v4075 = vmul.f32 %v4053, 1.442695
  %v4076 = vpow.pop %v4075
  %v4077 = vmul.f32 %v4054, 1.442695
  %v4078 = vpow.pop %v4077
  %v4079 = vmul.f32 %v4055, 1.442695
  %v4080 = vpow.pop %v4079
  %v4081 = vmul.f32 %v4056, 1.442695
  %v4082 = vpow.pop %v4081
  %v4083 = vmul.f32 %v4057, 1.442695
  %v4084 = vpow.pop %v4083
  %v4085 = vmul.f32 %v4058, 1.442695
  %v4086 = vpow.pop %v4085
  %v4087 = vadd.f32 %v4060, 1.0
  %v4088 = vadd.f32 %v4062, 1.0
  %v4089 = vadd.f32 %v4064, 1.0
  %v4090 = vadd.f32 %v4066, 1.0
  %v4091 = vadd.f32 %v4068, 1.0
  %v4092 = vadd.f32 %v4070, 1.0
  %v4093 = vadd.f32 %v4072, 1.0
  %v4094 = vadd.f32 %v4074, 1.0
  %v4095 = vadd.f32 %v4076, 1.0
  %v4096 = vadd.f32 %v4078, 1.0
  %v4097 = vadd.f32 %v4080, 1.0
  %v4098 = vadd.f32 %v4082, 1.0
  %v4099 = vadd.f32 %v4084, 1.0
  %v4100 = vadd.f32 %v4086, 1.0
  %v4101 = vrcp.pop %v4087
  %v4102 = vmul.f32 1.0, %v4101
  %v4103 = vrcp.pop %v4088
  %v4104 = vmul.f32 1.0, %v4103
  %v4105 = vrcp.pop %v4089
  %v4106 = vmul.f32 1.0, %v4105
  %v4107 = vrcp.pop %v4090
  %v4108 = vmul.f32 1.0, %v4107
  %v4109 = vrcp.pop %v4091
  %v4110 = vmul.f32 1.0, %v4109
  %v4111 = vrcp.pop %v4092
  %v4112 = vmul.f32 1.0, %v4111
  %v4113 = vrcp.pop %v4093
  %v4114 = vmul.f32 1.0, %v4113
  %v4115 = vrcp.pop %v4094
  %v4116 = vmul.f32 1.0, %v4115
  %v4117 = vrcp.pop %v4095
  %v4118 = vmul.f32 1.0, %v4117
  %v4119 = vrcp.pop %v4096
  %v4120 = vmul.f32 1.0, %v4119
  %v4121 = vrcp.pop %v4097
  %v4122 = vmul.f32 1.0, %v4121
  %v4123 = vrcp.pop %v4098
  %v4124 = vmul.f32 1.0, %v4123
  %v4125 = vrcp.pop %v4099
  %v4126 = vmul.f32 1.0, %v4125
  %v4127 = vrcp.pop %v4100
  %v4128 = vmul.f32 1.0, %v4127
  %v4129 = vpack.c.bf16 %v4116, %v4102
  %v4130 = vpack.c.bf16 %v4118, %v4104
  %v4131 = vpack.c.bf16 %v4120, %v4106
  %v4132 = vpack.c.bf16 %v4122, %v4108
  %v4133 = vpack.c.bf16 %v4124, %v4110
  %v4134 = vpack.c.bf16 %v4126, %v4112
  %v4135 = vpack.c.bf16 %v4128, %v4114
  %v4143 = vunpack.c.l.b16 %v4129
  %v4144 = vunpack.c.l.b16 %v4130
  %v4145 = vunpack.c.l.b16 %v4131
  %v4146 = vunpack.c.l.b16 %v4132
  %v4147 = vunpack.c.l.b16 %v4133
  %v4148 = vunpack.c.l.b16 %v4134
  %v4149 = vunpack.c.l.b16 %v4135
  %v4150 = vunpack.c.h.b16 %v4129
  %v4151 = vunpack.c.h.b16 %v4130
  %v4152 = vunpack.c.h.b16 %v4131
  %v4153 = vunpack.c.h.b16 %v4132
  %v4154 = vunpack.c.h.b16 %v4133
  %v4155 = vunpack.c.h.b16 %v4134
  %v4156 = vunpack.c.h.b16 %v4135
  %v4157 = vpack.c.b16 %v4144, %v4143
  %v4158 = vpack.c.b16 %v4146, %v4145
  %v4159 = vpack.c.b16 %v4148, %v4147
  %v4160 = vpack.c.b16 %v4149, %v4149
  %v4161 = vpack.c.b16 %v4151, %v4150
  %v4162 = vpack.c.b16 %v4153, %v4152
  %v4163 = vpack.c.b16 %v4155, %v4154
  %v4164 = vpack.c.b16 %v4156, %v4156
  %4173 = vst [vmem:[%s10] sm:$0xff] %v4157
  %4174 = vst [vmem:[%s10 + $0x8] sm:$0xff] %v4158
  %4175 = vst [vmem:[%s10 + $0x10] sm:$0xff] %v4159
  %vm4176 = vcmask 125952
  %4177 = vst.msk [vmem:[%s10 + $0x18] sm:$0xf] %vm4176, %v4160
  %4178 = vst [vmem:[%s10 + $0x1c] sm:$0xff] %v4161
  %4179 = vst [vmem:[%s10 + $0x24] sm:$0xff] %v4162
  %4180 = vst [vmem:[%s10 + $0x2c] sm:$0xff] %v4163
  %4181 = vst.msk [vmem:[%s10 + $0x34] sm:$0xf] %vm4176, %v4164
  // Predicated region
  $region42: #{vae_forward.1} parent=0 // pred_check
    _
  $region43: #{vae_forward.1} parent=0 // pred_check_branch
    %4183 = sbr.rel (0) target = $region45
  $region44: #{vae_forward.1} parent=0 // pred_region
    _
  $region45: #{vae_forward.1} parent=0 // pred_fallthru
    _
  // Predicated region
  $region46: #{vae_forward.1} parent=0 // pred_check
    _
  $region47: #{vae_forward.1} parent=0 // pred_check_branch
    %4185 = sbr.rel (0) target = $region49
  $region48: #{vae_forward.1} parent=0 // pred_region
    _
  $region49: #{vae_forward.1} parent=0 // pred_fallthru
    _
  // Predicated region
  $region50: #{vae_forward.1} parent=0 // pred_check
    _
  $region51: #{vae_forward.1} parent=0 // pred_check_branch
    %4187 = sbr.rel (0) target = $region53
  $region52: #{vae_forward.1} parent=0 // pred_region
    _
  $region53: #{vae_forward.1} parent=0 // pred_fallthru
    _
  // Predicated region
  $region54: #{vae_forward.1} parent=0 // pred_check
    _
  $region55: #{vae_forward.1} parent=0 // pred_check_branch
    %4189 = sbr.rel (0) target = $region57
  $region56: #{vae_forward.1} parent=0 // pred_region
    _
  $region57: #{vae_forward.1} parent=0 // pred_fallthru
    _

</llo_original>
